<compile_context>
chip_gen: v6e
topology: v6e:2x2x1
jax: 0.10.0
libtpu: 0.0.40
codegen_flags: <defaults>
</compile_context>

<pallas_src>
import functools

import jax
import jax.numpy as jnp
from jax import lax
from jax.experimental import pallas as pl
from jax.experimental.pallas import tpu as pltpu


def _round_up(x, m):
    return ((x + m - 1) // m) * m


def _conv_bn_lrelu_kernel(xm_ref, xh_ref, w_ref, shift_ref, o_ref, slab_ref,
                          *, th, w_out, negative_slope):
    # xm_ref:    (1, TH,  W+2, Cin_p)  main slab of padded input rows
    # xh_ref:    (1, 2,   W+2, Cin_p)  2-row halo (rows just below the slab)
    # w_ref:     (9, Cin_p, Cout_p)    BN-scale-folded conv weights (resident)
    # shift_ref: (1, Cout_p)           folded conv-bias + BN shift (f32, resident)
    # o_ref:     (1, TH, W, Cout_p)
    # slab_ref:  (TH+2, W+2, Cin_p)    VMEM scratch: contiguous slab incl. halo
    slab_ref[0:th] = xm_ref[0]
    slab_ref[th:th + 2] = xh_ref[0]

    cin = slab_ref.shape[-1]
    cop = o_ref.shape[-1]

    acc = jnp.zeros((th * w_out, cop), dtype=jnp.float32)
    for dy in range(3):
        for dx in range(3):
            lhs = slab_ref[dy:dy + th, dx:dx + w_out, :].reshape(th * w_out, cin)
            acc = acc + jnp.dot(lhs, w_ref[dy * 3 + dx],
                                preferred_element_type=jnp.float32)

    y = acc + shift_ref[...]
    y = jnp.where(y >= 0, y, negative_slope * y)          # LeakyReLU
    o_ref[0] = y.reshape(th, w_out, cop).astype(o_ref.dtype)


def conv_dropout_norm_nonlin_nhwc(x_nhwc, weight, bias, gamma, beta,
                                  running_mean, running_var, *,
                                  negative_slope=0.01, eps=1e-5,
                                  block_h=16, mxu_dtype=None):
    """Eval-mode ConvDropoutNormNonlin forward on NHWC input; returns NHWC."""
    N, H, W, C_in = x_nhwc.shape
    C_out = weight.shape[0]
    out_dtype = x_nhwc.dtype
    compute_dtype = out_dtype if mxu_dtype is None else mxu_dtype

    # Row-tile size (even).
    th = max(2, min(int(block_h), _round_up(H, 2)))
    th = _round_up(th, 2)
    nb = -(-H // th)
    h_round = nb * th
    wp = W + 2

    cin_p = _round_up(C_in, 8)        # sublane-friendly contraction dim
    cout_p = _round_up(C_out, 128)    # lane-dense output stores

    # Padded activation: 1 top pad row, (h_round - H + 1) bottom pad rows,
    # 1 zero column left/right, channel pad to cin_p.
    x_pad = jnp.pad(x_nhwc,
                    ((0, 0), (1, h_round - H + 1), (1, 1), (0, cin_p - C_in)))
    x_pad = x_pad.astype(compute_dtype)

    # Fold eval-mode BN scale into the conv weights; bias/mean/beta into shift.
    scale = gamma / jnp.sqrt(running_var + eps)                      # (C_out,)
    w_t = jnp.transpose(weight, (2, 3, 1, 0)) * scale                # (3,3,Cin,Cout)
    w_mat = w_t.reshape(9, C_in, C_out)
    w_mat = jnp.pad(w_mat, ((0, 0), (0, cin_p - C_in), (0, cout_p - C_out)))
    w_mat = w_mat.astype(compute_dtype)

    shift = (bias - running_mean) * scale + beta                     # (C_out,)
    shift = jnp.pad(shift, (0, cout_p - C_out)).reshape(1, cout_p)
    shift = shift.astype(jnp.float32)

    item = jnp.dtype(compute_dtype).itemsize
    out_item = jnp.dtype(out_dtype).itemsize
    vmem_bytes = (
        2 * th * wp * cin_p * item            # main slab (double-buffered)
        + 2 * 2 * wp * cin_p * item           # halo (double-buffered)
        + 9 * cin_p * cout_p * item           # resident weights
        + 8 * cout_p * 4                      # shift
        + 2 * th * W * cout_p * out_item      # output (double-buffered)
        + (th + 2) * wp * cin_p * item        # scratch slab
        + 2 * th * W * cout_p * 4             # f32 accumulator headroom
    )
    vmem_limit = int(min(64 * 2 ** 20, max(2 * vmem_bytes, 16 * 2 ** 20)))

    cost = pl.CostEstimate(
        flops=int(2 * N * h_round * W * 9 * cin_p * cout_p),
        transcendentals=0,
        bytes_accessed=int(x_pad.size * item * (1.0 + 2.0 / th)
                           + 9 * cin_p * cout_p * item
                           + N * h_round * W * cout_p * out_item),
    )

    kernel = functools.partial(_conv_bn_lrelu_kernel, th=th, w_out=W,
                               negative_slope=negative_slope)
    half_th = th // 2

    out = pl.pallas_call(
        kernel,
        out_shape=jax.ShapeDtypeStruct((N, h_round, W, cout_p), out_dtype),
        grid=(N, nb),
        in_specs=[
            # main row slab: padded rows [r*TH, r*TH + TH)
            pl.BlockSpec((1, th, wp, cin_p), lambda n, r: (n, r, 0, 0)),
            # 2-row halo: padded rows [(r+1)*TH, (r+1)*TH + 2)
            pl.BlockSpec((1, 2, wp, cin_p),
                         lambda n, r: (n, (r + 1) * half_th, 0, 0)),
            # folded weights (resident across the whole grid)
            pl.BlockSpec((9, cin_p, cout_p), lambda n, r: (0, 0, 0)),
            # folded shift (resident)
            pl.BlockSpec((1, cout_p), lambda n, r: (0, 0)),
        ],
        out_specs=pl.BlockSpec((1, th, W, cout_p), lambda n, r: (n, r, 0, 0)),
        scratch_shapes=[pltpu.VMEM((th + 2, wp, cin_p), compute_dtype)],
        compiler_params=pltpu.CompilerParams(
            dimension_semantics=("parallel", "parallel"),
            vmem_limit_bytes=vmem_limit),
        cost_estimate=cost,
    )(x_pad, x_pad, w_mat, shift)

    return out[:, :H, :, :C_out]


@functools.partial(jax.jit,
                   static_argnames=("negative_slope", "eps", "block_h",
                                    "mxu_dtype"))
def conv_dropout_norm_nonlin(x, weight, bias, gamma, beta, running_mean,
                             running_var, *, negative_slope=0.01, eps=1e-5,
                             block_h=16, mxu_dtype=None):
    """Forward of ConvDropoutNormNonlin (eval mode) for NCHW input x.

    x:       (N, C_in, H, W)
    weight:  (C_out, C_in, 3, 3)   (PyTorch OIHW layout)
    bias, gamma, beta, running_mean, running_var: (C_out,)
    """
    x_nhwc = jnp.transpose(x, (0, 2, 3, 1))
    y = conv_dropout_norm_nonlin_nhwc(
        x_nhwc, weight, bias, gamma, beta, running_mean, running_var,
        negative_slope=negative_slope, eps=eps, block_h=block_h,
        mxu_dtype=mxu_dtype)
    return jnp.transpose(y, (0, 3, 1, 2))                 # back to NCHW


if __name__ == "__main__":
    key = jax.random.PRNGKey(0)
    k1, k2, k3, k4, k5, k6, k7 = jax.random.split(key, 7)

    N, C_in, C_out, H, W = 2, 4, 8, 16, 16
    x = jax.random.normal(k1, (N, C_in, H, W), dtype=jnp.float32)
    weight = 0.1 * jax.random.normal(k2, (C_out, C_in, 3, 3), dtype=jnp.float32)
    bias = 0.1 * jax.random.normal(k3, (C_out,), dtype=jnp.float32)
    gamma = 1.0 + 0.1 * jax.random.normal(k4, (C_out,), dtype=jnp.float32)
    beta = 0.1 * jax.random.normal(k5, (C_out,), dtype=jnp.float32)
    running_mean = 0.1 * jax.random.normal(k6, (C_out,), dtype=jnp.float32)
    running_var = 1.0 + 0.1 * jnp.abs(jax.random.normal(k7, (C_out,), dtype=jnp.float32))

    y = conv_dropout_norm_nonlin(x, weight, bias, gamma, beta,
                                 running_mean, running_var)
    y = jax.block_until_ready(y)
    assert y.shape == (N, C_out, H, W), y.shape

    # Pure-JAX reference: conv + bias -> eval BatchNorm -> LeakyReLU
    # (Dropout2d is identity in eval mode).
    conv_ref = lax.conv_general_dilated(
        x, weight, window_strides=(1, 1), padding=((1, 1), (1, 1)),
        dimension_numbers=("NCHW", "OIHW", "NCHW")) + bias.reshape(1, -1, 1, 1)
    s = (gamma / jnp.sqrt(running_var + 1e-5)).reshape(1, -1, 1, 1)
    ref = (conv_ref - running_mean.reshape(1, -1, 1, 1)) * s + beta.reshape(1, -1, 1, 1)
    ref = jnp.where(ref >= 0, ref, 0.01 * ref)

    err = float(jnp.max(jnp.abs(y - ref)))
    assert jnp.allclose(y, ref, atol=1e-2, rtol=1e-2), err
    print("KERNEL_OK")
</pallas_src>

<mosaic_0001>
module attributes {stable_mosaic.version = 11 : i64} {
  func.func @_conv_bn_lrelu_kernel(%arg0: i32, %arg1: i32, %arg2: memref<1x16x18x8xf32, #tpu.memory_space<vmem>>, %arg3: memref<1x2x18x8xf32, #tpu.memory_space<vmem>>, %arg4: memref<9x8x128xf32, #tpu.memory_space<vmem>>, %arg5: memref<1x128xf32, #tpu.memory_space<vmem>>, %arg6: memref<1x16x16x128xf32, #tpu.memory_space<vmem>>, %arg7: memref<18x18x8xf32, #tpu.memory_space<vmem>>) attributes {dimension_semantics = [#tpu.dimension_semantics<parallel>, #tpu.dimension_semantics<parallel>], iteration_bounds = array<i64: 2, 1>, scalar_prefetch = 0 : i64, scratch_operands = 1 : i64, tpu.core_type = #tpu.core_type<tc>, window_params = [{transform_indices = @transform_0, window_bounds = array<i64: 1, 16, 18, 8>}, {transform_indices = @transform_1, window_bounds = array<i64: 1, 2, 18, 8>}, {pipeline_mode = #tpu.pipeline_mode<synchronous>, transform_indices = @transform_2, window_bounds = array<i64: 9, 8, 128>}, {pipeline_mode = #tpu.pipeline_mode<synchronous>, transform_indices = @transform_3, window_bounds = array<i64: 1, 128>}, {transform_indices = @transform_4, window_bounds = array<i64: 1, 16, 16, 128>}]} {
    %c0 = arith.constant 0 : index
    %c0_0 = arith.constant 0 : index
    %c0_1 = arith.constant 0 : index
    %c0_2 = arith.constant 0 : index
    %0 = vector.load %arg2[%c0, %c0_0, %c0_1, %c0_2] : memref<1x16x18x8xf32, #tpu.memory_space<vmem>>, vector<1x16x18x8xf32>
    %1 = vector.shape_cast %0 : vector<1x16x18x8xf32> to vector<16x18x8xf32>
    %c0_3 = arith.constant 0 : index
    %c0_4 = arith.constant 0 : index
    %c0_5 = arith.constant 0 : index
    %2 = vector.load %arg7[%c0_3, %c0_4, %c0_5] : memref<18x18x8xf32, #tpu.memory_space<vmem>>, vector<16x18x8xf32>
    tpu.vector_store %arg7[%c0_3, %c0_4, %c0_5], %1 {strides = array<i32>} : memref<18x18x8xf32, #tpu.memory_space<vmem>>, vector<16x18x8xf32>,
    %c0_6 = arith.constant 0 : index
    %c0_7 = arith.constant 0 : index
    %c0_8 = arith.constant 0 : index
    %c0_9 = arith.constant 0 : index
    %3 = vector.load %arg3[%c0_6, %c0_7, %c0_8, %c0_9] : memref<1x2x18x8xf32, #tpu.memory_space<vmem>>, vector<1x2x18x8xf32>
    %4 = vector.shape_cast %3 : vector<1x2x18x8xf32> to vector<2x18x8xf32>
    %c16 = arith.constant 16 : index
    %c0_10 = arith.constant 0 : index
    %c0_11 = arith.constant 0 : index
    %5 = vector.load %arg7[%c16, %c0_10, %c0_11] : memref<18x18x8xf32, #tpu.memory_space<vmem>>, vector<2x18x8xf32>
    tpu.vector_store %arg7[%c16, %c0_10, %c0_11], %4 {strides = array<i32>} : memref<18x18x8xf32, #tpu.memory_space<vmem>>, vector<2x18x8xf32>,
    %cst = arith.constant 0.000000e+00 : f32
    %6 = vector.broadcast %cst : f32 to vector<256x128xf32>
    %c0_12 = arith.constant 0 : index
    %c0_13 = arith.constant 0 : index
    %c0_14 = arith.constant 0 : index
    %7 = vector.load %arg7[%c0_12, %c0_13, %c0_14] : memref<18x18x8xf32, #tpu.memory_space<vmem>>, vector<16x16x8xf32>
    %8 = vector.shape_cast %7 : vector<16x16x8xf32> to vector<256x8xf32>
    %c0_15 = arith.constant 0 : index
    %c0_16 = arith.constant 0 : index
    %c0_17 = arith.constant 0 : index
    %9 = vector.load %arg4[%c0_15, %c0_16, %c0_17] : memref<9x8x128xf32, #tpu.memory_space<vmem>>, vector<1x8x128xf32>
    %10 = vector.shape_cast %9 : vector<1x8x128xf32> to vector<8x128xf32>
    %cst_18 = arith.constant dense<0.000000e+00> : vector<256x128xf32>
    %11 = tpu.matmul %8, %10, %cst_18 {dimension_numbers = #tpu.dot_dimension_numbers<[1], [0], [0], [1], [0, 0, 1, 1], [], []>} : vector<256x8xf32>, vector<8x128xf32>, vector<256x128xf32> -> vector<256x128xf32>
    %12 = arith.addf %6, %11 : vector<256x128xf32>
    %c0_19 = arith.constant 0 : index
    %c1 = arith.constant 1 : index
    %c0_20 = arith.constant 0 : index
    %13 = vector.load %arg7[%c0_19, %c1, %c0_20] : memref<18x18x8xf32, #tpu.memory_space<vmem>>, vector<16x16x8xf32>
    %14 = vector.shape_cast %13 : vector<16x16x8xf32> to vector<256x8xf32>
    %c1_21 = arith.constant 1 : index
    %c0_22 = arith.constant 0 : index
    %c0_23 = arith.constant 0 : index
    %15 = vector.load %arg4[%c1_21, %c0_22, %c0_23] : memref<9x8x128xf32, #tpu.memory_space<vmem>>, vector<1x8x128xf32>
    %16 = vector.shape_cast %15 : vector<1x8x128xf32> to vector<8x128xf32>
    %cst_24 = arith.constant dense<0.000000e+00> : vector<256x128xf32>
    %17 = tpu.matmul %14, %16, %cst_24 {dimension_numbers = #tpu.dot_dimension_numbers<[1], [0], [0], [1], [0, 0, 1, 1], [], []>} : vector<256x8xf32>, vector<8x128xf32>, vector<256x128xf32> -> vector<256x128xf32>
    %18 = arith.addf %12, %17 : vector<256x128xf32>
    %c0_25 = arith.constant 0 : index
    %c2 = arith.constant 2 : index
    %c0_26 = arith.constant 0 : index
    %19 = vector.load %arg7[%c0_25, %c2, %c0_26] : memref<18x18x8xf32, #tpu.memory_space<vmem>>, vector<16x16x8xf32>
    %20 = vector.shape_cast %19 : vector<16x16x8xf32> to vector<256x8xf32>
    %c2_27 = arith.constant 2 : index
    %c0_28 = arith.constant 0 : index
    %c0_29 = arith.constant 0 : index
    %21 = vector.load %arg4[%c2_27, %c0_28, %c0_29] : memref<9x8x128xf32, #tpu.memory_space<vmem>>, vector<1x8x128xf32>
    %22 = vector.shape_cast %21 : vector<1x8x128xf32> to vector<8x128xf32>
    %cst_30 = arith.constant dense<0.000000e+00> : vector<256x128xf32>
    %23 = tpu.matmul %20, %22, %cst_30 {dimension_numbers = #tpu.dot_dimension_numbers<[1], [0], [0], [1], [0, 0, 1, 1], [], []>} : vector<256x8xf32>, vector<8x128xf32>, vector<256x128xf32> -> vector<256x128xf32>
    %24 = arith.addf %18, %23 : vector<256x128xf32>
    %c1_31 = arith.constant 1 : index
    %c0_32 = arith.constant 0 : index
    %c0_33 = arith.constant 0 : index
    %25 = vector.load %arg7[%c1_31, %c0_32, %c0_33] : memref<18x18x8xf32, #tpu.memory_space<vmem>>, vector<16x16x8xf32>
    %26 = vector.shape_cast %25 : vector<16x16x8xf32> to vector<256x8xf32>
    %c3 = arith.constant 3 : index
    %c0_34 = arith.constant 0 : index
    %c0_35 = arith.constant 0 : index
    %27 = vector.load %arg4[%c3, %c0_34, %c0_35] : memref<9x8x128xf32, #tpu.memory_space<vmem>>, vector<1x8x128xf32>
    %28 = vector.shape_cast %27 : vector<1x8x128xf32> to vector<8x128xf32>
    %cst_36 = arith.constant dense<0.000000e+00> : vector<256x128xf32>
    %29 = tpu.matmul %26, %28, %cst_36 {dimension_numbers = #tpu.dot_dimension_numbers<[1], [0], [0], [1], [0, 0, 1, 1], [], []>} : vector<256x8xf32>, vector<8x128xf32>, vector<256x128xf32> -> vector<256x128xf32>
    %30 = arith.addf %24, %29 : vector<256x128xf32>
    %c1_37 = arith.constant 1 : index
    %c1_38 = arith.constant 1 : index
    %c0_39 = arith.constant 0 : index
    %31 = vector.load %arg7[%c1_37, %c1_38, %c0_39] : memref<18x18x8xf32, #tpu.memory_space<vmem>>, vector<16x16x8xf32>
    %32 = vector.shape_cast %31 : vector<16x16x8xf32> to vector<256x8xf32>
    %c4 = arith.constant 4 : index
    %c0_40 = arith.constant 0 : index
    %c0_41 = arith.constant 0 : index
    %33 = vector.load %arg4[%c4, %c0_40, %c0_41] : memref<9x8x128xf32, #tpu.memory_space<vmem>>, vector<1x8x128xf32>
    %34 = vector.shape_cast %33 : vector<1x8x128xf32> to vector<8x128xf32>
    %cst_42 = arith.constant dense<0.000000e+00> : vector<256x128xf32>
    %35 = tpu.matmul %32, %34, %cst_42 {dimension_numbers = #tpu.dot_dimension_numbers<[1], [0], [0], [1], [0, 0, 1, 1], [], []>} : vector<256x8xf32>, vector<8x128xf32>, vector<256x128xf32> -> vector<256x128xf32>
    %36 = arith.addf %30, %35 : vector<256x128xf32>
    %c1_43 = arith.constant 1 : index
    %c2_44 = arith.constant 2 : index
    %c0_45 = arith.constant 0 : index
    %37 = vector.load %arg7[%c1_43, %c2_44, %c0_45] : memref<18x18x8xf32, #tpu.memory_space<vmem>>, vector<16x16x8xf32>
    %38 = vector.shape_cast %37 : vector<16x16x8xf32> to vector<256x8xf32>
    %c5 = arith.constant 5 : index
    %c0_46 = arith.constant 0 : index
    %c0_47 = arith.constant 0 : index
    %39 = vector.load %arg4[%c5, %c0_46, %c0_47] : memref<9x8x128xf32, #tpu.memory_space<vmem>>, vector<1x8x128xf32>
    %40 = vector.shape_cast %39 : vector<1x8x128xf32> to vector<8x128xf32>
    %cst_48 = arith.constant dense<0.000000e+00> : vector<256x128xf32>
    %41 = tpu.matmul %38, %40, %cst_48 {dimension_numbers = #tpu.dot_dimension_numbers<[1], [0], [0], [1], [0, 0, 1, 1], [], []>} : vector<256x8xf32>, vector<8x128xf32>, vector<256x128xf32> -> vector<256x128xf32>
    %42 = arith.addf %36, %41 : vector<256x128xf32>
    %c2_49 = arith.constant 2 : index
    %c0_50 = arith.constant 0 : index
    %c0_51 = arith.constant 0 : index
    %43 = vector.load %arg7[%c2_49, %c0_50, %c0_51] : memref<18x18x8xf32, #tpu.memory_space<vmem>>, vector<16x16x8xf32>
    %44 = vector.shape_cast %43 : vector<16x16x8xf32> to vector<256x8xf32>
    %c6 = arith.constant 6 : index
    %c0_52 = arith.constant 0 : index
    %c0_53 = arith.constant 0 : index
    %45 = vector.load %arg4[%c6, %c0_52, %c0_53] : memref<9x8x128xf32, #tpu.memory_space<vmem>>, vector<1x8x128xf32>
    %46 = vector.shape_cast %45 : vector<1x8x128xf32> to vector<8x128xf32>
    %cst_54 = arith.constant dense<0.000000e+00> : vector<256x128xf32>
    %47 = tpu.matmul %44, %46, %cst_54 {dimension_numbers = #tpu.dot_dimension_numbers<[1], [0], [0], [1], [0, 0, 1, 1], [], []>} : vector<256x8xf32>, vector<8x128xf32>, vector<256x128xf32> -> vector<256x128xf32>
    %48 = arith.addf %42, %47 : vector<256x128xf32>
    %c2_55 = arith.constant 2 : index
    %c1_56 = arith.constant 1 : index
    %c0_57 = arith.constant 0 : index
    %49 = vector.load %arg7[%c2_55, %c1_56, %c0_57] : memref<18x18x8xf32, #tpu.memory_space<vmem>>, vector<16x16x8xf32>
    %50 = vector.shape_cast %49 : vector<16x16x8xf32> to vector<256x8xf32>
    %c7 = arith.constant 7 : index
    %c0_58 = arith.constant 0 : index
    %c0_59 = arith.constant 0 : index
    %51 = vector.load %arg4[%c7, %c0_58, %c0_59] : memref<9x8x128xf32, #tpu.memory_space<vmem>>, vector<1x8x128xf32>
    %52 = vector.shape_cast %51 : vector<1x8x128xf32> to vector<8x128xf32>
    %cst_60 = arith.constant dense<0.000000e+00> : vector<256x128xf32>
    %53 = tpu.matmul %50, %52, %cst_60 {dimension_numbers = #tpu.dot_dimension_numbers<[1], [0], [0], [1], [0, 0, 1, 1], [], []>} : vector<256x8xf32>, vector<8x128xf32>, vector<256x128xf32> -> vector<256x128xf32>
    %54 = arith.addf %48, %53 : vector<256x128xf32>
    %c2_61 = arith.constant 2 : index
    %c2_62 = arith.constant 2 : index
    %c0_63 = arith.constant 0 : index
    %55 = vector.load %arg7[%c2_61, %c2_62, %c0_63] : memref<18x18x8xf32, #tpu.memory_space<vmem>>, vector<16x16x8xf32>
    %56 = vector.shape_cast %55 : vector<16x16x8xf32> to vector<256x8xf32>
    %c8 = arith.constant 8 : index
    %c0_64 = arith.constant 0 : index
    %c0_65 = arith.constant 0 : index
    %57 = vector.load %arg4[%c8, %c0_64, %c0_65] : memref<9x8x128xf32, #tpu.memory_space<vmem>>, vector<1x8x128xf32>
    %58 = vector.shape_cast %57 : vector<1x8x128xf32> to vector<8x128xf32>
    %cst_66 = arith.constant dense<0.000000e+00> : vector<256x128xf32>
    %59 = tpu.matmul %56, %58, %cst_66 {dimension_numbers = #tpu.dot_dimension_numbers<[1], [0], [0], [1], [0, 0, 1, 1], [], []>} : vector<256x8xf32>, vector<8x128xf32>, vector<256x128xf32> -> vector<256x128xf32>
    %60 = arith.addf %54, %59 : vector<256x128xf32>
    %c0_67 = arith.constant 0 : index
    %c0_68 = arith.constant 0 : index
    %61 = vector.load %arg5[%c0_67, %c0_68] : memref<1x128xf32, #tpu.memory_space<vmem>>, vector<1x128xf32>
    %62 = vector.broadcast %61 : vector<1x128xf32> to vector<256x128xf32>
    %63 = arith.addf %60, %62 : vector<256x128xf32>
    %cst_69 = arith.constant 0.000000e+00 : f32
    %64 = vector.broadcast %cst_69 : f32 to vector<256x128xf32>
    %65 = arith.cmpf oge, %63, %64 : vector<256x128xf32>
    %cst_70 = arith.constant 0.00999999977 : f32
    %66 = vector.broadcast %cst_70 : f32 to vector<256x128xf32>
    %67 = arith.mulf %66, %63 : vector<256x128xf32>
    %68 = arith.select %65, %63, %67 : vector<256x128xi1>, vector<256x128xf32>
    %69 = vector.shape_cast %68 : vector<256x128xf32> to vector<16x16x128xf32>
    %c0_71 = arith.constant 0 : index
    %c0_72 = arith.constant 0 : index
    %c0_73 = arith.constant 0 : index
    %c0_74 = arith.constant 0 : index
    %70 = vector.load %arg6[%c0_71, %c0_72, %c0_73, %c0_74] : memref<1x16x16x128xf32, #tpu.memory_space<vmem>>, vector<1x16x16x128xf32>
    %71 = vector.shape_cast %70 : vector<1x16x16x128xf32> to vector<16x16x128xf32>
    %72 = vector.shape_cast %69 : vector<16x16x128xf32> to vector<1x16x16x128xf32>
    tpu.vector_store %arg6[%c0_71, %c0_72, %c0_73, %c0_74], %72 {strides = array<i32>} : memref<1x16x16x128xf32, #tpu.memory_space<vmem>>, vector<1x16x16x128xf32>,
    return
  }
  func.func @transform_0(%arg0: i32, %arg1: i32) -> (i32, i32, i32, i32) {
    %c0_i32 = arith.constant 0 : i32
    %c0_i32_0 = arith.constant 0 : i32
    %c0_i32_1 = arith.constant 0 : i32
    return %arg0, %arg1, %c0_i32, %c0_i32_0 : i32, i32, i32, i32
  }
  func.func @transform_1(%arg0: i32, %arg1: i32) -> (i32, i32, i32, i32) {
    %c1_i32 = arith.constant 1 : i32
    %0 = arith.addi %arg1, %c1_i32 : i32
    %c8_i32 = arith.constant 8 : i32
    %1 = arith.muli %0, %c8_i32 : i32
    %c0_i32 = arith.constant 0 : i32
    %c0_i32_0 = arith.constant 0 : i32
    %c0_i32_1 = arith.constant 0 : i32
    return %arg0, %1, %c0_i32, %c0_i32_0 : i32, i32, i32, i32
  }
  func.func @transform_2(%arg0: i32, %arg1: i32) -> (i32, i32, i32) {
    %c0_i32 = arith.constant 0 : i32
    %c0_i32_0 = arith.constant 0 : i32
    %c0_i32_1 = arith.constant 0 : i32
    %c0_i32_2 = arith.constant 0 : i32
    return %c0_i32, %c0_i32_0, %c0_i32_1 : i32, i32, i32
  }
  func.func @transform_3(%arg0: i32, %arg1: i32) -> (i32, i32) {
    %c0_i32 = arith.constant 0 : i32
    %c0_i32_0 = arith.constant 0 : i32
    %c0_i32_1 = arith.constant 0 : i32
    return %c0_i32, %c0_i32_0 : i32, i32
  }
  func.func @transform_4(%arg0: i32, %arg1: i32) -> (i32, i32, i32, i32) {
    %c0_i32 = arith.constant 0 : i32
    %c0_i32_0 = arith.constant 0 : i32
    %c0_i32_1 = arith.constant 0 : i32
    return %arg0, %arg1, %c0_i32, %c0_i32_0 : i32, i32, i32, i32
  }
}

</mosaic_0001>

<llo_original>
// kernel: conv_dropout_norm_nonlin.1
$region0: #{conv_dropout_norm_nonlin.1}
  #allocation0 [shape = 'u32[]', space=smem, size = 0x4, offset = 0x4, fixed_abs, tag = 'smem constant byte address 0x4 - core index']
  #allocation1 [shape = 'u32[144,128]{1,0:T(1,128)}', space=vmem, size = 0x12000, scoped, tag = 'internal scratch']
  #allocation2 [shape = 'f32[18,18,8]{2,1,0:T(8,128)}', space=vmem, size = 0x36000, scoped, tag = 'scratch operand']
  %s0 = inlined_call_operand.vmem [shape: f32[2,18,18,8], index: 0, kind: input, shape index: {}, may-alias: {0,1}]
  %s1 = inlined_call_operand.vmem [shape: f32[2,18,18,8], index: 1, kind: input, shape index: {}, may-alias: {0,1}]
  %s2 = inlined_call_operand.vmem [shape: f32[9,8,128], index: 2, kind: input, shape index: {}]
  %s3 = inlined_call_operand.vmem [shape: f32[1,128], index: 3, kind: input, shape index: {}]
  %s4 = inlined_call_operand.vmem [shape: f32[2,16,16,128], index: 4, kind: output, shape index: {}]
  %s5 = sld [smem:[#allocation0]]
  $region49: #{conv_dropout_norm_nonlin.1} parent=0
    _
  %s7 = ssub.s32 1, %s5
  %s8 = scalar_select 0, %s7, %s5
  loop: start=0, step=1, limit=4
  $region2: #{conv_dropout_norm_nonlin.1} parent=0 // loop_pre_header
    _
  $region3: #{conv_dropout_norm_nonlin.1} parent=0 // loop_header
    %s10 = sphi 0, %s14
    %p11 = scmp.ge.s32.totalorder %s10, 4
    %s17 = sphi 0, %s29
    %s18 = sphi 0, %s25
    %s19 = sphi 0, %s17
    %s20 = sphi 0, %s18
    %s21 = sphi 0, %s19
    %s22 = sphi 0, %s20
    %s34 = sphi 0, %s36
    %s37 = sphi 0, %s34
    %s38 = sphi 0, %s37
    %s54 = sphi 0, %s38
    %s66 = sphi 0, %s68
    %s69 = sphi 0, %s66
    %s70 = sphi 0, %s69
    %s86 = sphi 0, %s70
    %s90 = sphi 0, %s90
    %s92 = sphi 0, %s90
    %s93 = sphi 0, %s92
    %s107 = sphi 0, %s93
    %s111 = sphi 0, %s111
    %s113 = sphi 0, %s111
    %s114 = sphi 0, %s113
    %s128 = sphi 0, %s114
    %s136 = sphi 0, %s138
    %s139 = sphi 0, %s136
    %s140 = sphi 0, %s139
    %s156 = sphi 0, %s140
  $region4: #{conv_dropout_norm_nonlin.1} parent=0 // loop_header_branch
    %13 = sbr.rel (%p11) target = $region8
  $region5: #{conv_dropout_norm_nonlin.1} parent=0 // loop_body
    %s15 = ssub.s32 %s10, 1
    %s16 = ssub.s32 %s10, 2
    %s23 = sadd.s32 1, %s18
    %p24 = scmp.ge.s32.totalorder %s23, 1
    %s25 = scalar_select %p24, 0, %s23
    %s26 = sadd.s32 1, %s17
    %s27 = scalar_select %p24, %s26, %s17
    %p28 = scmp.ge.s32.totalorder %s27, 2
    %s29 = scalar_select %p28, 0, %s27
    %s30 = ssub.s32 %s17, %s29
    %s31 = ssub.s32 %s18, %s25
    %s32 = sor.u32 %s30, %s31
    %p33 = scmp.eq.s32.totalorder %s32, 0
    %s35 = sadd.s32 %s34, 1
    %s36 = scalar_select %p33, %s34, %s35
    %p39 = pneg %p33
    %p40 = scmp.eq.s32.totalorder %s10, 1
    %p41 = por %p39, %p40
    %p42 = scmp.ne.s32.totalorder %s34, %s37
    %p43 = scmp.eq.s32.totalorder %s10, 0
    %p44 = por %p42, %p43
    %p45 = scmp.ne.s32.totalorder %s34, %s37
    %p46 = scmp.eq.s32.totalorder %s15, 1
    %p47 = por %p45, %p46
    %p48 = scmp.ne.s32.totalorder %s37, %s38
    %p49 = scmp.eq.s32.totalorder %s15, 0
    %p50 = por %p48, %p49
    %p51 = scmp.ne.s32.totalorder %s37, %s38
    %p52 = scmp.eq.s32.totalorder %s16, 1
    %p53 = por %p51, %p52
    %p55 = scmp.ne.s32.totalorder %s38, %s54
    %p56 = scmp.eq.s32.totalorder %s16, 0
    %p57 = por %p55, %p56
    %s58 = sadd.s32 %s18, 1
    %s59 = smul.u32 %s58, 8
    %s60 = sadd.s32 %s25, 1
    %s61 = smul.u32 %s60, 8
    %s62 = ssub.s32 %s17, %s29
    %s63 = ssub.s32 %s59, %s61
    %s64 = sor.u32 %s62, %s63
    %p65 = scmp.eq.s32.totalorder %s64, 0
    %s67 = sadd.s32 %s66, 1
    %s68 = scalar_select %p65, %s66, %s67
    %p71 = pneg %p65
    %p72 = scmp.eq.s32.totalorder %s10, 1
    %p73 = por %p71, %p72
    %p74 = scmp.ne.s32.totalorder %s66, %s69
    %p75 = scmp.eq.s32.totalorder %s10, 0
    %p76 = por %p74, %p75
    %p77 = scmp.ne.s32.totalorder %s66, %s69
    %p78 = scmp.eq.s32.totalorder %s15, 1
    %p79 = por %p77, %p78
    %p80 = scmp.ne.s32.totalorder %s69, %s70
    %p81 = scmp.eq.s32.totalorder %s15, 0
    %p82 = por %p80, %p81
    %p83 = scmp.ne.s32.totalorder %s69, %s70
    %p84 = scmp.eq.s32.totalorder %s16, 1
    %p85 = por %p83, %p84
    %p87 = scmp.ne.s32.totalorder %s70, %s86
    %p88 = scmp.eq.s32.totalorder %s16, 0
    %p89 = por %p87, %p88
    %s91 = sadd.s32 %s90, 1
    %p94 = scmp.eq.s32.totalorder %s10, 1
    %p95 = scmp.ne.s32.totalorder %s90, %s92
    %p96 = scmp.eq.s32.totalorder %s10, 0
    %p97 = por %p95, %p96
    %p98 = scmp.ne.s32.totalorder %s90, %s92
    %p99 = scmp.eq.s32.totalorder %s15, 1
    %p100 = por %p98, %p99
    %p101 = scmp.ne.s32.totalorder %s92, %s93
    %p102 = scmp.eq.s32.totalorder %s15, 0
    %p103 = por %p101, %p102
    %p104 = scmp.ne.s32.totalorder %s92, %s93
    %p105 = scmp.eq.s32.totalorder %s16, 1
    %p106 = por %p104, %p105
    %p108 = scmp.ne.s32.totalorder %s93, %s107
    %p109 = scmp.eq.s32.totalorder %s16, 0
    %p110 = por %p108, %p109
    %s112 = sadd.s32 %s111, 1
    %p115 = scmp.eq.s32.totalorder %s10, 1
    %p116 = scmp.ne.s32.totalorder %s111, %s113
    %p117 = scmp.eq.s32.totalorder %s10, 0
    %p118 = por %p116, %p117
    %p119 = scmp.ne.s32.totalorder %s111, %s113
    %p120 = scmp.eq.s32.totalorder %s15, 1
    %p121 = por %p119, %p120
    %p122 = scmp.ne.s32.totalorder %s113, %s114
    %p123 = scmp.eq.s32.totalorder %s15, 0
    %p124 = por %p122, %p123
    %p125 = scmp.ne.s32.totalorder %s113, %s114
    %p126 = scmp.eq.s32.totalorder %s16, 1
    %p127 = por %p125, %p126
    %p129 = scmp.ne.s32.totalorder %s114, %s128
    %p130 = scmp.eq.s32.totalorder %s16, 0
    %p131 = por %p129, %p130
    %s132 = ssub.s32 %s17, %s29
    %s133 = ssub.s32 %s18, %s25
    %s134 = sor.u32 %s132, %s133
    %p135 = scmp.eq.s32.totalorder %s134, 0
    %s137 = sadd.s32 %s136, 1
    %s138 = scalar_select %p135, %s136, %s137
    %p141 = pneg %p135
    %p142 = scmp.eq.s32.totalorder %s10, 1
    %p143 = por %p141, %p142
    %p144 = scmp.ne.s32.totalorder %s136, %s139
    %p145 = scmp.eq.s32.totalorder %s10, 0
    %p146 = por %p144, %p145
    %p147 = scmp.ne.s32.totalorder %s136, %s139
    %p148 = scmp.eq.s32.totalorder %s15, 1
    %p149 = por %p147, %p148
    %p150 = scmp.ne.s32.totalorder %s139, %s140
    %p151 = scmp.eq.s32.totalorder %s15, 0
    %p152 = por %p150, %p151
    %p153 = scmp.ne.s32.totalorder %s139, %s140
    %p154 = scmp.eq.s32.totalorder %s16, 1
    %p155 = por %p153, %p154
    %p157 = scmp.ne.s32.totalorder %s140, %s156
    %p158 = scmp.eq.s32.totalorder %s16, 0
    %p159 = por %p157, %p158
    %p160 = scmp.le.s32.totalorder 1, %s10
    %p161 = scmp.lt.s32.totalorder %s10, 3
    %p162 = pnand %p160, %p161
    %p163 = pneg %p162
    // Predicated region
    $region9: #{conv_dropout_norm_nonlin.1} parent=5 // pred_check
      _
    $region10: #{conv_dropout_norm_nonlin.1} parent=5 // pred_check_branch
      %165 = sbr.rel (%p162) target = $region12
    $region11: #{conv_dropout_norm_nonlin.1} parent=5 // pred_region
      %s166 = ssub.s32 %s10, 1
      // Predicated region
      $region13: #{conv_dropout_norm_nonlin.1} parent=11 // pred_check
        %p167 = pneg %p103
      $region14: #{conv_dropout_norm_nonlin.1} parent=11 // pred_check_branch
        %169 = sbr.rel (%p167) target = $region16
      $region15: #{conv_dropout_norm_nonlin.1} parent=11 // pred_region
        _
      $region16: #{conv_dropout_norm_nonlin.1} parent=11 // pred_fallthru
        _
      // Predicated region
      $region17: #{conv_dropout_norm_nonlin.1} parent=11 // pred_check
        %p170 = pneg %p124
      $region18: #{conv_dropout_norm_nonlin.1} parent=11 // pred_check_branch
        %172 = sbr.rel (%p170) target = $region20
      $region19: #{conv_dropout_norm_nonlin.1} parent=11 // pred_region
        _
      $region20: #{conv_dropout_norm_nonlin.1} parent=11 // pred_fallthru
        _
    $region12: #{conv_dropout_norm_nonlin.1} parent=5 // pred_fallthru
      _
    %p173 = scmp.lt.s32.totalorder %s10, 2
    // Predicated region
    $region21: #{conv_dropout_norm_nonlin.1} parent=5 // pred_check
      %p174 = pneg %p173
    $region22: #{conv_dropout_norm_nonlin.1} parent=5 // pred_check_branch
      %176 = sbr.rel (%p174) target = $region24
    $region23: #{conv_dropout_norm_nonlin.1} parent=5 // pred_region
      // Predicated region
      $region25: #{conv_dropout_norm_nonlin.1} parent=23 // pred_check
        %p177 = pneg %p44
      $region26: #{conv_dropout_norm_nonlin.1} parent=23 // pred_check_branch
        %179 = sbr.rel (%p177) target = $region28
      $region27: #{conv_dropout_norm_nonlin.1} parent=23 // pred_region
        %s180 = smul.u32 16, %s18
        %s181 = ssub.s32 18, %s180
        %p182 = scmp.lt.s32.totalorder %s181, 16
        %s183 = scalar_select %p182, %s181, 16
        %s184 = smul.u32 128, %s183
        %s185 = smul.u32 %s184, 3
        %p186 = scmp.lt.s32.totalorder %s17, 1
        %s187 = scalar_select %p186, %s17, 1
        %p188 = scmp.lt.s32.totalorder %s180, 17
        %s189 = scalar_select %p188, %s180, 17
        %s190 = smul.addr %s189, 3
        %s191 = smul.addr %s187, 54
        %s192 = sadd.s32 %s190, %s191
        %s193 = smul.addr %s192, 8
        %s194 = scalar_lea.vmem %s0, %s193
        %s195 = smul.u32 16, %s18
        %s196 = ssub.s32 18, %s195
        %p197 = scmp.lt.s32.totalorder %s196, 16
        %s198 = scalar_select %p197, %s196, 16
        %s199 = smul.u32 128, %s198
        %s200 = smul.u32 %s199, 3
      $region28: #{conv_dropout_norm_nonlin.1} parent=23 // pred_fallthru
        _
      // Predicated region
      $region29: #{conv_dropout_norm_nonlin.1} parent=23 // pred_check
        %p201 = pneg %p76
      $region30: #{conv_dropout_norm_nonlin.1} parent=23 // pred_check_branch
        %203 = sbr.rel (%p201) target = $region32
      $region31: #{conv_dropout_norm_nonlin.1} parent=23 // pred_region
        %s204 = sadd.s32 %s18, 1
        %s205 = smul.u32 %s204, 8
        %s206 = smul.u32 2, %s205
        %p207 = scmp.lt.s32.totalorder %s17, 1
        %s208 = scalar_select %p207, %s17, 1
        %p209 = scmp.lt.s32.totalorder %s206, 17
        %s210 = scalar_select %p209, %s206, 17
        %s211 = smul.addr %s210, 3
        %s212 = smul.addr %s208, 54
        %s213 = sadd.s32 %s211, %s212
        %s214 = smul.addr %s213, 8
        %s215 = scalar_lea.vmem %s1, %s214
        %s216 = sadd.s32 %s18, 1
        %s217 = smul.u32 %s216, 8
        %s218 = smul.u32 2, %s217
      $region32: #{conv_dropout_norm_nonlin.1} parent=23 // pred_fallthru
        _
    $region24: #{conv_dropout_norm_nonlin.1} parent=5 // pred_fallthru
      _
    %p219 = scmp.le.s32.totalorder 1, %s10
    %p220 = scmp.lt.s32.totalorder %s10, 3
    %p221 = pnand %p219, %p220
    %p222 = pneg %p221
    // Predicated region
    $region33: #{conv_dropout_norm_nonlin.1} parent=5 // pred_check
      _
    $region34: #{conv_dropout_norm_nonlin.1} parent=5 // pred_check_branch
      %224 = sbr.rel (%p221) target = $region36
    $region35: #{conv_dropout_norm_nonlin.1} parent=5 // pred_region
      %s225 = ssub.s32 %s10, 1
      %s226 = smul.u32 16, %s20
      %s227 = ssub.s32 18, %s226
      %p228 = scmp.lt.s32.totalorder %s227, 16
      %s229 = scalar_select %p228, %s227, 16
      %s230 = smul.u32 128, %s229
      %s231 = smul.u32 %s230, 3
      %p232 = scmp.lt.s32.totalorder %s19, 1
      %s233 = scalar_select %p232, %s19, 1
      %p234 = scmp.lt.s32.totalorder %s226, 17
      %s235 = scalar_select %p234, %s226, 17
      %s236 = smul.addr %s235, 3
      %s237 = smul.addr %s233, 54
      %s238 = sadd.s32 %s236, %s237
      %s239 = smul.addr %s238, 8
      %s240 = scalar_lea.vmem %s0, %s239
      %p241 = pneg %p50
      %p242 = pneg %p47
      %s243 = sadd.s32 %s20, 1
      %s244 = smul.u32 %s243, 8
      %s245 = smul.u32 2, %s244
      %p246 = scmp.lt.s32.totalorder %s19, 1
      %s247 = scalar_select %p246, %s19, 1
      %p248 = scmp.lt.s32.totalorder %s245, 17
      %s249 = scalar_select %p248, %s245, 17
      %s250 = smul.addr %s249, 3
      %s251 = smul.addr %s247, 54
      %s252 = sadd.s32 %s250, %s251
      %s253 = smul.addr %s252, 8
      %s254 = scalar_lea.vmem %s1, %s253
      %p255 = pneg %p82
      %p256 = pneg %p79
      %p257 = pneg %p103
      %p258 = pneg %p100
      %p259 = pneg %p124
      %p260 = pneg %p121
      %p261 = pneg %p152
      %p262 = pneg %p149
      %s263 = smul.u32 16, %s20
      %p264 = scmp.lt.s32.totalorder %s19, 1
      %s265 = scalar_select %p264, %s19, 1
      %p266 = scmp.lt.s32.totalorder %s263, 15
      %s267 = scalar_select %p266, %s263, 15
      %s268 = smul.addr %s267, 2
      %s269 = smul.addr %s265, 32
      %s270 = sadd.s32 %s268, %s269
      %s271 = smul.addr %s270, 8
      %s272 = scalar_lea.vmem %s4, %s271
      %s273 = smul.u32 16, %s20
      %s274 = ssub.s32 18, %s273
      %p275 = scmp.lt.s32.totalorder %s274, 16
      %s276 = scalar_select %p275, %s274, 16
      %s277 = smul.u32 128, %s276
      %s278 = smul.u32 %s277, 3
      %p279 = scmp.lt.s32.totalorder %s19, 1
      %s280 = scalar_select %p279, %s19, 1
      %p281 = scmp.lt.s32.totalorder %s273, 17
      %s282 = scalar_select %p281, %s273, 17
      %s283 = smul.addr %s282, 3
      %s284 = smul.addr %s280, 54
      %s285 = sadd.s32 %s283, %s284
      %s286 = smul.addr %s285, 8
      %s287 = scalar_lea.vmem %s0, %s286
      %s288 = smul.u32 16, %s20
      %s289 = ssub.s32 18, %s288
      %p290 = scmp.lt.s32.totalorder %s289, 16
      %s291 = scalar_select %p290, %s289, 16
      %s292 = smul.u32 128, %s291
      %s293 = smul.u32 %s292, 3
      %s294 = sadd.s32 %s20, 1
      %s295 = smul.u32 %s294, 8
      %s296 = smul.u32 2, %s295
      %p297 = scmp.lt.s32.totalorder %s19, 1
      %s298 = scalar_select %p297, %s19, 1
      %p299 = scmp.lt.s32.totalorder %s296, 17
      %s300 = scalar_select %p299, %s296, 17
      %s301 = smul.addr %s300, 3
      %s302 = smul.addr %s298, 54
      %s303 = sadd.s32 %s301, %s302
      %s304 = smul.addr %s303, 8
      %s305 = scalar_lea.vmem %s1, %s304
      %s306 = sadd.s32 %s20, 1
      %s307 = smul.u32 %s306, 8
      %s308 = smul.u32 2, %s307
      %s309 = smul.u32 16, %s20
      %p310 = scmp.lt.s32.totalorder %s19, 1
      %s311 = scalar_select %p310, %s19, 1
      %p312 = scmp.lt.s32.totalorder %s309, 15
      %s313 = scalar_select %p312, %s309, 15
      %s314 = smul.addr %s313, 2
      %s315 = smul.addr %s311, 32
      %s316 = sadd.s32 %s314, %s315
      %s317 = smul.addr %s316, 8
      %s318 = scalar_lea.vmem %s4, %s317
      %s319 = smul.u32 16, %s20
      %v320 = vld [vmem:[%s287] sm:$0xff]
      %v321 = vld [vmem:[%s287 + $0x8] sm:$0xff]
      %v322 = vld [vmem:[%s287 + $0x10] sm:$0x3]
      %v323 = vld [vmem:[%s287 + $0x18] sm:$0xff]
      %v324 = vld [vmem:[%s287 + $0x20] sm:$0xff]
      %v325 = vld [vmem:[%s287 + $0x28] sm:$0x3]
      %v326 = vld [vmem:[%s287 + $0x30] sm:$0xff]
      %v327 = vld [vmem:[%s287 + $0x38] sm:$0xff]
      %v328 = vld [vmem:[%s287 + $0x40] sm:$0x3]
      %v329 = vld [vmem:[%s287 + $0x48] sm:$0xff]
      %v330 = vld [vmem:[%s287 + $0x50] sm:$0xff]
      %v331 = vld [vmem:[%s287 + $0x58] sm:$0x3]
      %v332 = vld [vmem:[%s287 + $0x60] sm:$0xff]
      %v333 = vld [vmem:[%s287 + $0x68] sm:$0xff]
      %v334 = vld [vmem:[%s287 + $0x70] sm:$0x3]
      %v335 = vld [vmem:[%s287 + $0x78] sm:$0xff]
      %v336 = vld [vmem:[%s287 + $0x80] sm:$0xff]
      %v337 = vld [vmem:[%s287 + $0x88] sm:$0x3]
      %v338 = vld [vmem:[%s287 + $0x90] sm:$0xff]
      %v339 = vld [vmem:[%s287 + $0x98] sm:$0xff]
      %v340 = vld [vmem:[%s287 + $0xa0] sm:$0x3]
      %v341 = vld [vmem:[%s287 + $0xa8] sm:$0xff]
      %v342 = vld [vmem:[%s287 + $0xb0] sm:$0xff]
      %v343 = vld [vmem:[%s287 + $0xb8] sm:$0x3]
      %v344 = vld [vmem:[%s287 + $0xc0] sm:$0xff]
      %v345 = vld [vmem:[%s287 + $0xc8] sm:$0xff]
      %v346 = vld [vmem:[%s287 + $0xd0] sm:$0x3]
      %v347 = vld [vmem:[%s287 + $0xd8] sm:$0xff]
      %v348 = vld [vmem:[%s287 + $0xe0] sm:$0xff]
      %v349 = vld [vmem:[%s287 + $0xe8] sm:$0x3]
      %v350 = vld [vmem:[%s287 + $0xf0] sm:$0xff]
      %v351 = vld [vmem:[%s287 + $0xf8] sm:$0xff]
      %v352 = vld [vmem:[%s287 + $0x100] sm:$0x3]
      %v353 = vld [vmem:[%s287 + $0x108] sm:$0xff]
      %v354 = vld [vmem:[%s287 + $0x110] sm:$0xff]
      %v355 = vld [vmem:[%s287 + $0x118] sm:$0x3]
      %v356 = vld [vmem:[%s287 + $0x120] sm:$0xff]
      %v357 = vld [vmem:[%s287 + $0x128] sm:$0xff]
      %v358 = vld [vmem:[%s287 + $0x130] sm:$0x3]
      %v359 = vld [vmem:[%s287 + $0x138] sm:$0xff]
      %v360 = vld [vmem:[%s287 + $0x140] sm:$0xff]
      %v361 = vld [vmem:[%s287 + $0x148] sm:$0x3]
      %v362 = vld [vmem:[%s287 + $0x150] sm:$0xff]
      %v363 = vld [vmem:[%s287 + $0x158] sm:$0xff]
      %v364 = vld [vmem:[%s287 + $0x160] sm:$0x3]
      %v365 = vld [vmem:[%s287 + $0x168] sm:$0xff]
      %v366 = vld [vmem:[%s287 + $0x170] sm:$0xff]
      %v367 = vld [vmem:[%s287 + $0x178] sm:$0x3]
      %vm368 = vcmask 64512
      %369 = vst.msk [vmem:[#allocation2] sm:$0xff] %vm368, %v320
      %370 = vst.msk [vmem:[#allocation2 + $0x8] sm:$0xff] %vm368, %v321
      %vm371 = vcmask 58368
      %372 = vst.msk [vmem:[#allocation2 + $0x10] sm:$0x3] %vm371, %v322
      %373 = vst.msk [vmem:[#allocation2 + $0x18] sm:$0xff] %vm368, %v323
      %374 = vst.msk [vmem:[#allocation2 + $0x20] sm:$0xff] %vm368, %v324
      %375 = vst.msk [vmem:[#allocation2 + $0x28] sm:$0x3] %vm371, %v325
      %376 = vst.msk [vmem:[#allocation2 + $0x30] sm:$0xff] %vm368, %v326
      %377 = vst.msk [vmem:[#allocation2 + $0x38] sm:$0xff] %vm368, %v327
      %378 = vst.msk [vmem:[#allocation2 + $0x40] sm:$0x3] %vm371, %v328
      %379 = vst.msk [vmem:[#allocation2 + $0x48] sm:$0xff] %vm368, %v329
      %380 = vst.msk [vmem:[#allocation2 + $0x50] sm:$0xff] %vm368, %v330
      %381 = vst.msk [vmem:[#allocation2 + $0x58] sm:$0x3] %vm371, %v331
      %382 = vst.msk [vmem:[#allocation2 + $0x60] sm:$0xff] %vm368, %v332
      %383 = vst.msk [vmem:[#allocation2 + $0x68] sm:$0xff] %vm368, %v333
      %384 = vst.msk [vmem:[#allocation2 + $0x70] sm:$0x3] %vm371, %v334
      %385 = vst.msk [vmem:[#allocation2 + $0x78] sm:$0xff] %vm368, %v335
      %386 = vst.msk [vmem:[#allocation2 + $0x80] sm:$0xff] %vm368, %v336
      %387 = vst.msk [vmem:[#allocation2 + $0x88] sm:$0x3] %vm371, %v337
      %388 = vst.msk [vmem:[#allocation2 + $0x90] sm:$0xff] %vm368, %v338
      %389 = vst.msk [vmem:[#allocation2 + $0x98] sm:$0xff] %vm368, %v339
      %390 = vst.msk [vmem:[#allocation2 + $0xa0] sm:$0x3] %vm371, %v340
      %391 = vst.msk [vmem:[#allocation2 + $0xa8] sm:$0xff] %vm368, %v341
      %392 = vst.msk [vmem:[#allocation2 + $0xb0] sm:$0xff] %vm368, %v342
      %393 = vst.msk [vmem:[#allocation2 + $0xb8] sm:$0x3] %vm371, %v343
      %394 = vst.msk [vmem:[#allocation2 + $0xc0] sm:$0xff] %vm368, %v344
      %395 = vst.msk [vmem:[#allocation2 + $0xc8] sm:$0xff] %vm368, %v345
      %396 = vst.msk [vmem:[#allocation2 + $0xd0] sm:$0x3] %vm371, %v346
      %397 = vst.msk [vmem:[#allocation2 + $0xd8] sm:$0xff] %vm368, %v347
      %398 = vst.msk [vmem:[#allocation2 + $0xe0] sm:$0xff] %vm368, %v348
      %399 = vst.msk [vmem:[#allocation2 + $0xe8] sm:$0x3] %vm371, %v349
      %400 = vst.msk [vmem:[#allocation2 + $0xf0] sm:$0xff] %vm368, %v350
      %401 = vst.msk [vmem:[#allocation2 + $0xf8] sm:$0xff] %vm368, %v351
      %402 = vst.msk [vmem:[#allocation2 + $0x100] sm:$0x3] %vm371, %v352
      %403 = vst.msk [vmem:[#allocation2 + $0x108] sm:$0xff] %vm368, %v353
      %404 = vst.msk [vmem:[#allocation2 + $0x110] sm:$0xff] %vm368, %v354
      %405 = vst.msk [vmem:[#allocation2 + $0x118] sm:$0x3] %vm371, %v355
      %406 = vst.msk [vmem:[#allocation2 + $0x120] sm:$0xff] %vm368, %v356
      %407 = vst.msk [vmem:[#allocation2 + $0x128] sm:$0xff] %vm368, %v357
      %408 = vst.msk [vmem:[#allocation2 + $0x130] sm:$0x3] %vm371, %v358
      %409 = vst.msk [vmem:[#allocation2 + $0x138] sm:$0xff] %vm368, %v359
      %410 = vst.msk [vmem:[#allocation2 + $0x140] sm:$0xff] %vm368, %v360
      %411 = vst.msk [vmem:[#allocation2 + $0x148] sm:$0x3] %vm371, %v361
      %412 = vst.msk [vmem:[#allocation2 + $0x150] sm:$0xff] %vm368, %v362
      %413 = vst.msk [vmem:[#allocation2 + $0x158] sm:$0xff] %vm368, %v363
      %414 = vst.msk [vmem:[#allocation2 + $0x160] sm:$0x3] %vm371, %v364
      %415 = vst.msk [vmem:[#allocation2 + $0x168] sm:$0xff] %vm368, %v365
      %416 = vst.msk [vmem:[#allocation2 + $0x170] sm:$0xff] %vm368, %v366
      %417 = vst.msk [vmem:[#allocation2 + $0x178] sm:$0x3] %vm371, %v367
      %v418 = vld [vmem:[%s305] sm:$0xff]
      %v419 = vld [vmem:[%s305 + $0x8] sm:$0xff]
      %v420 = vld [vmem:[%s305 + $0x10] sm:$0x3]
      %v421 = vld [vmem:[%s305 + $0x18] sm:$0xff]
      %v422 = vld [vmem:[%s305 + $0x20] sm:$0xff]
      %v423 = vld [vmem:[%s305 + $0x28] sm:$0x3]
      %s424 = scalar_lea.vmem [#allocation2], 384
      %425 = vst.msk [vmem:[%s424] sm:$0xff] %vm368, %v418
      %426 = vst.msk [vmem:[%s424 + $0x8] sm:$0xff] %vm368, %v419
      %427 = vst.msk [vmem:[%s424 + $0x10] sm:$0x3] %vm371, %v420
      %428 = vst.msk [vmem:[%s424 + $0x18] sm:$0xff] %vm368, %v421
      %429 = vst.msk [vmem:[%s424 + $0x20] sm:$0xff] %vm368, %v422
      %430 = vst.msk [vmem:[%s424 + $0x28] sm:$0x3] %vm371, %v423
      %v431 = vld [vmem:[#allocation2] sm:$0xff]
      %v432 = vld [vmem:[#allocation2 + $0x8] sm:$0xff]
      %v433 = vld [vmem:[#allocation2 + $0x18] sm:$0xff]
      %v434 = vld [vmem:[#allocation2 + $0x20] sm:$0xff]
      %v435 = vld [vmem:[#allocation2 + $0x30] sm:$0xff]
      %v436 = vld [vmem:[#allocation2 + $0x38] sm:$0xff]
      %v437 = vld [vmem:[#allocation2 + $0x48] sm:$0xff]
      %v438 = vld [vmem:[#allocation2 + $0x50] sm:$0xff]
      %v439 = vld [vmem:[#allocation2 + $0x60] sm:$0xff]
      %v440 = vld [vmem:[#allocation2 + $0x68] sm:$0xff]
      %v441 = vld [vmem:[#allocation2 + $0x78] sm:$0xff]
      %v442 = vld [vmem:[#allocation2 + $0x80] sm:$0xff]
      %v443 = vld [vmem:[#allocation2 + $0x90] sm:$0xff]
      %v444 = vld [vmem:[#allocation2 + $0x98] sm:$0xff]
      %v445 = vld [vmem:[#allocation2 + $0xa8] sm:$0xff]
      %v446 = vld [vmem:[#allocation2 + $0xb0] sm:$0xff]
      %v447 = vld [vmem:[#allocation2 + $0xc0] sm:$0xff]
      %v448 = vld [vmem:[#allocation2 + $0xc8] sm:$0xff]
      %v449 = vld [vmem:[#allocation2 + $0xd8] sm:$0xff]
      %v450 = vld [vmem:[#allocation2 + $0xe0] sm:$0xff]
      %v451 = vld [vmem:[#allocation2 + $0xf0] sm:$0xff]
      %v452 = vld [vmem:[#allocation2 + $0xf8] sm:$0xff]
      %v453 = vld [vmem:[#allocation2 + $0x108] sm:$0xff]
      %v454 = vld [vmem:[#allocation2 + $0x110] sm:$0xff]
      %v455 = vld [vmem:[#allocation2 + $0x120] sm:$0xff]
      %v456 = vld [vmem:[#allocation2 + $0x128] sm:$0xff]
      %v457 = vld [vmem:[#allocation2 + $0x138] sm:$0xff]
      %v458 = vld [vmem:[#allocation2 + $0x140] sm:$0xff]
      %v459 = vld [vmem:[#allocation2 + $0x150] sm:$0xff]
      %v460 = vld [vmem:[#allocation2 + $0x158] sm:$0xff]
      %v461 = vld [vmem:[#allocation2 + $0x168] sm:$0xff]
      %v462 = vld [vmem:[#allocation2 + $0x170] sm:$0xff]
      %v463 = vld [vmem:[%s2] sm:$0xff]
      %v464 = vld [vmem:[#allocation2 + $0x1] sm:$0xff]
      %v465 = vld [vmem:[#allocation2 + $0x9] sm:$0xff]
      %v466 = vld [vmem:[#allocation2 + $0x19] sm:$0xff]
      %v467 = vld [vmem:[#allocation2 + $0x21] sm:$0xff]
      %v468 = vld [vmem:[#allocation2 + $0x31] sm:$0xff]
      %v469 = vld [vmem:[#allocation2 + $0x39] sm:$0xff]
      %v470 = vld [vmem:[#allocation2 + $0x49] sm:$0xff]
      %v471 = vld [vmem:[#allocation2 + $0x51] sm:$0xff]
      %v472 = vld [vmem:[#allocation2 + $0x61] sm:$0xff]
      %v473 = vld [vmem:[#allocation2 + $0x69] sm:$0xff]
      %v474 = vld [vmem:[#allocation2 + $0x79] sm:$0xff]
      %v475 = vld [vmem:[#allocation2 + $0x81] sm:$0xff]
      %v476 = vld [vmem:[#allocation2 + $0x91] sm:$0xff]
      %v477 = vld [vmem:[#allocation2 + $0x99] sm:$0xff]
      %v478 = vld [vmem:[#allocation2 + $0xa9] sm:$0xff]
      %v479 = vld [vmem:[#allocation2 + $0xb1] sm:$0xff]
      %v480 = vld [vmem:[#allocation2 + $0xc1] sm:$0xff]
      %v481 = vld [vmem:[#allocation2 + $0xc9] sm:$0xff]
      %v482 = vld [vmem:[#allocation2 + $0xd9] sm:$0xff]
      %v483 = vld [vmem:[#allocation2 + $0xe1] sm:$0xff]
      %v484 = vld [vmem:[#allocation2 + $0xf1] sm:$0xff]
      %v485 = vld [vmem:[#allocation2 + $0xf9] sm:$0xff]
      %v486 = vld [vmem:[#allocation2 + $0x109] sm:$0xff]
      %v487 = vld [vmem:[#allocation2 + $0x111] sm:$0xff]
      %v488 = vld [vmem:[#allocation2 + $0x121] sm:$0xff]
      %v489 = vld [vmem:[#allocation2 + $0x129] sm:$0xff]
      %v490 = vld [vmem:[#allocation2 + $0x139] sm:$0xff]
      %v491 = vld [vmem:[#allocation2 + $0x141] sm:$0xff]
      %v492 = vld [vmem:[#allocation2 + $0x151] sm:$0xff]
      %v493 = vld [vmem:[#allocation2 + $0x159] sm:$0xff]
      %v494 = vld [vmem:[#allocation2 + $0x169] sm:$0xff]
      %v495 = vld [vmem:[#allocation2 + $0x171] sm:$0xff]
      %s496 = scalar_lea.vmem %s2, 8
      %v497 = vld [vmem:[%s496] sm:$0xff]
      %v499 = vsel %vm368, %v464, 0
      %v502 = vsel %vm368, %v465, 0
      %v505 = vsel %vm368, %v466, 0
      %v508 = vsel %vm368, %v467, 0
      %v511 = vsel %vm368, %v468, 0
      %v514 = vsel %vm368, %v469, 0
      %v517 = vsel %vm368, %v470, 0
      %v520 = vsel %vm368, %v471, 0
      %v523 = vsel %vm368, %v472, 0
      %v526 = vsel %vm368, %v473, 0
      %v529 = vsel %vm368, %v474, 0
      %v532 = vsel %vm368, %v475, 0
      %v535 = vsel %vm368, %v476, 0
      %v538 = vsel %vm368, %v477, 0
      %v541 = vsel %vm368, %v478, 0
      %v544 = vsel %vm368, %v479, 0
      %v547 = vsel %vm368, %v480, 0
      %v550 = vsel %vm368, %v481, 0
      %v553 = vsel %vm368, %v482, 0
      %v556 = vsel %vm368, %v483, 0
      %v559 = vsel %vm368, %v484, 0
      %v562 = vsel %vm368, %v485, 0
      %v565 = vsel %vm368, %v486, 0
      %v568 = vsel %vm368, %v487, 0
      %v571 = vsel %vm368, %v488, 0
      %v574 = vsel %vm368, %v489, 0
      %v577 = vsel %vm368, %v490, 0
      %v580 = vsel %vm368, %v491, 0
      %v583 = vsel %vm368, %v492, 0
      %v586 = vsel %vm368, %v493, 0
      %v589 = vsel %vm368, %v494, 0
      %v592 = vsel %vm368, %v495, 0
      %594 = vmatprep.subr.mxu0 0.0
      %595 = vmatpush1.msra.mxu0 0.0
      %596 = vmatprep.subr.mxu0 0.0
      %597 = vmatpush1.msra.mxu0 0.0
      %598 = vmatprep.subr.mxu0 0.0
      %599 = vmatpush1.msra.mxu0 0.0
      %600 = vmatprep.subr.mxu0 0.0
      %601 = vmatpush1.msra.mxu0 0.0
      %602 = vmatprep.subr.mxu0 0.0
      %603 = vmatpush1.msra.mxu0 0.0
      %604 = vmatprep.subr.mxu0 0.0
      %605 = vmatpush1.msra.mxu0 0.0
      %606 = vmatprep.subr.mxu0 0.0
      %607 = vmatpush1.msra.mxu0 0.0
      %608 = vmatprep.subr.mxu0 0.0
      %609 = vmatpush1.msra.mxu0 0.0
      %610 = vmatprep.subr.mxu0 0.0
      %611 = vmatpush1.msra.mxu0 0.0
      %612 = vmatprep.subr.mxu0 0.0
      %613 = vmatpush1.msra.mxu0 0.0
      %614 = vmatprep.subr.mxu0 0.0
      %615 = vmatpush1.msra.mxu0 0.0
      %616 = vmatprep.subr.mxu0 0.0
      %617 = vmatpush1.msra.mxu0 0.0
      %618 = vmatprep.subr.mxu0 0.0
      %619 = vmatpush1.msra.mxu0 0.0
      %620 = vmatprep.subr.mxu0 0.0
      %621 = vmatpush1.msra.mxu0 0.0
      %622 = vmatprep.subr.mxu0 0.0
      %623 = vmatpush1.msra.mxu0 0.0
      %624 = vmatprep.subr.mxu0 0.0
      %625 = vmatpush1.msra.mxu0 %v497
      %626 = vmatprep.subr.mxu0 0.0
      %627 = vmatpush2.msra.mxu0 0.0
      %628 = vmatprep.subr.mxu0 0.0
      %629 = vmatpush2.msra.mxu0 0.0
      %630 = vmatprep.subr.mxu0 0.0
      %631 = vmatpush2.msra.mxu0 0.0
      %632 = vmatprep.subr.mxu0 0.0
      %633 = vmatpush2.msra.mxu0 0.0
      %634 = vmatprep.subr.mxu0 0.0
      %635 = vmatpush2.msra.mxu0 0.0
      %636 = vmatprep.subr.mxu0 0.0
      %637 = vmatpush2.msra.mxu0 0.0
      %638 = vmatprep.subr.mxu0 0.0
      %639 = vmatpush2.msra.mxu0 0.0
      %640 = vmatprep.subr.mxu0 0.0
      %641 = vmatpush2.msra.mxu0 0.0
      %642 = vmatprep.subr.mxu0 0.0
      %643 = vmatpush2.msra.mxu0 0.0
      %644 = vmatprep.subr.mxu0 0.0
      %645 = vmatpush2.msra.mxu0 0.0
      %646 = vmatprep.subr.mxu0 0.0
      %647 = vmatpush2.msra.mxu0 0.0
      %648 = vmatprep.subr.mxu0 0.0
      %649 = vmatpush2.msra.mxu0 0.0
      %650 = vmatprep.subr.mxu0 0.0
      %651 = vmatpush2.msra.mxu0 0.0
      %652 = vmatprep.subr.mxu0 0.0
      %653 = vmatpush2.msra.mxu0 0.0
      %654 = vmatprep.subr.mxu0 0.0
      %655 = vmatpush2.msra.mxu0 0.0
      %656 = vmatprep.subr.mxu0 0.0
      %657 = vmatpush2.msra.mxu0 0.0
      %658 = vmatprep.mubr.f32.mxu0 0.0
      %659 = vmatmul.mubr.f32.gmra.mxu0 %v499
      %v660 = vpop.f32.mrf.mxu0
      %v661 = vadd.f32 0.0, %v660
      %v662 = vpop.f32.mrf.mxu0
      %663 = vmatprep.mubr.f32.mxu0 0.0
      %664 = vmatmul.mubr.f32.gmra.mxu0 %v502
      %v665 = vpop.f32.mrf.mxu0
      %v666 = vadd.f32 0.0, %v665
      %v667 = vpop.f32.mrf.mxu0
      %668 = vmatprep.mubr.f32.mxu0 0.0
      %669 = vmatmul.mubr.f32.gmra.mxu0 %v505
      %v670 = vpop.f32.mrf.mxu0
      %v671 = vadd.f32 0.0, %v670
      %v672 = vpop.f32.mrf.mxu0
      %673 = vmatprep.mubr.f32.mxu0 0.0
      %674 = vmatmul.mubr.f32.gmra.mxu0 %v508
      %v675 = vpop.f32.mrf.mxu0
      %v676 = vadd.f32 0.0, %v675
      %v677 = vpop.f32.mrf.mxu0
      %678 = vmatprep.mubr.f32.mxu0 0.0
      %679 = vmatmul.mubr.f32.gmra.mxu0 %v511
      %v680 = vpop.f32.mrf.mxu0
      %v681 = vadd.f32 0.0, %v680
      %v682 = vpop.f32.mrf.mxu0
      %683 = vmatprep.mubr.f32.mxu0 0.0
      %684 = vmatmul.mubr.f32.gmra.mxu0 %v514
      %v685 = vpop.f32.mrf.mxu0
      %v686 = vadd.f32 0.0, %v685
      %v687 = vpop.f32.mrf.mxu0
      %688 = vmatprep.mubr.f32.mxu0 0.0
      %689 = vmatmul.mubr.f32.gmra.mxu0 %v517
      %v690 = vpop.f32.mrf.mxu0
      %v691 = vadd.f32 0.0, %v690
      %v692 = vpop.f32.mrf.mxu0
      %693 = vmatprep.mubr.f32.mxu0 0.0
      %694 = vmatmul.mubr.f32.gmra.mxu0 %v520
      %v695 = vpop.f32.mrf.mxu0
      %v696 = vadd.f32 0.0, %v695
      %v697 = vpop.f32.mrf.mxu0
      %698 = vmatprep.mubr.f32.mxu0 0.0
      %699 = vmatmul.mubr.f32.gmra.mxu0 %v523
      %v700 = vpop.f32.mrf.mxu0
      %v701 = vadd.f32 0.0, %v700
      %v702 = vpop.f32.mrf.mxu0
      %703 = vmatprep.mubr.f32.mxu0 0.0
      %704 = vmatmul.mubr.f32.gmra.mxu0 %v526
      %v705 = vpop.f32.mrf.mxu0
      %v706 = vadd.f32 0.0, %v705
      %v707 = vpop.f32.mrf.mxu0
      %708 = vmatprep.mubr.f32.mxu0 0.0
      %709 = vmatmul.mubr.f32.gmra.mxu0 %v529
      %v710 = vpop.f32.mrf.mxu0
      %v711 = vadd.f32 0.0, %v710
      %v712 = vpop.f32.mrf.mxu0
      %713 = vmatprep.mubr.f32.mxu0 0.0
      %714 = vmatmul.mubr.f32.gmra.mxu0 %v532
      %v715 = vpop.f32.mrf.mxu0
      %v716 = vadd.f32 0.0, %v715
      %v717 = vpop.f32.mrf.mxu0
      %718 = vmatprep.mubr.f32.mxu0 0.0
      %719 = vmatmul.mubr.f32.gmra.mxu0 %v535
      %v720 = vpop.f32.mrf.mxu0
      %v721 = vadd.f32 0.0, %v720
      %v722 = vpop.f32.mrf.mxu0
      %723 = vmatprep.mubr.f32.mxu0 0.0
      %724 = vmatmul.mubr.f32.gmra.mxu0 %v538
      %v725 = vpop.f32.mrf.mxu0
      %v726 = vadd.f32 0.0, %v725
      %v727 = vpop.f32.mrf.mxu0
      %728 = vmatprep.mubr.f32.mxu0 0.0
      %729 = vmatmul.mubr.f32.gmra.mxu0 %v541
      %v730 = vpop.f32.mrf.mxu0
      %v731 = vadd.f32 0.0, %v730
      %v732 = vpop.f32.mrf.mxu0
      %733 = vmatprep.mubr.f32.mxu0 0.0
      %734 = vmatmul.mubr.f32.gmra.mxu0 %v544
      %v735 = vpop.f32.mrf.mxu0
      %v736 = vadd.f32 0.0, %v735
      %v737 = vpop.f32.mrf.mxu0
      %738 = vmatprep.mubr.f32.mxu0 0.0
      %739 = vmatmul.mubr.f32.gmra.mxu0 %v547
      %v740 = vpop.f32.mrf.mxu0
      %v741 = vadd.f32 0.0, %v740
      %v742 = vpop.f32.mrf.mxu0
      %743 = vmatprep.mubr.f32.mxu0 0.0
      %744 = vmatmul.mubr.f32.gmra.mxu0 %v550
      %v745 = vpop.f32.mrf.mxu0
      %v746 = vadd.f32 0.0, %v745
      %v747 = vpop.f32.mrf.mxu0
      %748 = vmatprep.mubr.f32.mxu0 0.0
      %749 = vmatmul.mubr.f32.gmra.mxu0 %v553
      %v750 = vpop.f32.mrf.mxu0
      %v751 = vadd.f32 0.0, %v750
      %v752 = vpop.f32.mrf.mxu0
      %753 = vmatprep.mubr.f32.mxu0 0.0
      %754 = vmatmul.mubr.f32.gmra.mxu0 %v556
      %v755 = vpop.f32.mrf.mxu0
      %v756 = vadd.f32 0.0, %v755
      %v757 = vpop.f32.mrf.mxu0
      %758 = vmatprep.mubr.f32.mxu0 0.0
      %759 = vmatmul.mubr.f32.gmra.mxu0 %v559
      %v760 = vpop.f32.mrf.mxu0
      %v761 = vadd.f32 0.0, %v760
      %v762 = vpop.f32.mrf.mxu0
      %763 = vmatprep.mubr.f32.mxu0 0.0
      %764 = vmatmul.mubr.f32.gmra.mxu0 %v562
      %v765 = vpop.f32.mrf.mxu0
      %v766 = vadd.f32 0.0, %v765
      %v767 = vpop.f32.mrf.mxu0
      %768 = vmatprep.mubr.f32.mxu0 0.0
      %769 = vmatmul.mubr.f32.gmra.mxu0 %v565
      %v770 = vpop.f32.mrf.mxu0
      %v771 = vadd.f32 0.0, %v770
      %v772 = vpop.f32.mrf.mxu0
      %773 = vmatprep.mubr.f32.mxu0 0.0
      %774 = vmatmul.mubr.f32.gmra.mxu0 %v568
      %v775 = vpop.f32.mrf.mxu0
      %v776 = vadd.f32 0.0, %v775
      %v777 = vpop.f32.mrf.mxu0
      %778 = vmatprep.mubr.f32.mxu0 0.0
      %779 = vmatmul.mubr.f32.gmra.mxu0 %v571
      %v780 = vpop.f32.mrf.mxu0
      %v781 = vadd.f32 0.0, %v780
      %v782 = vpop.f32.mrf.mxu0
      %783 = vmatprep.mubr.f32.mxu0 0.0
      %784 = vmatmul.mubr.f32.gmra.mxu0 %v574
      %v785 = vpop.f32.mrf.mxu0
      %v786 = vadd.f32 0.0, %v785
      %v787 = vpop.f32.mrf.mxu0
      %788 = vmatprep.mubr.f32.mxu0 0.0
      %789 = vmatmul.mubr.f32.gmra.mxu0 %v577
      %v790 = vpop.f32.mrf.mxu0
      %v791 = vadd.f32 0.0, %v790
      %v792 = vpop.f32.mrf.mxu0
      %793 = vmatprep.mubr.f32.mxu0 0.0
      %794 = vmatmul.mubr.f32.gmra.mxu0 %v580
      %v795 = vpop.f32.mrf.mxu0
      %v796 = vadd.f32 0.0, %v795
      %v797 = vpop.f32.mrf.mxu0
      %798 = vmatprep.mubr.f32.mxu0 0.0
      %799 = vmatmul.mubr.f32.gmra.mxu0 %v583
      %v800 = vpop.f32.mrf.mxu0
      %v801 = vadd.f32 0.0, %v800
      %v802 = vpop.f32.mrf.mxu0
      %803 = vmatprep.mubr.f32.mxu0 0.0
      %804 = vmatmul.mubr.f32.gmra.mxu0 %v586
      %v805 = vpop.f32.mrf.mxu0
      %v806 = vadd.f32 0.0, %v805
      %v807 = vpop.f32.mrf.mxu0
      %808 = vmatprep.mubr.f32.mxu0 0.0
      %809 = vmatmul.mubr.f32.gmra.mxu0 %v589
      %v810 = vpop.f32.mrf.mxu0
      %v811 = vadd.f32 0.0, %v810
      %v812 = vpop.f32.mrf.mxu0
      %813 = vmatprep.mubr.f32.mxu0 0.0
      %814 = vmatmul.mubr.f32.gmra.mxu0 %v592
      %v815 = vpop.f32.mrf.mxu0
      %v816 = vadd.f32 0.0, %v815
      %v817 = vpop.f32.mrf.mxu0
      %818 = vdwg.mxu0
      %v820 = vsel %vm368, %v431, 0
      %v823 = vsel %vm368, %v432, 0
      %v826 = vsel %vm368, %v433, 0
      %v829 = vsel %vm368, %v434, 0
      %v832 = vsel %vm368, %v435, 0
      %v835 = vsel %vm368, %v436, 0
      %v838 = vsel %vm368, %v437, 0
      %v841 = vsel %vm368, %v438, 0
      %v844 = vsel %vm368, %v439, 0
      %v847 = vsel %vm368, %v440, 0
      %v850 = vsel %vm368, %v441, 0
      %v853 = vsel %vm368, %v442, 0
      %v856 = vsel %vm368, %v443, 0
      %v859 = vsel %vm368, %v444, 0
      %v862 = vsel %vm368, %v445, 0
      %v865 = vsel %vm368, %v446, 0
      %v868 = vsel %vm368, %v447, 0
      %v871 = vsel %vm368, %v448, 0
      %v874 = vsel %vm368, %v449, 0
      %v877 = vsel %vm368, %v450, 0
      %v880 = vsel %vm368, %v451, 0
      %v883 = vsel %vm368, %v452, 0
      %v886 = vsel %vm368, %v453, 0
      %v889 = vsel %vm368, %v454, 0
      %v892 = vsel %vm368, %v455, 0
      %v895 = vsel %vm368, %v456, 0
      %v898 = vsel %vm368, %v457, 0
      %v901 = vsel %vm368, %v458, 0
      %v904 = vsel %vm368, %v459, 0
      %v907 = vsel %vm368, %v460, 0
      %v910 = vsel %vm368, %v461, 0
      %v913 = vsel %vm368, %v462, 0
      %915 = vmatprep.subr.mxu0 0.0
      %916 = vmatpush1.msra.mxu0 0.0
      %917 = vmatprep.subr.mxu0 0.0
      %918 = vmatpush1.msra.mxu0 0.0
      %919 = vmatprep.subr.mxu0 0.0
      %920 = vmatpush1.msra.mxu0 0.0
      %921 = vmatprep.subr.mxu0 0.0
      %922 = vmatpush1.msra.mxu0 0.0
      %923 = vmatprep.subr.mxu0 0.0
      %924 = vmatpush1.msra.mxu0 0.0
      %925 = vmatprep.subr.mxu0 0.0
      %926 = vmatpush1.msra.mxu0 0.0
      %927 = vmatprep.subr.mxu0 0.0
      %928 = vmatpush1.msra.mxu0 0.0
      %929 = vmatprep.subr.mxu0 0.0
      %930 = vmatpush1.msra.mxu0 0.0
      %931 = vmatprep.subr.mxu0 0.0
      %932 = vmatpush1.msra.mxu0 0.0
      %933 = vmatprep.subr.mxu0 0.0
      %934 = vmatpush1.msra.mxu0 0.0
      %935 = vmatprep.subr.mxu0 0.0
      %936 = vmatpush1.msra.mxu0 0.0
      %937 = vmatprep.subr.mxu0 0.0
      %938 = vmatpush1.msra.mxu0 0.0
      %939 = vmatprep.subr.mxu0 0.0
      %940 = vmatpush1.msra.mxu0 0.0
      %941 = vmatprep.subr.mxu0 0.0
      %942 = vmatpush1.msra.mxu0 0.0
      %943 = vmatprep.subr.mxu0 0.0
      %944 = vmatpush1.msra.mxu0 0.0
      %945 = vmatprep.subr.mxu0 0.0
      %946 = vmatpush1.msra.mxu0 %v463
      %947 = vmatprep.subr.mxu0 0.0
      %948 = vmatpush2.msra.mxu0 0.0
      %949 = vmatprep.subr.mxu0 0.0
      %950 = vmatpush2.msra.mxu0 0.0
      %951 = vmatprep.subr.mxu0 0.0
      %952 = vmatpush2.msra.mxu0 0.0
      %953 = vmatprep.subr.mxu0 0.0
      %954 = vmatpush2.msra.mxu0 0.0
      %955 = vmatprep.subr.mxu0 0.0
      %956 = vmatpush2.msra.mxu0 0.0
      %957 = vmatprep.subr.mxu0 0.0
      %958 = vmatpush2.msra.mxu0 0.0
      %959 = vmatprep.subr.mxu0 0.0
      %960 = vmatpush2.msra.mxu0 0.0
      %961 = vmatprep.subr.mxu0 0.0
      %962 = vmatpush2.msra.mxu0 0.0
      %963 = vmatprep.subr.mxu0 0.0
      %964 = vmatpush2.msra.mxu0 0.0
      %965 = vmatprep.subr.mxu0 0.0
      %966 = vmatpush2.msra.mxu0 0.0
      %967 = vmatprep.subr.mxu0 0.0
      %968 = vmatpush2.msra.mxu0 0.0
      %969 = vmatprep.subr.mxu0 0.0
      %970 = vmatpush2.msra.mxu0 0.0
      %971 = vmatprep.subr.mxu0 0.0
      %972 = vmatpush2.msra.mxu0 0.0
      %973 = vmatprep.subr.mxu0 0.0
      %974 = vmatpush2.msra.mxu0 0.0
      %975 = vmatprep.subr.mxu0 0.0
      %976 = vmatpush2.msra.mxu0 0.0
      %977 = vmatprep.subr.mxu0 0.0
      %978 = vmatpush2.msra.mxu0 0.0
      %979 = vmatprep.mubr.f32.mxu0 0.0
      %980 = vmatmul.mubr.f32.gmra.mxu0 %v820
      %v981 = vpop.f32.mrf.mxu0
      %v982 = vadd.f32 %v661, %v981
      %v983 = vpop.f32.mrf.mxu0
      %984 = vmatprep.mubr.f32.mxu0 0.0
      %985 = vmatmul.mubr.f32.gmra.mxu0 %v823
      %v986 = vpop.f32.mrf.mxu0
      %v987 = vadd.f32 %v666, %v986
      %v988 = vpop.f32.mrf.mxu0
      %989 = vmatprep.mubr.f32.mxu0 0.0
      %990 = vmatmul.mubr.f32.gmra.mxu0 %v826
      %v991 = vpop.f32.mrf.mxu0
      %v992 = vadd.f32 %v671, %v991
      %v993 = vpop.f32.mrf.mxu0
      %994 = vmatprep.mubr.f32.mxu0 0.0
      %995 = vmatmul.mubr.f32.gmra.mxu0 %v829
      %v996 = vpop.f32.mrf.mxu0
      %v997 = vadd.f32 %v676, %v996
      %v998 = vpop.f32.mrf.mxu0
      %999 = vmatprep.mubr.f32.mxu0 0.0
      %1000 = vmatmul.mubr.f32.gmra.mxu0 %v832
      %v1001 = vpop.f32.mrf.mxu0
      %v1002 = vadd.f32 %v681, %v1001
      %v1003 = vpop.f32.mrf.mxu0
      %1004 = vmatprep.mubr.f32.mxu0 0.0
      %1005 = vmatmul.mubr.f32.gmra.mxu0 %v835
      %v1006 = vpop.f32.mrf.mxu0
      %v1007 = vadd.f32 %v686, %v1006
      %v1008 = vpop.f32.mrf.mxu0
      %1009 = vmatprep.mubr.f32.mxu0 0.0
      %1010 = vmatmul.mubr.f32.gmra.mxu0 %v838
      %v1011 = vpop.f32.mrf.mxu0
      %v1012 = vadd.f32 %v691, %v1011
      %v1013 = vpop.f32.mrf.mxu0
      %1014 = vmatprep.mubr.f32.mxu0 0.0
      %1015 = vmatmul.mubr.f32.gmra.mxu0 %v841
      %v1016 = vpop.f32.mrf.mxu0
      %v1017 = vadd.f32 %v696, %v1016
      %v1018 = vpop.f32.mrf.mxu0
      %1019 = vmatprep.mubr.f32.mxu0 0.0
      %1020 = vmatmul.mubr.f32.gmra.mxu0 %v844
      %v1021 = vpop.f32.mrf.mxu0
      %v1022 = vadd.f32 %v701, %v1021
      %v1023 = vpop.f32.mrf.mxu0
      %1024 = vmatprep.mubr.f32.mxu0 0.0
      %1025 = vmatmul.mubr.f32.gmra.mxu0 %v847
      %v1026 = vpop.f32.mrf.mxu0
      %v1027 = vadd.f32 %v706, %v1026
      %v1028 = vpop.f32.mrf.mxu0
      %1029 = vmatprep.mubr.f32.mxu0 0.0
      %1030 = vmatmul.mubr.f32.gmra.mxu0 %v850
      %v1031 = vpop.f32.mrf.mxu0
      %v1032 = vadd.f32 %v711, %v1031
      %v1033 = vpop.f32.mrf.mxu0
      %1034 = vmatprep.mubr.f32.mxu0 0.0
      %1035 = vmatmul.mubr.f32.gmra.mxu0 %v853
      %v1036 = vpop.f32.mrf.mxu0
      %v1037 = vadd.f32 %v716, %v1036
      %v1038 = vpop.f32.mrf.mxu0
      %1039 = vmatprep.mubr.f32.mxu0 0.0
      %1040 = vmatmul.mubr.f32.gmra.mxu0 %v856
      %v1041 = vpop.f32.mrf.mxu0
      %v1042 = vadd.f32 %v721, %v1041
      %v1043 = vpop.f32.mrf.mxu0
      %1044 = vmatprep.mubr.f32.mxu0 0.0
      %1045 = vmatmul.mubr.f32.gmra.mxu0 %v859
      %v1046 = vpop.f32.mrf.mxu0
      %v1047 = vadd.f32 %v726, %v1046
      %v1048 = vpop.f32.mrf.mxu0
      %1049 = vmatprep.mubr.f32.mxu0 0.0
      %1050 = vmatmul.mubr.f32.gmra.mxu0 %v862
      %v1051 = vpop.f32.mrf.mxu0
      %v1052 = vadd.f32 %v731, %v1051
      %v1053 = vpop.f32.mrf.mxu0
      %1054 = vmatprep.mubr.f32.mxu0 0.0
      %1055 = vmatmul.mubr.f32.gmra.mxu0 %v865
      %v1056 = vpop.f32.mrf.mxu0
      %v1057 = vadd.f32 %v736, %v1056
      %v1058 = vpop.f32.mrf.mxu0
      %1059 = vmatprep.mubr.f32.mxu0 0.0
      %1060 = vmatmul.mubr.f32.gmra.mxu0 %v868
      %v1061 = vpop.f32.mrf.mxu0
      %v1062 = vadd.f32 %v741, %v1061
      %v1063 = vpop.f32.mrf.mxu0
      %1064 = vmatprep.mubr.f32.mxu0 0.0
      %1065 = vmatmul.mubr.f32.gmra.mxu0 %v871
      %v1066 = vpop.f32.mrf.mxu0
      %v1067 = vadd.f32 %v746, %v1066
      %v1068 = vpop.f32.mrf.mxu0
      %1069 = vmatprep.mubr.f32.mxu0 0.0
      %1070 = vmatmul.mubr.f32.gmra.mxu0 %v874
      %v1071 = vpop.f32.mrf.mxu0
      %v1072 = vadd.f32 %v751, %v1071
      %v1073 = vpop.f32.mrf.mxu0
      %1074 = vmatprep.mubr.f32.mxu0 0.0
      %1075 = vmatmul.mubr.f32.gmra.mxu0 %v877
      %v1076 = vpop.f32.mrf.mxu0
      %v1077 = vadd.f32 %v756, %v1076
      %v1078 = vpop.f32.mrf.mxu0
      %1079 = vmatprep.mubr.f32.mxu0 0.0
      %1080 = vmatmul.mubr.f32.gmra.mxu0 %v880
      %v1081 = vpop.f32.mrf.mxu0
      %v1082 = vadd.f32 %v761, %v1081
      %v1083 = vpop.f32.mrf.mxu0
      %1084 = vmatprep.mubr.f32.mxu0 0.0
      %1085 = vmatmul.mubr.f32.gmra.mxu0 %v883
      %v1086 = vpop.f32.mrf.mxu0
      %v1087 = vadd.f32 %v766, %v1086
      %v1088 = vpop.f32.mrf.mxu0
      %1089 = vmatprep.mubr.f32.mxu0 0.0
      %1090 = vmatmul.mubr.f32.gmra.mxu0 %v886
      %v1091 = vpop.f32.mrf.mxu0
      %v1092 = vadd.f32 %v771, %v1091
      %v1093 = vpop.f32.mrf.mxu0
      %1094 = vmatprep.mubr.f32.mxu0 0.0
      %1095 = vmatmul.mubr.f32.gmra.mxu0 %v889
      %v1096 = vpop.f32.mrf.mxu0
      %v1097 = vadd.f32 %v776, %v1096
      %v1098 = vpop.f32.mrf.mxu0
      %1099 = vmatprep.mubr.f32.mxu0 0.0
      %1100 = vmatmul.mubr.f32.gmra.mxu0 %v892
      %v1101 = vpop.f32.mrf.mxu0
      %v1102 = vadd.f32 %v781, %v1101
      %v1103 = vpop.f32.mrf.mxu0
      %1104 = vmatprep.mubr.f32.mxu0 0.0
      %1105 = vmatmul.mubr.f32.gmra.mxu0 %v895
      %v1106 = vpop.f32.mrf.mxu0
      %v1107 = vadd.f32 %v786, %v1106
      %v1108 = vpop.f32.mrf.mxu0
      %1109 = vmatprep.mubr.f32.mxu0 0.0
      %1110 = vmatmul.mubr.f32.gmra.mxu0 %v898
      %v1111 = vpop.f32.mrf.mxu0
      %v1112 = vadd.f32 %v791, %v1111
      %v1113 = vpop.f32.mrf.mxu0
      %1114 = vmatprep.mubr.f32.mxu0 0.0
      %1115 = vmatmul.mubr.f32.gmra.mxu0 %v901
      %v1116 = vpop.f32.mrf.mxu0
      %v1117 = vadd.f32 %v796, %v1116
      %v1118 = vpop.f32.mrf.mxu0
      %1119 = vmatprep.mubr.f32.mxu0 0.0
      %1120 = vmatmul.mubr.f32.gmra.mxu0 %v904
      %v1121 = vpop.f32.mrf.mxu0
      %v1122 = vadd.f32 %v801, %v1121
      %v1123 = vpop.f32.mrf.mxu0
      %1124 = vmatprep.mubr.f32.mxu0 0.0
      %1125 = vmatmul.mubr.f32.gmra.mxu0 %v907
      %v1126 = vpop.f32.mrf.mxu0
      %v1127 = vadd.f32 %v806, %v1126
      %v1128 = vpop.f32.mrf.mxu0
      %1129 = vmatprep.mubr.f32.mxu0 0.0
      %1130 = vmatmul.mubr.f32.gmra.mxu0 %v910
      %v1131 = vpop.f32.mrf.mxu0
      %v1132 = vadd.f32 %v811, %v1131
      %v1133 = vpop.f32.mrf.mxu0
      %1134 = vmatprep.mubr.f32.mxu0 0.0
      %1135 = vmatmul.mubr.f32.gmra.mxu0 %v913
      %v1136 = vpop.f32.mrf.mxu0
      %v1137 = vadd.f32 %v816, %v1136
      %v1138 = vpop.f32.mrf.mxu0
      %1139 = vdwg.mxu0
      %v1140 = vld [vmem:[#allocation2 + $0x2] sm:$0xff]
      %v1141 = vld [vmem:[#allocation2 + $0xa] sm:$0xff]
      %v1142 = vld [vmem:[#allocation2 + $0x1a] sm:$0xff]
      %v1143 = vld [vmem:[#allocation2 + $0x22] sm:$0xff]
      %v1144 = vld [vmem:[#allocation2 + $0x32] sm:$0xff]
      %v1145 = vld [vmem:[#allocation2 + $0x3a] sm:$0xff]
      %v1146 = vld [vmem:[#allocation2 + $0x4a] sm:$0xff]
      %v1147 = vld [vmem:[#allocation2 + $0x52] sm:$0xff]
      %v1148 = vld [vmem:[#allocation2 + $0x62] sm:$0xff]
      %v1149 = vld [vmem:[#allocation2 + $0x6a] sm:$0xff]
      %v1150 = vld [vmem:[#allocation2 + $0x7a] sm:$0xff]
      %v1151 = vld [vmem:[#allocation2 + $0x82] sm:$0xff]
      %v1152 = vld [vmem:[#allocation2 + $0x92] sm:$0xff]
      %v1153 = vld [vmem:[#allocation2 + $0x9a] sm:$0xff]
      %v1154 = vld [vmem:[#allocation2 + $0xaa] sm:$0xff]
      %v1155 = vld [vmem:[#allocation2 + $0xb2] sm:$0xff]
      %v1156 = vld [vmem:[#allocation2 + $0xc2] sm:$0xff]
      %v1157 = vld [vmem:[#allocation2 + $0xca] sm:$0xff]
      %v1158 = vld [vmem:[#allocation2 + $0xda] sm:$0xff]
      %v1159 = vld [vmem:[#allocation2 + $0xe2] sm:$0xff]
      %v1160 = vld [vmem:[#allocation2 + $0xf2] sm:$0xff]
      %v1161 = vld [vmem:[#allocation2 + $0xfa] sm:$0xff]
      %v1162 = vld [vmem:[#allocation2 + $0x10a] sm:$0xff]
      %v1163 = vld [vmem:[#allocation2 + $0x112] sm:$0xff]
      %v1164 = vld [vmem:[#allocation2 + $0x122] sm:$0xff]
      %v1165 = vld [vmem:[#allocation2 + $0x12a] sm:$0xff]
      %v1166 = vld [vmem:[#allocation2 + $0x13a] sm:$0xff]
      %v1167 = vld [vmem:[#allocation2 + $0x142] sm:$0xff]
      %v1168 = vld [vmem:[#allocation2 + $0x152] sm:$0xff]
      %v1169 = vld [vmem:[#allocation2 + $0x15a] sm:$0xff]
      %v1170 = vld [vmem:[#allocation2 + $0x16a] sm:$0xff]
      %v1171 = vld [vmem:[#allocation2 + $0x172] sm:$0xff]
      %s1172 = scalar_lea.vmem %s2, 16
      %v1173 = vld [vmem:[%s1172] sm:$0xff]
      %v1175 = vsel %vm368, %v1140, 0
      %v1178 = vsel %vm368, %v1141, 0
      %v1181 = vsel %vm368, %v1142, 0
      %v1184 = vsel %vm368, %v1143, 0
      %v1187 = vsel %vm368, %v1144, 0
      %v1190 = vsel %vm368, %v1145, 0
      %v1193 = vsel %vm368, %v1146, 0
      %v1196 = vsel %vm368, %v1147, 0
      %v1199 = vsel %vm368, %v1148, 0
      %v1202 = vsel %vm368, %v1149, 0
      %v1205 = vsel %vm368, %v1150, 0
      %v1208 = vsel %vm368, %v1151, 0
      %v1211 = vsel %vm368, %v1152, 0
      %v1214 = vsel %vm368, %v1153, 0
      %v1217 = vsel %vm368, %v1154, 0
      %v1220 = vsel %vm368, %v1155, 0
      %v1223 = vsel %vm368, %v1156, 0
      %v1226 = vsel %vm368, %v1157, 0
      %v1229 = vsel %vm368, %v1158, 0
      %v1232 = vsel %vm368, %v1159, 0
      %v1235 = vsel %vm368, %v1160, 0
      %v1238 = vsel %vm368, %v1161, 0
      %v1241 = vsel %vm368, %v1162, 0
      %v1244 = vsel %vm368, %v1163, 0
      %v1247 = vsel %vm368, %v1164, 0
      %v1250 = vsel %vm368, %v1165, 0
      %v1253 = vsel %vm368, %v1166, 0
      %v1256 = vsel %vm368, %v1167, 0
      %v1259 = vsel %vm368, %v1168, 0
      %v1262 = vsel %vm368, %v1169, 0
      %v1265 = vsel %vm368, %v1170, 0
      %v1268 = vsel %vm368, %v1171, 0
      %1270 = vmatprep.subr.mxu0 0.0
      %1271 = vmatpush1.msra.mxu0 0.0
      %1272 = vmatprep.subr.mxu0 0.0
      %1273 = vmatpush1.msra.mxu0 0.0
      %1274 = vmatprep.subr.mxu0 0.0
      %1275 = vmatpush1.msra.mxu0 0.0
      %1276 = vmatprep.subr.mxu0 0.0
      %1277 = vmatpush1.msra.mxu0 0.0
      %1278 = vmatprep.subr.mxu0 0.0
      %1279 = vmatpush1.msra.mxu0 0.0
      %1280 = vmatprep.subr.mxu0 0.0
      %1281 = vmatpush1.msra.mxu0 0.0
      %1282 = vmatprep.subr.mxu0 0.0
      %1283 = vmatpush1.msra.mxu0 0.0
      %1284 = vmatprep.subr.mxu0 0.0
      %1285 = vmatpush1.msra.mxu0 0.0
      %1286 = vmatprep.subr.mxu0 0.0
      %1287 = vmatpush1.msra.mxu0 0.0
      %1288 = vmatprep.subr.mxu0 0.0
      %1289 = vmatpush1.msra.mxu0 0.0
      %1290 = vmatprep.subr.mxu0 0.0
      %1291 = vmatpush1.msra.mxu0 0.0
      %1292 = vmatprep.subr.mxu0 0.0
      %1293 = vmatpush1.msra.mxu0 0.0
      %1294 = vmatprep.subr.mxu0 0.0
      %1295 = vmatpush1.msra.mxu0 0.0
      %1296 = vmatprep.subr.mxu0 0.0
      %1297 = vmatpush1.msra.mxu0 0.0
      %1298 = vmatprep.subr.mxu0 0.0
      %1299 = vmatpush1.msra.mxu0 0.0
      %1300 = vmatprep.subr.mxu0 0.0
      %1301 = vmatpush1.msra.mxu0 %v1173
      %1302 = vmatprep.subr.mxu0 0.0
      %1303 = vmatpush2.msra.mxu0 0.0
      %1304 = vmatprep.subr.mxu0 0.0
      %1305 = vmatpush2.msra.mxu0 0.0
      %1306 = vmatprep.subr.mxu0 0.0
      %1307 = vmatpush2.msra.mxu0 0.0
      %1308 = vmatprep.subr.mxu0 0.0
      %1309 = vmatpush2.msra.mxu0 0.0
      %1310 = vmatprep.subr.mxu0 0.0
      %1311 = vmatpush2.msra.mxu0 0.0
      %1312 = vmatprep.subr.mxu0 0.0
      %1313 = vmatpush2.msra.mxu0 0.0
      %1314 = vmatprep.subr.mxu0 0.0
      %1315 = vmatpush2.msra.mxu0 0.0
      %1316 = vmatprep.subr.mxu0 0.0
      %1317 = vmatpush2.msra.mxu0 0.0
      %1318 = vmatprep.subr.mxu0 0.0
      %1319 = vmatpush2.msra.mxu0 0.0
      %1320 = vmatprep.subr.mxu0 0.0
      %1321 = vmatpush2.msra.mxu0 0.0
      %1322 = vmatprep.subr.mxu0 0.0
      %1323 = vmatpush2.msra.mxu0 0.0
      %1324 = vmatprep.subr.mxu0 0.0
      %1325 = vmatpush2.msra.mxu0 0.0
      %1326 = vmatprep.subr.mxu0 0.0
      %1327 = vmatpush2.msra.mxu0 0.0
      %1328 = vmatprep.subr.mxu0 0.0
      %1329 = vmatpush2.msra.mxu0 0.0
      %1330 = vmatprep.subr.mxu0 0.0
      %1331 = vmatpush2.msra.mxu0 0.0
      %1332 = vmatprep.subr.mxu0 0.0
      %1333 = vmatpush2.msra.mxu0 0.0
      %1334 = vmatprep.mubr.f32.mxu0 0.0
      %1335 = vmatmul.mubr.f32.gmra.mxu0 %v1175
      %v1336 = vpop.f32.mrf.mxu0
      %v1337 = vadd.f32 0.0, %v1336
      %v1338 = vpop.f32.mrf.mxu0
      %1339 = vmatprep.mubr.f32.mxu0 0.0
      %1340 = vmatmul.mubr.f32.gmra.mxu0 %v1178
      %v1341 = vpop.f32.mrf.mxu0
      %v1342 = vadd.f32 0.0, %v1341
      %v1343 = vpop.f32.mrf.mxu0
      %1344 = vmatprep.mubr.f32.mxu0 0.0
      %1345 = vmatmul.mubr.f32.gmra.mxu0 %v1181
      %v1346 = vpop.f32.mrf.mxu0
      %v1347 = vadd.f32 0.0, %v1346
      %v1348 = vpop.f32.mrf.mxu0
      %1349 = vmatprep.mubr.f32.mxu0 0.0
      %1350 = vmatmul.mubr.f32.gmra.mxu0 %v1184
      %v1351 = vpop.f32.mrf.mxu0
      %v1352 = vadd.f32 0.0, %v1351
      %v1353 = vpop.f32.mrf.mxu0
      %1354 = vmatprep.mubr.f32.mxu0 0.0
      %1355 = vmatmul.mubr.f32.gmra.mxu0 %v1187
      %v1356 = vpop.f32.mrf.mxu0
      %v1357 = vadd.f32 0.0, %v1356
      %v1358 = vpop.f32.mrf.mxu0
      %1359 = vmatprep.mubr.f32.mxu0 0.0
      %1360 = vmatmul.mubr.f32.gmra.mxu0 %v1190
      %v1361 = vpop.f32.mrf.mxu0
      %v1362 = vadd.f32 0.0, %v1361
      %v1363 = vpop.f32.mrf.mxu0
      %1364 = vmatprep.mubr.f32.mxu0 0.0
      %1365 = vmatmul.mubr.f32.gmra.mxu0 %v1193
      %v1366 = vpop.f32.mrf.mxu0
      %v1367 = vadd.f32 0.0, %v1366
      %v1368 = vpop.f32.mrf.mxu0
      %1369 = vmatprep.mubr.f32.mxu0 0.0
      %1370 = vmatmul.mubr.f32.gmra.mxu0 %v1196
      %v1371 = vpop.f32.mrf.mxu0
      %v1372 = vadd.f32 0.0, %v1371
      %v1373 = vpop.f32.mrf.mxu0
      %1374 = vmatprep.mubr.f32.mxu0 0.0
      %1375 = vmatmul.mubr.f32.gmra.mxu0 %v1199
      %v1376 = vpop.f32.mrf.mxu0
      %v1377 = vadd.f32 0.0, %v1376
      %v1378 = vpop.f32.mrf.mxu0
      %1379 = vmatprep.mubr.f32.mxu0 0.0
      %1380 = vmatmul.mubr.f32.gmra.mxu0 %v1202
      %v1381 = vpop.f32.mrf.mxu0
      %v1382 = vadd.f32 0.0, %v1381
      %v1383 = vpop.f32.mrf.mxu0
      %1384 = vmatprep.mubr.f32.mxu0 0.0
      %1385 = vmatmul.mubr.f32.gmra.mxu0 %v1205
      %v1386 = vpop.f32.mrf.mxu0
      %v1387 = vadd.f32 0.0, %v1386
      %v1388 = vpop.f32.mrf.mxu0
      %1389 = vmatprep.mubr.f32.mxu0 0.0
      %1390 = vmatmul.mubr.f32.gmra.mxu0 %v1208
      %v1391 = vpop.f32.mrf.mxu0
      %v1392 = vadd.f32 0.0, %v1391
      %v1393 = vpop.f32.mrf.mxu0
      %1394 = vmatprep.mubr.f32.mxu0 0.0
      %1395 = vmatmul.mubr.f32.gmra.mxu0 %v1211
      %v1396 = vpop.f32.mrf.mxu0
      %v1397 = vadd.f32 0.0, %v1396
      %v1398 = vpop.f32.mrf.mxu0
      %1399 = vmatprep.mubr.f32.mxu0 0.0
      %1400 = vmatmul.mubr.f32.gmra.mxu0 %v1214
      %v1401 = vpop.f32.mrf.mxu0
      %v1402 = vadd.f32 0.0, %v1401
      %v1403 = vpop.f32.mrf.mxu0
      %1404 = vmatprep.mubr.f32.mxu0 0.0
      %1405 = vmatmul.mubr.f32.gmra.mxu0 %v1217
      %v1406 = vpop.f32.mrf.mxu0
      %v1407 = vadd.f32 0.0, %v1406
      %v1408 = vpop.f32.mrf.mxu0
      %1409 = vmatprep.mubr.f32.mxu0 0.0
      %1410 = vmatmul.mubr.f32.gmra.mxu0 %v1220
      %v1411 = vpop.f32.mrf.mxu0
      %v1412 = vadd.f32 0.0, %v1411
      %v1413 = vpop.f32.mrf.mxu0
      %1414 = vmatprep.mubr.f32.mxu0 0.0
      %1415 = vmatmul.mubr.f32.gmra.mxu0 %v1223
      %v1416 = vpop.f32.mrf.mxu0
      %v1417 = vadd.f32 0.0, %v1416
      %v1418 = vpop.f32.mrf.mxu0
      %1419 = vmatprep.mubr.f32.mxu0 0.0
      %1420 = vmatmul.mubr.f32.gmra.mxu0 %v1226
      %v1421 = vpop.f32.mrf.mxu0
      %v1422 = vadd.f32 0.0, %v1421
      %v1423 = vpop.f32.mrf.mxu0
      %1424 = vmatprep.mubr.f32.mxu0 0.0
      %1425 = vmatmul.mubr.f32.gmra.mxu0 %v1229
      %v1426 = vpop.f32.mrf.mxu0
      %v1427 = vadd.f32 0.0, %v1426
      %v1428 = vpop.f32.mrf.mxu0
      %1429 = vmatprep.mubr.f32.mxu0 0.0
      %1430 = vmatmul.mubr.f32.gmra.mxu0 %v1232
      %v1431 = vpop.f32.mrf.mxu0
      %v1432 = vadd.f32 0.0, %v1431
      %v1433 = vpop.f32.mrf.mxu0
      %1434 = vmatprep.mubr.f32.mxu0 0.0
      %1435 = vmatmul.mubr.f32.gmra.mxu0 %v1235
      %v1436 = vpop.f32.mrf.mxu0
      %v1437 = vadd.f32 0.0, %v1436
      %v1438 = vpop.f32.mrf.mxu0
      %1439 = vmatprep.mubr.f32.mxu0 0.0
      %1440 = vmatmul.mubr.f32.gmra.mxu0 %v1238
      %v1441 = vpop.f32.mrf.mxu0
      %v1442 = vadd.f32 0.0, %v1441
      %v1443 = vpop.f32.mrf.mxu0
      %1444 = vmatprep.mubr.f32.mxu0 0.0
      %1445 = vmatmul.mubr.f32.gmra.mxu0 %v1241
      %v1446 = vpop.f32.mrf.mxu0
      %v1447 = vadd.f32 0.0, %v1446
      %v1448 = vpop.f32.mrf.mxu0
      %1449 = vmatprep.mubr.f32.mxu0 0.0
      %1450 = vmatmul.mubr.f32.gmra.mxu0 %v1244
      %v1451 = vpop.f32.mrf.mxu0
      %v1452 = vadd.f32 0.0, %v1451
      %v1453 = vpop.f32.mrf.mxu0
      %1454 = vmatprep.mubr.f32.mxu0 0.0
      %1455 = vmatmul.mubr.f32.gmra.mxu0 %v1247
      %v1456 = vpop.f32.mrf.mxu0
      %v1457 = vadd.f32 0.0, %v1456
      %v1458 = vpop.f32.mrf.mxu0
      %1459 = vmatprep.mubr.f32.mxu0 0.0
      %1460 = vmatmul.mubr.f32.gmra.mxu0 %v1250
      %v1461 = vpop.f32.mrf.mxu0
      %v1462 = vadd.f32 0.0, %v1461
      %v1463 = vpop.f32.mrf.mxu0
      %1464 = vmatprep.mubr.f32.mxu0 0.0
      %1465 = vmatmul.mubr.f32.gmra.mxu0 %v1253
      %v1466 = vpop.f32.mrf.mxu0
      %v1467 = vadd.f32 0.0, %v1466
      %v1468 = vpop.f32.mrf.mxu0
      %1469 = vmatprep.mubr.f32.mxu0 0.0
      %1470 = vmatmul.mubr.f32.gmra.mxu0 %v1256
      %v1471 = vpop.f32.mrf.mxu0
      %v1472 = vadd.f32 0.0, %v1471
      %v1473 = vpop.f32.mrf.mxu0
      %1474 = vmatprep.mubr.f32.mxu0 0.0
      %1475 = vmatmul.mubr.f32.gmra.mxu0 %v1259
      %v1476 = vpop.f32.mrf.mxu0
      %v1477 = vadd.f32 0.0, %v1476
      %v1478 = vpop.f32.mrf.mxu0
      %1479 = vmatprep.mubr.f32.mxu0 0.0
      %1480 = vmatmul.mubr.f32.gmra.mxu0 %v1262
      %v1481 = vpop.f32.mrf.mxu0
      %v1482 = vadd.f32 0.0, %v1481
      %v1483 = vpop.f32.mrf.mxu0
      %1484 = vmatprep.mubr.f32.mxu0 0.0
      %1485 = vmatmul.mubr.f32.gmra.mxu0 %v1265
      %v1486 = vpop.f32.mrf.mxu0
      %v1487 = vadd.f32 0.0, %v1486
      %v1488 = vpop.f32.mrf.mxu0
      %1489 = vmatprep.mubr.f32.mxu0 0.0
      %1490 = vmatmul.mubr.f32.gmra.mxu0 %v1268
      %v1491 = vpop.f32.mrf.mxu0
      %v1492 = vadd.f32 0.0, %v1491
      %v1493 = vpop.f32.mrf.mxu0
      %1494 = vdwg.mxu0
      %v1495 = vadd.f32 %v982, %v1337
      %v1496 = vadd.f32 %v987, %v1342
      %v1497 = vadd.f32 %v992, %v1347
      %v1498 = vadd.f32 %v997, %v1352
      %v1499 = vadd.f32 %v1002, %v1357
      %v1500 = vadd.f32 %v1007, %v1362
      %v1501 = vadd.f32 %v1012, %v1367
      %v1502 = vadd.f32 %v1017, %v1372
      %v1503 = vadd.f32 %v1022, %v1377
      %v1504 = vadd.f32 %v1027, %v1382
      %v1505 = vadd.f32 %v1032, %v1387
      %v1506 = vadd.f32 %v1037, %v1392
      %v1507 = vadd.f32 %v1042, %v1397
      %v1508 = vadd.f32 %v1047, %v1402
      %v1509 = vadd.f32 %v1052, %v1407
      %v1510 = vadd.f32 %v1057, %v1412
      %v1511 = vadd.f32 %v1062, %v1417
      %v1512 = vadd.f32 %v1067, %v1422
      %v1513 = vadd.f32 %v1072, %v1427
      %v1514 = vadd.f32 %v1077, %v1432
      %v1515 = vadd.f32 %v1082, %v1437
      %v1516 = vadd.f32 %v1087, %v1442
      %v1517 = vadd.f32 %v1092, %v1447
      %v1518 = vadd.f32 %v1097, %v1452
      %v1519 = vadd.f32 %v1102, %v1457
      %v1520 = vadd.f32 %v1107, %v1462
      %v1521 = vadd.f32 %v1112, %v1467
      %v1522 = vadd.f32 %v1117, %v1472
      %v1523 = vadd.f32 %v1122, %v1477
      %v1524 = vadd.f32 %v1127, %v1482
      %v1525 = vadd.f32 %v1132, %v1487
      %v1526 = vadd.f32 %v1137, %v1492
      %s1527 = scalar_lea.vmem [#allocation2], 24
      %v1528 = vld [vmem:[%s1527] sm:$0xff]
      %v1529 = vld [vmem:[%s1527 + $0x8] sm:$0xff]
      %v1530 = vld [vmem:[%s1527 + $0x18] sm:$0xff]
      %v1531 = vld [vmem:[%s1527 + $0x20] sm:$0xff]
      %v1532 = vld [vmem:[%s1527 + $0x30] sm:$0xff]
      %v1533 = vld [vmem:[%s1527 + $0x38] sm:$0xff]
      %v1534 = vld [vmem:[%s1527 + $0x48] sm:$0xff]
      %v1535 = vld [vmem:[%s1527 + $0x50] sm:$0xff]
      %v1536 = vld [vmem:[%s1527 + $0x60] sm:$0xff]
      %v1537 = vld [vmem:[%s1527 + $0x68] sm:$0xff]
      %v1538 = vld [vmem:[%s1527 + $0x78] sm:$0xff]
      %v1539 = vld [vmem:[%s1527 + $0x80] sm:$0xff]
      %v1540 = vld [vmem:[%s1527 + $0x90] sm:$0xff]
      %v1541 = vld [vmem:[%s1527 + $0x98] sm:$0xff]
      %v1542 = vld [vmem:[%s1527 + $0xa8] sm:$0xff]
      %v1543 = vld [vmem:[%s1527 + $0xb0] sm:$0xff]
      %v1544 = vld [vmem:[%s1527 + $0xc0] sm:$0xff]
      %v1545 = vld [vmem:[%s1527 + $0xc8] sm:$0xff]
      %v1546 = vld [vmem:[%s1527 + $0xd8] sm:$0xff]
      %v1547 = vld [vmem:[%s1527 + $0xe0] sm:$0xff]
      %v1548 = vld [vmem:[%s1527 + $0xf0] sm:$0xff]
      %v1549 = vld [vmem:[%s1527 + $0xf8] sm:$0xff]
      %v1550 = vld [vmem:[%s1527 + $0x108] sm:$0xff]
      %v1551 = vld [vmem:[%s1527 + $0x110] sm:$0xff]
      %v1552 = vld [vmem:[%s1527 + $0x120] sm:$0xff]
      %v1553 = vld [vmem:[%s1527 + $0x128] sm:$0xff]
      %v1554 = vld [vmem:[%s1527 + $0x138] sm:$0xff]
      %v1555 = vld [vmem:[%s1527 + $0x140] sm:$0xff]
      %v1556 = vld [vmem:[%s1527 + $0x150] sm:$0xff]
      %v1557 = vld [vmem:[%s1527 + $0x158] sm:$0xff]
      %v1558 = vld [vmem:[%s1527 + $0x168] sm:$0xff]
      %v1559 = vld [vmem:[%s1527 + $0x170] sm:$0xff]
      %s1560 = scalar_lea.vmem %s2, 24
      %v1561 = vld [vmem:[%s1560] sm:$0xff]
      %v1563 = vsel %vm368, %v1528, 0
      %v1566 = vsel %vm368, %v1529, 0
      %v1569 = vsel %vm368, %v1530, 0
      %v1572 = vsel %vm368, %v1531, 0
      %v1575 = vsel %vm368, %v1532, 0
      %v1578 = vsel %vm368, %v1533, 0
      %v1581 = vsel %vm368, %v1534, 0
      %v1584 = vsel %vm368, %v1535, 0
      %v1587 = vsel %vm368, %v1536, 0
      %v1590 = vsel %vm368, %v1537, 0
      %v1593 = vsel %vm368, %v1538, 0
      %v1596 = vsel %vm368, %v1539, 0
      %v1599 = vsel %vm368, %v1540, 0
      %v1602 = vsel %vm368, %v1541, 0
      %v1605 = vsel %vm368, %v1542, 0
      %v1608 = vsel %vm368, %v1543, 0
      %v1611 = vsel %vm368, %v1544, 0
      %v1614 = vsel %vm368, %v1545, 0
      %v1617 = vsel %vm368, %v1546, 0
      %v1620 = vsel %vm368, %v1547, 0
      %v1623 = vsel %vm368, %v1548, 0
      %v1626 = vsel %vm368, %v1549, 0
      %v1629 = vsel %vm368, %v1550, 0
      %v1632 = vsel %vm368, %v1551, 0
      %v1635 = vsel %vm368, %v1552, 0
      %v1638 = vsel %vm368, %v1553, 0
      %v1641 = vsel %vm368, %v1554, 0
      %v1644 = vsel %vm368, %v1555, 0
      %v1647 = vsel %vm368, %v1556, 0
      %v1650 = vsel %vm368, %v1557, 0
      %v1653 = vsel %vm368, %v1558, 0
      %v1656 = vsel %vm368, %v1559, 0
      %1658 = vmatprep.subr.mxu0 0.0
      %1659 = vmatpush1.msra.mxu0 0.0
      %1660 = vmatprep.subr.mxu0 0.0
      %1661 = vmatpush1.msra.mxu0 0.0
      %1662 = vmatprep.subr.mxu0 0.0
      %1663 = vmatpush1.msra.mxu0 0.0
      %1664 = vmatprep.subr.mxu0 0.0
      %1665 = vmatpush1.msra.mxu0 0.0
      %1666 = vmatprep.subr.mxu0 0.0
      %1667 = vmatpush1.msra.mxu0 0.0
      %1668 = vmatprep.subr.mxu0 0.0
      %1669 = vmatpush1.msra.mxu0 0.0
      %1670 = vmatprep.subr.mxu0 0.0
      %1671 = vmatpush1.msra.mxu0 0.0
      %1672 = vmatprep.subr.mxu0 0.0
      %1673 = vmatpush1.msra.mxu0 0.0
      %1674 = vmatprep.subr.mxu0 0.0
      %1675 = vmatpush1.msra.mxu0 0.0
      %1676 = vmatprep.subr.mxu0 0.0
      %1677 = vmatpush1.msra.mxu0 0.0
      %1678 = vmatprep.subr.mxu0 0.0
      %1679 = vmatpush1.msra.mxu0 0.0
      %1680 = vmatprep.subr.mxu0 0.0
      %1681 = vmatpush1.msra.mxu0 0.0
      %1682 = vmatprep.subr.mxu0 0.0
      %1683 = vmatpush1.msra.mxu0 0.0
      %1684 = vmatprep.subr.mxu0 0.0
      %1685 = vmatpush1.msra.mxu0 0.0
      %1686 = vmatprep.subr.mxu0 0.0
      %1687 = vmatpush1.msra.mxu0 0.0
      %1688 = vmatprep.subr.mxu0 0.0
      %1689 = vmatpush1.msra.mxu0 %v1561
      %1690 = vmatprep.subr.mxu0 0.0
      %1691 = vmatpush2.msra.mxu0 0.0
      %1692 = vmatprep.subr.mxu0 0.0
      %1693 = vmatpush2.msra.mxu0 0.0
      %1694 = vmatprep.subr.mxu0 0.0
      %1695 = vmatpush2.msra.mxu0 0.0
      %1696 = vmatprep.subr.mxu0 0.0
      %1697 = vmatpush2.msra.mxu0 0.0
      %1698 = vmatprep.subr.mxu0 0.0
      %1699 = vmatpush2.msra.mxu0 0.0
      %1700 = vmatprep.subr.mxu0 0.0
      %1701 = vmatpush2.msra.mxu0 0.0
      %1702 = vmatprep.subr.mxu0 0.0
      %1703 = vmatpush2.msra.mxu0 0.0
      %1704 = vmatprep.subr.mxu0 0.0
      %1705 = vmatpush2.msra.mxu0 0.0
      %1706 = vmatprep.subr.mxu0 0.0
      %1707 = vmatpush2.msra.mxu0 0.0
      %1708 = vmatprep.subr.mxu0 0.0
      %1709 = vmatpush2.msra.mxu0 0.0
      %1710 = vmatprep.subr.mxu0 0.0
      %1711 = vmatpush2.msra.mxu0 0.0
      %1712 = vmatprep.subr.mxu0 0.0
      %1713 = vmatpush2.msra.mxu0 0.0
      %1714 = vmatprep.subr.mxu0 0.0
      %1715 = vmatpush2.msra.mxu0 0.0
      %1716 = vmatprep.subr.mxu0 0.0
      %1717 = vmatpush2.msra.mxu0 0.0
      %1718 = vmatprep.subr.mxu0 0.0
      %1719 = vmatpush2.msra.mxu0 0.0
      %1720 = vmatprep.subr.mxu0 0.0
      %1721 = vmatpush2.msra.mxu0 0.0
      %1722 = vmatprep.mubr.f32.mxu0 0.0
      %1723 = vmatmul.mubr.f32.gmra.mxu0 %v1563
      %v1724 = vpop.f32.mrf.mxu0
      %v1725 = vadd.f32 0.0, %v1724
      %v1726 = vpop.f32.mrf.mxu0
      %1727 = vmatprep.mubr.f32.mxu0 0.0
      %1728 = vmatmul.mubr.f32.gmra.mxu0 %v1566
      %v1729 = vpop.f32.mrf.mxu0
      %v1730 = vadd.f32 0.0, %v1729
      %v1731 = vpop.f32.mrf.mxu0
      %1732 = vmatprep.mubr.f32.mxu0 0.0
      %1733 = vmatmul.mubr.f32.gmra.mxu0 %v1569
      %v1734 = vpop.f32.mrf.mxu0
      %v1735 = vadd.f32 0.0, %v1734
      %v1736 = vpop.f32.mrf.mxu0
      %1737 = vmatprep.mubr.f32.mxu0 0.0
      %1738 = vmatmul.mubr.f32.gmra.mxu0 %v1572
      %v1739 = vpop.f32.mrf.mxu0
      %v1740 = vadd.f32 0.0, %v1739
      %v1741 = vpop.f32.mrf.mxu0
      %1742 = vmatprep.mubr.f32.mxu0 0.0
      %1743 = vmatmul.mubr.f32.gmra.mxu0 %v1575
      %v1744 = vpop.f32.mrf.mxu0
      %v1745 = vadd.f32 0.0, %v1744
      %v1746 = vpop.f32.mrf.mxu0
      %1747 = vmatprep.mubr.f32.mxu0 0.0
      %1748 = vmatmul.mubr.f32.gmra.mxu0 %v1578
      %v1749 = vpop.f32.mrf.mxu0
      %v1750 = vadd.f32 0.0, %v1749
      %v1751 = vpop.f32.mrf.mxu0
      %1752 = vmatprep.mubr.f32.mxu0 0.0
      %1753 = vmatmul.mubr.f32.gmra.mxu0 %v1581
      %v1754 = vpop.f32.mrf.mxu0
      %v1755 = vadd.f32 0.0, %v1754
      %v1756 = vpop.f32.mrf.mxu0
      %1757 = vmatprep.mubr.f32.mxu0 0.0
      %1758 = vmatmul.mubr.f32.gmra.mxu0 %v1584
      %v1759 = vpop.f32.mrf.mxu0
      %v1760 = vadd.f32 0.0, %v1759
      %v1761 = vpop.f32.mrf.mxu0
      %1762 = vmatprep.mubr.f32.mxu0 0.0
      %1763 = vmatmul.mubr.f32.gmra.mxu0 %v1587
      %v1764 = vpop.f32.mrf.mxu0
      %v1765 = vadd.f32 0.0, %v1764
      %v1766 = vpop.f32.mrf.mxu0
      %1767 = vmatprep.mubr.f32.mxu0 0.0
      %1768 = vmatmul.mubr.f32.gmra.mxu0 %v1590
      %v1769 = vpop.f32.mrf.mxu0
      %v1770 = vadd.f32 0.0, %v1769
      %v1771 = vpop.f32.mrf.mxu0
      %1772 = vmatprep.mubr.f32.mxu0 0.0
      %1773 = vmatmul.mubr.f32.gmra.mxu0 %v1593
      %v1774 = vpop.f32.mrf.mxu0
      %v1775 = vadd.f32 0.0, %v1774
      %v1776 = vpop.f32.mrf.mxu0
      %1777 = vmatprep.mubr.f32.mxu0 0.0
      %1778 = vmatmul.mubr.f32.gmra.mxu0 %v1596
      %v1779 = vpop.f32.mrf.mxu0
      %v1780 = vadd.f32 0.0, %v1779
      %v1781 = vpop.f32.mrf.mxu0
      %1782 = vmatprep.mubr.f32.mxu0 0.0
      %1783 = vmatmul.mubr.f32.gmra.mxu0 %v1599
      %v1784 = vpop.f32.mrf.mxu0
      %v1785 = vadd.f32 0.0, %v1784
      %v1786 = vpop.f32.mrf.mxu0
      %1787 = vmatprep.mubr.f32.mxu0 0.0
      %1788 = vmatmul.mubr.f32.gmra.mxu0 %v1602
      %v1789 = vpop.f32.mrf.mxu0
      %v1790 = vadd.f32 0.0, %v1789
      %v1791 = vpop.f32.mrf.mxu0
      %1792 = vmatprep.mubr.f32.mxu0 0.0
      %1793 = vmatmul.mubr.f32.gmra.mxu0 %v1605
      %v1794 = vpop.f32.mrf.mxu0
      %v1795 = vadd.f32 0.0, %v1794
      %v1796 = vpop.f32.mrf.mxu0
      %1797 = vmatprep.mubr.f32.mxu0 0.0
      %1798 = vmatmul.mubr.f32.gmra.mxu0 %v1608
      %v1799 = vpop.f32.mrf.mxu0
      %v1800 = vadd.f32 0.0, %v1799
      %v1801 = vpop.f32.mrf.mxu0
      %1802 = vmatprep.mubr.f32.mxu0 0.0
      %1803 = vmatmul.mubr.f32.gmra.mxu0 %v1611
      %v1804 = vpop.f32.mrf.mxu0
      %v1805 = vadd.f32 0.0, %v1804
      %v1806 = vpop.f32.mrf.mxu0
      %1807 = vmatprep.mubr.f32.mxu0 0.0
      %1808 = vmatmul.mubr.f32.gmra.mxu0 %v1614
      %v1809 = vpop.f32.mrf.mxu0
      %v1810 = vadd.f32 0.0, %v1809
      %v1811 = vpop.f32.mrf.mxu0
      %1812 = vmatprep.mubr.f32.mxu0 0.0
      %1813 = vmatmul.mubr.f32.gmra.mxu0 %v1617
      %v1814 = vpop.f32.mrf.mxu0
      %v1815 = vadd.f32 0.0, %v1814
      %v1816 = vpop.f32.mrf.mxu0
      %1817 = vmatprep.mubr.f32.mxu0 0.0
      %1818 = vmatmul.mubr.f32.gmra.mxu0 %v1620
      %v1819 = vpop.f32.mrf.mxu0
      %v1820 = vadd.f32 0.0, %v1819
      %v1821 = vpop.f32.mrf.mxu0
      %1822 = vmatprep.mubr.f32.mxu0 0.0
      %1823 = vmatmul.mubr.f32.gmra.mxu0 %v1623
      %v1824 = vpop.f32.mrf.mxu0
      %v1825 = vadd.f32 0.0, %v1824
      %v1826 = vpop.f32.mrf.mxu0
      %1827 = vmatprep.mubr.f32.mxu0 0.0
      %1828 = vmatmul.mubr.f32.gmra.mxu0 %v1626
      %v1829 = vpop.f32.mrf.mxu0
      %v1830 = vadd.f32 0.0, %v1829
      %v1831 = vpop.f32.mrf.mxu0
      %1832 = vmatprep.mubr.f32.mxu0 0.0
      %1833 = vmatmul.mubr.f32.gmra.mxu0 %v1629
      %v1834 = vpop.f32.mrf.mxu0
      %v1835 = vadd.f32 0.0, %v1834
      %v1836 = vpop.f32.mrf.mxu0
      %1837 = vmatprep.mubr.f32.mxu0 0.0
      %1838 = vmatmul.mubr.f32.gmra.mxu0 %v1632
      %v1839 = vpop.f32.mrf.mxu0
      %v1840 = vadd.f32 0.0, %v1839
      %v1841 = vpop.f32.mrf.mxu0
      %1842 = vmatprep.mubr.f32.mxu0 0.0
      %1843 = vmatmul.mubr.f32.gmra.mxu0 %v1635
      %v1844 = vpop.f32.mrf.mxu0
      %v1845 = vadd.f32 0.0, %v1844
      %v1846 = vpop.f32.mrf.mxu0
      %1847 = vmatprep.mubr.f32.mxu0 0.0
      %1848 = vmatmul.mubr.f32.gmra.mxu0 %v1638
      %v1849 = vpop.f32.mrf.mxu0
      %v1850 = vadd.f32 0.0, %v1849
      %v1851 = vpop.f32.mrf.mxu0
      %1852 = vmatprep.mubr.f32.mxu0 0.0
      %1853 = vmatmul.mubr.f32.gmra.mxu0 %v1641
      %v1854 = vpop.f32.mrf.mxu0
      %v1855 = vadd.f32 0.0, %v1854
      %v1856 = vpop.f32.mrf.mxu0
      %1857 = vmatprep.mubr.f32.mxu0 0.0
      %1858 = vmatmul.mubr.f32.gmra.mxu0 %v1644
      %v1859 = vpop.f32.mrf.mxu0
      %v1860 = vadd.f32 0.0, %v1859
      %v1861 = vpop.f32.mrf.mxu0
      %1862 = vmatprep.mubr.f32.mxu0 0.0
      %1863 = vmatmul.mubr.f32.gmra.mxu0 %v1647
      %v1864 = vpop.f32.mrf.mxu0
      %v1865 = vadd.f32 0.0, %v1864
      %v1866 = vpop.f32.mrf.mxu0
      %1867 = vmatprep.mubr.f32.mxu0 0.0
      %1868 = vmatmul.mubr.f32.gmra.mxu0 %v1650
      %v1869 = vpop.f32.mrf.mxu0
      %v1870 = vadd.f32 0.0, %v1869
      %v1871 = vpop.f32.mrf.mxu0
      %1872 = vmatprep.mubr.f32.mxu0 0.0
      %1873 = vmatmul.mubr.f32.gmra.mxu0 %v1653
      %v1874 = vpop.f32.mrf.mxu0
      %v1875 = vadd.f32 0.0, %v1874
      %v1876 = vpop.f32.mrf.mxu0
      %1877 = vmatprep.mubr.f32.mxu0 0.0
      %1878 = vmatmul.mubr.f32.gmra.mxu0 %v1656
      %v1879 = vpop.f32.mrf.mxu0
      %v1880 = vadd.f32 0.0, %v1879
      %v1881 = vpop.f32.mrf.mxu0
      %1882 = vdwg.mxu0
      %v1883 = vadd.f32 %v1495, %v1725
      %v1884 = vadd.f32 %v1496, %v1730
      %v1885 = vadd.f32 %v1497, %v1735
      %v1886 = vadd.f32 %v1498, %v1740
      %v1887 = vadd.f32 %v1499, %v1745
      %v1888 = vadd.f32 %v1500, %v1750
      %v1889 = vadd.f32 %v1501, %v1755
      %v1890 = vadd.f32 %v1502, %v1760
      %v1891 = vadd.f32 %v1503, %v1765
      %v1892 = vadd.f32 %v1504, %v1770
      %v1893 = vadd.f32 %v1505, %v1775
      %v1894 = vadd.f32 %v1506, %v1780
      %v1895 = vadd.f32 %v1507, %v1785
      %v1896 = vadd.f32 %v1508, %v1790
      %v1897 = vadd.f32 %v1509, %v1795
      %v1898 = vadd.f32 %v1510, %v1800
      %v1899 = vadd.f32 %v1511, %v1805
      %v1900 = vadd.f32 %v1512, %v1810
      %v1901 = vadd.f32 %v1513, %v1815
      %v1902 = vadd.f32 %v1514, %v1820
      %v1903 = vadd.f32 %v1515, %v1825
      %v1904 = vadd.f32 %v1516, %v1830
      %v1905 = vadd.f32 %v1517, %v1835
      %v1906 = vadd.f32 %v1518, %v1840
      %v1907 = vadd.f32 %v1519, %v1845
      %v1908 = vadd.f32 %v1520, %v1850
      %v1909 = vadd.f32 %v1521, %v1855
      %v1910 = vadd.f32 %v1522, %v1860
      %v1911 = vadd.f32 %v1523, %v1865
      %v1912 = vadd.f32 %v1524, %v1870
      %v1913 = vadd.f32 %v1525, %v1875
      %v1914 = vadd.f32 %v1526, %v1880
      %v1915 = vld [vmem:[%s1527 + $0x1] sm:$0xff]
      %v1916 = vld [vmem:[%s1527 + $0x9] sm:$0xff]
      %v1917 = vld [vmem:[%s1527 + $0x19] sm:$0xff]
      %v1918 = vld [vmem:[%s1527 + $0x21] sm:$0xff]
      %v1919 = vld [vmem:[%s1527 + $0x31] sm:$0xff]
      %v1920 = vld [vmem:[%s1527 + $0x39] sm:$0xff]
      %v1921 = vld [vmem:[%s1527 + $0x49] sm:$0xff]
      %v1922 = vld [vmem:[%s1527 + $0x51] sm:$0xff]
      %v1923 = vld [vmem:[%s1527 + $0x61] sm:$0xff]
      %v1924 = vld [vmem:[%s1527 + $0x69] sm:$0xff]
      %v1925 = vld [vmem:[%s1527 + $0x79] sm:$0xff]
      %v1926 = vld [vmem:[%s1527 + $0x81] sm:$0xff]
      %v1927 = vld [vmem:[%s1527 + $0x91] sm:$0xff]
      %v1928 = vld [vmem:[%s1527 + $0x99] sm:$0xff]
      %v1929 = vld [vmem:[%s1527 + $0xa9] sm:$0xff]
      %v1930 = vld [vmem:[%s1527 + $0xb1] sm:$0xff]
      %v1931 = vld [vmem:[%s1527 + $0xc1] sm:$0xff]
      %v1932 = vld [vmem:[%s1527 + $0xc9] sm:$0xff]
      %v1933 = vld [vmem:[%s1527 + $0xd9] sm:$0xff]
      %v1934 = vld [vmem:[%s1527 + $0xe1] sm:$0xff]
      %v1935 = vld [vmem:[%s1527 + $0xf1] sm:$0xff]
      %v1936 = vld [vmem:[%s1527 + $0xf9] sm:$0xff]
      %v1937 = vld [vmem:[%s1527 + $0x109] sm:$0xff]
      %v1938 = vld [vmem:[%s1527 + $0x111] sm:$0xff]
      %v1939 = vld [vmem:[%s1527 + $0x121] sm:$0xff]
      %v1940 = vld [vmem:[%s1527 + $0x129] sm:$0xff]
      %v1941 = vld [vmem:[%s1527 + $0x139] sm:$0xff]
      %v1942 = vld [vmem:[%s1527 + $0x141] sm:$0xff]
      %v1943 = vld [vmem:[%s1527 + $0x151] sm:$0xff]
      %v1944 = vld [vmem:[%s1527 + $0x159] sm:$0xff]
      %v1945 = vld [vmem:[%s1527 + $0x169] sm:$0xff]
      %v1946 = vld [vmem:[%s1527 + $0x171] sm:$0xff]
      %s1947 = scalar_lea.vmem %s2, 32
      %v1948 = vld [vmem:[%s1947] sm:$0xff]
      %v1950 = vsel %vm368, %v1915, 0
      %v1953 = vsel %vm368, %v1916, 0
      %v1956 = vsel %vm368, %v1917, 0
      %v1959 = vsel %vm368, %v1918, 0
      %v1962 = vsel %vm368, %v1919, 0
      %v1965 = vsel %vm368, %v1920, 0
      %v1968 = vsel %vm368, %v1921, 0
      %v1971 = vsel %vm368, %v1922, 0
      %v1974 = vsel %vm368, %v1923, 0
      %v1977 = vsel %vm368, %v1924, 0
      %v1980 = vsel %vm368, %v1925, 0
      %v1983 = vsel %vm368, %v1926, 0
      %v1986 = vsel %vm368, %v1927, 0
      %v1989 = vsel %vm368, %v1928, 0
      %v1992 = vsel %vm368, %v1929, 0
      %v1995 = vsel %vm368, %v1930, 0
      %v1998 = vsel %vm368, %v1931, 0
      %v2001 = vsel %vm368, %v1932, 0
      %v2004 = vsel %vm368, %v1933, 0
      %v2007 = vsel %vm368, %v1934, 0
      %v2010 = vsel %vm368, %v1935, 0
      %v2013 = vsel %vm368, %v1936, 0
      %v2016 = vsel %vm368, %v1937, 0
      %v2019 = vsel %vm368, %v1938, 0
      %v2022 = vsel %vm368, %v1939, 0
      %v2025 = vsel %vm368, %v1940, 0
      %v2028 = vsel %vm368, %v1941, 0
      %v2031 = vsel %vm368, %v1942, 0
      %v2034 = vsel %vm368, %v1943, 0
      %v2037 = vsel %vm368, %v1944, 0
      %v2040 = vsel %vm368, %v1945, 0
      %v2043 = vsel %vm368, %v1946, 0
      %2045 = vmatprep.subr.mxu0 0.0
      %2046 = vmatpush1.msra.mxu0 0.0
      %2047 = vmatprep.subr.mxu0 0.0
      %2048 = vmatpush1.msra.mxu0 0.0
      %2049 = vmatprep.subr.mxu0 0.0
      %2050 = vmatpush1.msra.mxu0 0.0
      %2051 = vmatprep.subr.mxu0 0.0
      %2052 = vmatpush1.msra.mxu0 0.0
      %2053 = vmatprep.subr.mxu0 0.0
      %2054 = vmatpush1.msra.mxu0 0.0
      %2055 = vmatprep.subr.mxu0 0.0
      %2056 = vmatpush1.msra.mxu0 0.0
      %2057 = vmatprep.subr.mxu0 0.0
      %2058 = vmatpush1.msra.mxu0 0.0
      %2059 = vmatprep.subr.mxu0 0.0
      %2060 = vmatpush1.msra.mxu0 0.0
      %2061 = vmatprep.subr.mxu0 0.0
      %2062 = vmatpush1.msra.mxu0 0.0
      %2063 = vmatprep.subr.mxu0 0.0
      %2064 = vmatpush1.msra.mxu0 0.0
      %2065 = vmatprep.subr.mxu0 0.0
      %2066 = vmatpush1.msra.mxu0 0.0
      %2067 = vmatprep.subr.mxu0 0.0
      %2068 = vmatpush1.msra.mxu0 0.0
      %2069 = vmatprep.subr.mxu0 0.0
      %2070 = vmatpush1.msra.mxu0 0.0
      %2071 = vmatprep.subr.mxu0 0.0
      %2072 = vmatpush1.msra.mxu0 0.0
      %2073 = vmatprep.subr.mxu0 0.0
      %2074 = vmatpush1.msra.mxu0 0.0
      %2075 = vmatprep.subr.mxu0 0.0
      %2076 = vmatpush1.msra.mxu0 %v1948
      %2077 = vmatprep.subr.mxu0 0.0
      %2078 = vmatpush2.msra.mxu0 0.0
      %2079 = vmatprep.subr.mxu0 0.0
      %2080 = vmatpush2.msra.mxu0 0.0
      %2081 = vmatprep.subr.mxu0 0.0
      %2082 = vmatpush2.msra.mxu0 0.0
      %2083 = vmatprep.subr.mxu0 0.0
      %2084 = vmatpush2.msra.mxu0 0.0
      %2085 = vmatprep.subr.mxu0 0.0
      %2086 = vmatpush2.msra.mxu0 0.0
      %2087 = vmatprep.subr.mxu0 0.0
      %2088 = vmatpush2.msra.mxu0 0.0
      %2089 = vmatprep.subr.mxu0 0.0
      %2090 = vmatpush2.msra.mxu0 0.0
      %2091 = vmatprep.subr.mxu0 0.0
      %2092 = vmatpush2.msra.mxu0 0.0
      %2093 = vmatprep.subr.mxu0 0.0
      %2094 = vmatpush2.msra.mxu0 0.0
      %2095 = vmatprep.subr.mxu0 0.0
      %2096 = vmatpush2.msra.mxu0 0.0
      %2097 = vmatprep.subr.mxu0 0.0
      %2098 = vmatpush2.msra.mxu0 0.0
      %2099 = vmatprep.subr.mxu0 0.0
      %2100 = vmatpush2.msra.mxu0 0.0
      %2101 = vmatprep.subr.mxu0 0.0
      %2102 = vmatpush2.msra.mxu0 0.0
      %2103 = vmatprep.subr.mxu0 0.0
      %2104 = vmatpush2.msra.mxu0 0.0
      %2105 = vmatprep.subr.mxu0 0.0
      %2106 = vmatpush2.msra.mxu0 0.0
      %2107 = vmatprep.subr.mxu0 0.0
      %2108 = vmatpush2.msra.mxu0 0.0
      %2109 = vmatprep.mubr.f32.mxu0 0.0
      %2110 = vmatmul.mubr.f32.gmra.mxu0 %v1950
      %v2111 = vpop.f32.mrf.mxu0
      %v2112 = vadd.f32 0.0, %v2111
      %v2113 = vpop.f32.mrf.mxu0
      %2114 = vmatprep.mubr.f32.mxu0 0.0
      %2115 = vmatmul.mubr.f32.gmra.mxu0 %v1953
      %v2116 = vpop.f32.mrf.mxu0
      %v2117 = vadd.f32 0.0, %v2116
      %v2118 = vpop.f32.mrf.mxu0
      %2119 = vmatprep.mubr.f32.mxu0 0.0
      %2120 = vmatmul.mubr.f32.gmra.mxu0 %v1956
      %v2121 = vpop.f32.mrf.mxu0
      %v2122 = vadd.f32 0.0, %v2121
      %v2123 = vpop.f32.mrf.mxu0
      %2124 = vmatprep.mubr.f32.mxu0 0.0
      %2125 = vmatmul.mubr.f32.gmra.mxu0 %v1959
      %v2126 = vpop.f32.mrf.mxu0
      %v2127 = vadd.f32 0.0, %v2126
      %v2128 = vpop.f32.mrf.mxu0
      %2129 = vmatprep.mubr.f32.mxu0 0.0
      %2130 = vmatmul.mubr.f32.gmra.mxu0 %v1962
      %v2131 = vpop.f32.mrf.mxu0
      %v2132 = vadd.f32 0.0, %v2131
      %v2133 = vpop.f32.mrf.mxu0
      %2134 = vmatprep.mubr.f32.mxu0 0.0
      %2135 = vmatmul.mubr.f32.gmra.mxu0 %v1965
      %v2136 = vpop.f32.mrf.mxu0
      %v2137 = vadd.f32 0.0, %v2136
      %v2138 = vpop.f32.mrf.mxu0
      %2139 = vmatprep.mubr.f32.mxu0 0.0
      %2140 = vmatmul.mubr.f32.gmra.mxu0 %v1968
      %v2141 = vpop.f32.mrf.mxu0
      %v2142 = vadd.f32 0.0, %v2141
      %v2143 = vpop.f32.mrf.mxu0
      %2144 = vmatprep.mubr.f32.mxu0 0.0
      %2145 = vmatmul.mubr.f32.gmra.mxu0 %v1971
      %v2146 = vpop.f32.mrf.mxu0
      %v2147 = vadd.f32 0.0, %v2146
      %v2148 = vpop.f32.mrf.mxu0
      %2149 = vmatprep.mubr.f32.mxu0 0.0
      %2150 = vmatmul.mubr.f32.gmra.mxu0 %v1974
      %v2151 = vpop.f32.mrf.mxu0
      %v2152 = vadd.f32 0.0, %v2151
      %v2153 = vpop.f32.mrf.mxu0
      %2154 = vmatprep.mubr.f32.mxu0 0.0
      %2155 = vmatmul.mubr.f32.gmra.mxu0 %v1977
      %v2156 = vpop.f32.mrf.mxu0
      %v2157 = vadd.f32 0.0, %v2156
      %v2158 = vpop.f32.mrf.mxu0
      %2159 = vmatprep.mubr.f32.mxu0 0.0
      %2160 = vmatmul.mubr.f32.gmra.mxu0 %v1980
      %v2161 = vpop.f32.mrf.mxu0
      %v2162 = vadd.f32 0.0, %v2161
      %v2163 = vpop.f32.mrf.mxu0
      %2164 = vmatprep.mubr.f32.mxu0 0.0
      %2165 = vmatmul.mubr.f32.gmra.mxu0 %v1983
      %v2166 = vpop.f32.mrf.mxu0
      %v2167 = vadd.f32 0.0, %v2166
      %v2168 = vpop.f32.mrf.mxu0
      %2169 = vmatprep.mubr.f32.mxu0 0.0
      %2170 = vmatmul.mubr.f32.gmra.mxu0 %v1986
      %v2171 = vpop.f32.mrf.mxu0
      %v2172 = vadd.f32 0.0, %v2171
      %v2173 = vpop.f32.mrf.mxu0
      %2174 = vmatprep.mubr.f32.mxu0 0.0
      %2175 = vmatmul.mubr.f32.gmra.mxu0 %v1989
      %v2176 = vpop.f32.mrf.mxu0
      %v2177 = vadd.f32 0.0, %v2176
      %v2178 = vpop.f32.mrf.mxu0
      %2179 = vmatprep.mubr.f32.mxu0 0.0
      %2180 = vmatmul.mubr.f32.gmra.mxu0 %v1992
      %v2181 = vpop.f32.mrf.mxu0
      %v2182 = vadd.f32 0.0, %v2181
      %v2183 = vpop.f32.mrf.mxu0
      %2184 = vmatprep.mubr.f32.mxu0 0.0
      %2185 = vmatmul.mubr.f32.gmra.mxu0 %v1995
      %v2186 = vpop.f32.mrf.mxu0
      %v2187 = vadd.f32 0.0, %v2186
      %v2188 = vpop.f32.mrf.mxu0
      %2189 = vmatprep.mubr.f32.mxu0 0.0
      %2190 = vmatmul.mubr.f32.gmra.mxu0 %v1998
      %v2191 = vpop.f32.mrf.mxu0
      %v2192 = vadd.f32 0.0, %v2191
      %v2193 = vpop.f32.mrf.mxu0
      %2194 = vmatprep.mubr.f32.mxu0 0.0
      %2195 = vmatmul.mubr.f32.gmra.mxu0 %v2001
      %v2196 = vpop.f32.mrf.mxu0
      %v2197 = vadd.f32 0.0, %v2196
      %v2198 = vpop.f32.mrf.mxu0
      %2199 = vmatprep.mubr.f32.mxu0 0.0
      %2200 = vmatmul.mubr.f32.gmra.mxu0 %v2004
      %v2201 = vpop.f32.mrf.mxu0
      %v2202 = vadd.f32 0.0, %v2201
      %v2203 = vpop.f32.mrf.mxu0
      %2204 = vmatprep.mubr.f32.mxu0 0.0
      %2205 = vmatmul.mubr.f32.gmra.mxu0 %v2007
      %v2206 = vpop.f32.mrf.mxu0
      %v2207 = vadd.f32 0.0, %v2206
      %v2208 = vpop.f32.mrf.mxu0
      %2209 = vmatprep.mubr.f32.mxu0 0.0
      %2210 = vmatmul.mubr.f32.gmra.mxu0 %v2010
      %v2211 = vpop.f32.mrf.mxu0
      %v2212 = vadd.f32 0.0, %v2211
      %v2213 = vpop.f32.mrf.mxu0
      %2214 = vmatprep.mubr.f32.mxu0 0.0
      %2215 = vmatmul.mubr.f32.gmra.mxu0 %v2013
      %v2216 = vpop.f32.mrf.mxu0
      %v2217 = vadd.f32 0.0, %v2216
      %v2218 = vpop.f32.mrf.mxu0
      %2219 = vmatprep.mubr.f32.mxu0 0.0
      %2220 = vmatmul.mubr.f32.gmra.mxu0 %v2016
      %v2221 = vpop.f32.mrf.mxu0
      %v2222 = vadd.f32 0.0, %v2221
      %v2223 = vpop.f32.mrf.mxu0
      %2224 = vmatprep.mubr.f32.mxu0 0.0
      %2225 = vmatmul.mubr.f32.gmra.mxu0 %v2019
      %v2226 = vpop.f32.mrf.mxu0
      %v2227 = vadd.f32 0.0, %v2226
      %v2228 = vpop.f32.mrf.mxu0
      %2229 = vmatprep.mubr.f32.mxu0 0.0
      %2230 = vmatmul.mubr.f32.gmra.mxu0 %v2022
      %v2231 = vpop.f32.mrf.mxu0
      %v2232 = vadd.f32 0.0, %v2231
      %v2233 = vpop.f32.mrf.mxu0
      %2234 = vmatprep.mubr.f32.mxu0 0.0
      %2235 = vmatmul.mubr.f32.gmra.mxu0 %v2025
      %v2236 = vpop.f32.mrf.mxu0
      %v2237 = vadd.f32 0.0, %v2236
      %v2238 = vpop.f32.mrf.mxu0
      %2239 = vmatprep.mubr.f32.mxu0 0.0
      %2240 = vmatmul.mubr.f32.gmra.mxu0 %v2028
      %v2241 = vpop.f32.mrf.mxu0
      %v2242 = vadd.f32 0.0, %v2241
      %v2243 = vpop.f32.mrf.mxu0
      %2244 = vmatprep.mubr.f32.mxu0 0.0
      %2245 = vmatmul.mubr.f32.gmra.mxu0 %v2031
      %v2246 = vpop.f32.mrf.mxu0
      %v2247 = vadd.f32 0.0, %v2246
      %v2248 = vpop.f32.mrf.mxu0
      %2249 = vmatprep.mubr.f32.mxu0 0.0
      %2250 = vmatmul.mubr.f32.gmra.mxu0 %v2034
      %v2251 = vpop.f32.mrf.mxu0
      %v2252 = vadd.f32 0.0, %v2251
      %v2253 = vpop.f32.mrf.mxu0
      %2254 = vmatprep.mubr.f32.mxu0 0.0
      %2255 = vmatmul.mubr.f32.gmra.mxu0 %v2037
      %v2256 = vpop.f32.mrf.mxu0
      %v2257 = vadd.f32 0.0, %v2256
      %v2258 = vpop.f32.mrf.mxu0
      %2259 = vmatprep.mubr.f32.mxu0 0.0
      %2260 = vmatmul.mubr.f32.gmra.mxu0 %v2040
      %v2261 = vpop.f32.mrf.mxu0
      %v2262 = vadd.f32 0.0, %v2261
      %v2263 = vpop.f32.mrf.mxu0
      %2264 = vmatprep.mubr.f32.mxu0 0.0
      %2265 = vmatmul.mubr.f32.gmra.mxu0 %v2043
      %v2266 = vpop.f32.mrf.mxu0
      %v2267 = vadd.f32 0.0, %v2266
      %v2268 = vpop.f32.mrf.mxu0
      %2269 = vdwg.mxu0
      %v2270 = vadd.f32 %v1883, %v2112
      %v2271 = vadd.f32 %v1884, %v2117
      %v2272 = vadd.f32 %v1885, %v2122
      %v2273 = vadd.f32 %v1886, %v2127
      %v2274 = vadd.f32 %v1887, %v2132
      %v2275 = vadd.f32 %v1888, %v2137
      %v2276 = vadd.f32 %v1889, %v2142
      %v2277 = vadd.f32 %v1890, %v2147
      %v2278 = vadd.f32 %v1891, %v2152
      %v2279 = vadd.f32 %v1892, %v2157
      %v2280 = vadd.f32 %v1893, %v2162
      %v2281 = vadd.f32 %v1894, %v2167
      %v2282 = vadd.f32 %v1895, %v2172
      %v2283 = vadd.f32 %v1896, %v2177
      %v2284 = vadd.f32 %v1897, %v2182
      %v2285 = vadd.f32 %v1898, %v2187
      %v2286 = vadd.f32 %v1899, %v2192
      %v2287 = vadd.f32 %v1900, %v2197
      %v2288 = vadd.f32 %v1901, %v2202
      %v2289 = vadd.f32 %v1902, %v2207
      %v2290 = vadd.f32 %v1903, %v2212
      %v2291 = vadd.f32 %v1904, %v2217
      %v2292 = vadd.f32 %v1905, %v2222
      %v2293 = vadd.f32 %v1906, %v2227
      %v2294 = vadd.f32 %v1907, %v2232
      %v2295 = vadd.f32 %v1908, %v2237
      %v2296 = vadd.f32 %v1909, %v2242
      %v2297 = vadd.f32 %v1910, %v2247
      %v2298 = vadd.f32 %v1911, %v2252
      %v2299 = vadd.f32 %v1912, %v2257
      %v2300 = vadd.f32 %v1913, %v2262
      %v2301 = vadd.f32 %v1914, %v2267
      %v2302 = vld [vmem:[%s1527 + $0x2] sm:$0xff]
      %v2303 = vld [vmem:[%s1527 + $0xa] sm:$0xff]
      %v2304 = vld [vmem:[%s1527 + $0x1a] sm:$0xff]
      %v2305 = vld [vmem:[%s1527 + $0x22] sm:$0xff]
      %v2306 = vld [vmem:[%s1527 + $0x32] sm:$0xff]
      %v2307 = vld [vmem:[%s1527 + $0x3a] sm:$0xff]
      %v2308 = vld [vmem:[%s1527 + $0x4a] sm:$0xff]
      %v2309 = vld [vmem:[%s1527 + $0x52] sm:$0xff]
      %v2310 = vld [vmem:[%s1527 + $0x62] sm:$0xff]
      %v2311 = vld [vmem:[%s1527 + $0x6a] sm:$0xff]
      %v2312 = vld [vmem:[%s1527 + $0x7a] sm:$0xff]
      %v2313 = vld [vmem:[%s1527 + $0x82] sm:$0xff]
      %v2314 = vld [vmem:[%s1527 + $0x92] sm:$0xff]
      %v2315 = vld [vmem:[%s1527 + $0x9a] sm:$0xff]
      %v2316 = vld [vmem:[%s1527 + $0xaa] sm:$0xff]
      %v2317 = vld [vmem:[%s1527 + $0xb2] sm:$0xff]
      %v2318 = vld [vmem:[%s1527 + $0xc2] sm:$0xff]
      %v2319 = vld [vmem:[%s1527 + $0xca] sm:$0xff]
      %v2320 = vld [vmem:[%s1527 + $0xda] sm:$0xff]
      %v2321 = vld [vmem:[%s1527 + $0xe2] sm:$0xff]
      %v2322 = vld [vmem:[%s1527 + $0xf2] sm:$0xff]
      %v2323 = vld [vmem:[%s1527 + $0xfa] sm:$0xff]
      %v2324 = vld [vmem:[%s1527 + $0x10a] sm:$0xff]
      %v2325 = vld [vmem:[%s1527 + $0x112] sm:$0xff]
      %v2326 = vld [vmem:[%s1527 + $0x122] sm:$0xff]
      %v2327 = vld [vmem:[%s1527 + $0x12a] sm:$0xff]
      %v2328 = vld [vmem:[%s1527 + $0x13a] sm:$0xff]
      %v2329 = vld [vmem:[%s1527 + $0x142] sm:$0xff]
      %v2330 = vld [vmem:[%s1527 + $0x152] sm:$0xff]
      %v2331 = vld [vmem:[%s1527 + $0x15a] sm:$0xff]
      %v2332 = vld [vmem:[%s1527 + $0x16a] sm:$0xff]
      %v2333 = vld [vmem:[%s1527 + $0x172] sm:$0xff]
      %s2334 = scalar_lea.vmem %s2, 40
      %v2335 = vld [vmem:[%s2334] sm:$0xff]
      %v2337 = vsel %vm368, %v2302, 0
      %v2340 = vsel %vm368, %v2303, 0
      %v2343 = vsel %vm368, %v2304, 0
      %v2346 = vsel %vm368, %v2305, 0
      %v2349 = vsel %vm368, %v2306, 0
      %v2352 = vsel %vm368, %v2307, 0
      %v2355 = vsel %vm368, %v2308, 0
      %v2358 = vsel %vm368, %v2309, 0
      %v2361 = vsel %vm368, %v2310, 0
      %v2364 = vsel %vm368, %v2311, 0
      %v2367 = vsel %vm368, %v2312, 0
      %v2370 = vsel %vm368, %v2313, 0
      %v2373 = vsel %vm368, %v2314, 0
      %v2376 = vsel %vm368, %v2315, 0
      %v2379 = vsel %vm368, %v2316, 0
      %v2382 = vsel %vm368, %v2317, 0
      %v2385 = vsel %vm368, %v2318, 0
      %v2388 = vsel %vm368, %v2319, 0
      %v2391 = vsel %vm368, %v2320, 0
      %v2394 = vsel %vm368, %v2321, 0
      %v2397 = vsel %vm368, %v2322, 0
      %v2400 = vsel %vm368, %v2323, 0
      %v2403 = vsel %vm368, %v2324, 0
      %v2406 = vsel %vm368, %v2325, 0
      %v2409 = vsel %vm368, %v2326, 0
      %v2412 = vsel %vm368, %v2327, 0
      %v2415 = vsel %vm368, %v2328, 0
      %v2418 = vsel %vm368, %v2329, 0
      %v2421 = vsel %vm368, %v2330, 0
      %v2424 = vsel %vm368, %v2331, 0
      %v2427 = vsel %vm368, %v2332, 0
      %v2430 = vsel %vm368, %v2333, 0
      %2432 = vmatprep.subr.mxu0 0.0
      %2433 = vmatpush1.msra.mxu0 0.0
      %2434 = vmatprep.subr.mxu0 0.0
      %2435 = vmatpush1.msra.mxu0 0.0
      %2436 = vmatprep.subr.mxu0 0.0
      %2437 = vmatpush1.msra.mxu0 0.0
      %2438 = vmatprep.subr.mxu0 0.0
      %2439 = vmatpush1.msra.mxu0 0.0
      %2440 = vmatprep.subr.mxu0 0.0
      %2441 = vmatpush1.msra.mxu0 0.0
      %2442 = vmatprep.subr.mxu0 0.0
      %2443 = vmatpush1.msra.mxu0 0.0
      %2444 = vmatprep.subr.mxu0 0.0
      %2445 = vmatpush1.msra.mxu0 0.0
      %2446 = vmatprep.subr.mxu0 0.0
      %2447 = vmatpush1.msra.mxu0 0.0
      %2448 = vmatprep.subr.mxu0 0.0
      %2449 = vmatpush1.msra.mxu0 0.0
      %2450 = vmatprep.subr.mxu0 0.0
      %2451 = vmatpush1.msra.mxu0 0.0
      %2452 = vmatprep.subr.mxu0 0.0
      %2453 = vmatpush1.msra.mxu0 0.0
      %2454 = vmatprep.subr.mxu0 0.0
      %2455 = vmatpush1.msra.mxu0 0.0
      %2456 = vmatprep.subr.mxu0 0.0
      %2457 = vmatpush1.msra.mxu0 0.0
      %2458 = vmatprep.subr.mxu0 0.0
      %2459 = vmatpush1.msra.mxu0 0.0
      %2460 = vmatprep.subr.mxu0 0.0
      %2461 = vmatpush1.msra.mxu0 0.0
      %2462 = vmatprep.subr.mxu0 0.0
      %2463 = vmatpush1.msra.mxu0 %v2335
      %2464 = vmatprep.subr.mxu0 0.0
      %2465 = vmatpush2.msra.mxu0 0.0
      %2466 = vmatprep.subr.mxu0 0.0
      %2467 = vmatpush2.msra.mxu0 0.0
      %2468 = vmatprep.subr.mxu0 0.0
      %2469 = vmatpush2.msra.mxu0 0.0
      %2470 = vmatprep.subr.mxu0 0.0
      %2471 = vmatpush2.msra.mxu0 0.0
      %2472 = vmatprep.subr.mxu0 0.0
      %2473 = vmatpush2.msra.mxu0 0.0
      %2474 = vmatprep.subr.mxu0 0.0
      %2475 = vmatpush2.msra.mxu0 0.0
      %2476 = vmatprep.subr.mxu0 0.0
      %2477 = vmatpush2.msra.mxu0 0.0
      %2478 = vmatprep.subr.mxu0 0.0
      %2479 = vmatpush2.msra.mxu0 0.0
      %2480 = vmatprep.subr.mxu0 0.0
      %2481 = vmatpush2.msra.mxu0 0.0
      %2482 = vmatprep.subr.mxu0 0.0
      %2483 = vmatpush2.msra.mxu0 0.0
      %2484 = vmatprep.subr.mxu0 0.0
      %2485 = vmatpush2.msra.mxu0 0.0
      %2486 = vmatprep.subr.mxu0 0.0
      %2487 = vmatpush2.msra.mxu0 0.0
      %2488 = vmatprep.subr.mxu0 0.0
      %2489 = vmatpush2.msra.mxu0 0.0
      %2490 = vmatprep.subr.mxu0 0.0
      %2491 = vmatpush2.msra.mxu0 0.0
      %2492 = vmatprep.subr.mxu0 0.0
      %2493 = vmatpush2.msra.mxu0 0.0
      %2494 = vmatprep.subr.mxu0 0.0
      %2495 = vmatpush2.msra.mxu0 0.0
      %2496 = vmatprep.mubr.f32.mxu0 0.0
      %2497 = vmatmul.mubr.f32.gmra.mxu0 %v2337
      %v2498 = vpop.f32.mrf.mxu0
      %v2499 = vadd.f32 0.0, %v2498
      %v2500 = vpop.f32.mrf.mxu0
      %2501 = vmatprep.mubr.f32.mxu0 0.0
      %2502 = vmatmul.mubr.f32.gmra.mxu0 %v2340
      %v2503 = vpop.f32.mrf.mxu0
      %v2504 = vadd.f32 0.0, %v2503
      %v2505 = vpop.f32.mrf.mxu0
      %2506 = vmatprep.mubr.f32.mxu0 0.0
      %2507 = vmatmul.mubr.f32.gmra.mxu0 %v2343
      %v2508 = vpop.f32.mrf.mxu0
      %v2509 = vadd.f32 0.0, %v2508
      %v2510 = vpop.f32.mrf.mxu0
      %2511 = vmatprep.mubr.f32.mxu0 0.0
      %2512 = vmatmul.mubr.f32.gmra.mxu0 %v2346
      %v2513 = vpop.f32.mrf.mxu0
      %v2514 = vadd.f32 0.0, %v2513
      %v2515 = vpop.f32.mrf.mxu0
      %2516 = vmatprep.mubr.f32.mxu0 0.0
      %2517 = vmatmul.mubr.f32.gmra.mxu0 %v2349
      %v2518 = vpop.f32.mrf.mxu0
      %v2519 = vadd.f32 0.0, %v2518
      %v2520 = vpop.f32.mrf.mxu0
      %2521 = vmatprep.mubr.f32.mxu0 0.0
      %2522 = vmatmul.mubr.f32.gmra.mxu0 %v2352
      %v2523 = vpop.f32.mrf.mxu0
      %v2524 = vadd.f32 0.0, %v2523
      %v2525 = vpop.f32.mrf.mxu0
      %2526 = vmatprep.mubr.f32.mxu0 0.0
      %2527 = vmatmul.mubr.f32.gmra.mxu0 %v2355
      %v2528 = vpop.f32.mrf.mxu0
      %v2529 = vadd.f32 0.0, %v2528
      %v2530 = vpop.f32.mrf.mxu0
      %2531 = vmatprep.mubr.f32.mxu0 0.0
      %2532 = vmatmul.mubr.f32.gmra.mxu0 %v2358
      %v2533 = vpop.f32.mrf.mxu0
      %v2534 = vadd.f32 0.0, %v2533
      %v2535 = vpop.f32.mrf.mxu0
      %2536 = vmatprep.mubr.f32.mxu0 0.0
      %2537 = vmatmul.mubr.f32.gmra.mxu0 %v2361
      %v2538 = vpop.f32.mrf.mxu0
      %v2539 = vadd.f32 0.0, %v2538
      %v2540 = vpop.f32.mrf.mxu0
      %2541 = vmatprep.mubr.f32.mxu0 0.0
      %2542 = vmatmul.mubr.f32.gmra.mxu0 %v2364
      %v2543 = vpop.f32.mrf.mxu0
      %v2544 = vadd.f32 0.0, %v2543
      %v2545 = vpop.f32.mrf.mxu0
      %2546 = vmatprep.mubr.f32.mxu0 0.0
      %2547 = vmatmul.mubr.f32.gmra.mxu0 %v2367
      %v2548 = vpop.f32.mrf.mxu0
      %v2549 = vadd.f32 0.0, %v2548
      %v2550 = vpop.f32.mrf.mxu0
      %2551 = vmatprep.mubr.f32.mxu0 0.0
      %2552 = vmatmul.mubr.f32.gmra.mxu0 %v2370
      %v2553 = vpop.f32.mrf.mxu0
      %v2554 = vadd.f32 0.0, %v2553
      %v2555 = vpop.f32.mrf.mxu0
      %2556 = vmatprep.mubr.f32.mxu0 0.0
      %2557 = vmatmul.mubr.f32.gmra.mxu0 %v2373
      %v2558 = vpop.f32.mrf.mxu0
      %v2559 = vadd.f32 0.0, %v2558
      %v2560 = vpop.f32.mrf.mxu0
      %2561 = vmatprep.mubr.f32.mxu0 0.0
      %2562 = vmatmul.mubr.f32.gmra.mxu0 %v2376
      %v2563 = vpop.f32.mrf.mxu0
      %v2564 = vadd.f32 0.0, %v2563
      %v2565 = vpop.f32.mrf.mxu0
      %2566 = vmatprep.mubr.f32.mxu0 0.0
      %2567 = vmatmul.mubr.f32.gmra.mxu0 %v2379
      %v2568 = vpop.f32.mrf.mxu0
      %v2569 = vadd.f32 0.0, %v2568
      %v2570 = vpop.f32.mrf.mxu0
      %2571 = vmatprep.mubr.f32.mxu0 0.0
      %2572 = vmatmul.mubr.f32.gmra.mxu0 %v2382
      %v2573 = vpop.f32.mrf.mxu0
      %v2574 = vadd.f32 0.0, %v2573
      %v2575 = vpop.f32.mrf.mxu0
      %2576 = vmatprep.mubr.f32.mxu0 0.0
      %2577 = vmatmul.mubr.f32.gmra.mxu0 %v2385
      %v2578 = vpop.f32.mrf.mxu0
      %v2579 = vadd.f32 0.0, %v2578
      %v2580 = vpop.f32.mrf.mxu0
      %2581 = vmatprep.mubr.f32.mxu0 0.0
      %2582 = vmatmul.mubr.f32.gmra.mxu0 %v2388
      %v2583 = vpop.f32.mrf.mxu0
      %v2584 = vadd.f32 0.0, %v2583
      %v2585 = vpop.f32.mrf.mxu0
      %2586 = vmatprep.mubr.f32.mxu0 0.0
      %2587 = vmatmul.mubr.f32.gmra.mxu0 %v2391
      %v2588 = vpop.f32.mrf.mxu0
      %v2589 = vadd.f32 0.0, %v2588
      %v2590 = vpop.f32.mrf.mxu0
      %2591 = vmatprep.mubr.f32.mxu0 0.0
      %2592 = vmatmul.mubr.f32.gmra.mxu0 %v2394
      %v2593 = vpop.f32.mrf.mxu0
      %v2594 = vadd.f32 0.0, %v2593
      %v2595 = vpop.f32.mrf.mxu0
      %2596 = vmatprep.mubr.f32.mxu0 0.0
      %2597 = vmatmul.mubr.f32.gmra.mxu0 %v2397
      %v2598 = vpop.f32.mrf.mxu0
      %v2599 = vadd.f32 0.0, %v2598
      %v2600 = vpop.f32.mrf.mxu0
      %2601 = vmatprep.mubr.f32.mxu0 0.0
      %2602 = vmatmul.mubr.f32.gmra.mxu0 %v2400
      %v2603 = vpop.f32.mrf.mxu0
      %v2604 = vadd.f32 0.0, %v2603
      %v2605 = vpop.f32.mrf.mxu0
      %2606 = vmatprep.mubr.f32.mxu0 0.0
      %2607 = vmatmul.mubr.f32.gmra.mxu0 %v2403
      %v2608 = vpop.f32.mrf.mxu0
      %v2609 = vadd.f32 0.0, %v2608
      %v2610 = vpop.f32.mrf.mxu0
      %2611 = vmatprep.mubr.f32.mxu0 0.0
      %2612 = vmatmul.mubr.f32.gmra.mxu0 %v2406
      %v2613 = vpop.f32.mrf.mxu0
      %v2614 = vadd.f32 0.0, %v2613
      %v2615 = vpop.f32.mrf.mxu0
      %2616 = vmatprep.mubr.f32.mxu0 0.0
      %2617 = vmatmul.mubr.f32.gmra.mxu0 %v2409
      %v2618 = vpop.f32.mrf.mxu0
      %v2619 = vadd.f32 0.0, %v2618
      %v2620 = vpop.f32.mrf.mxu0
      %2621 = vmatprep.mubr.f32.mxu0 0.0
      %2622 = vmatmul.mubr.f32.gmra.mxu0 %v2412
      %v2623 = vpop.f32.mrf.mxu0
      %v2624 = vadd.f32 0.0, %v2623
      %v2625 = vpop.f32.mrf.mxu0
      %2626 = vmatprep.mubr.f32.mxu0 0.0
      %2627 = vmatmul.mubr.f32.gmra.mxu0 %v2415
      %v2628 = vpop.f32.mrf.mxu0
      %v2629 = vadd.f32 0.0, %v2628
      %v2630 = vpop.f32.mrf.mxu0
      %2631 = vmatprep.mubr.f32.mxu0 0.0
      %2632 = vmatmul.mubr.f32.gmra.mxu0 %v2418
      %v2633 = vpop.f32.mrf.mxu0
      %v2634 = vadd.f32 0.0, %v2633
      %v2635 = vpop.f32.mrf.mxu0
      %2636 = vmatprep.mubr.f32.mxu0 0.0
      %2637 = vmatmul.mubr.f32.gmra.mxu0 %v2421
      %v2638 = vpop.f32.mrf.mxu0
      %v2639 = vadd.f32 0.0, %v2638
      %v2640 = vpop.f32.mrf.mxu0
      %2641 = vmatprep.mubr.f32.mxu0 0.0
      %2642 = vmatmul.mubr.f32.gmra.mxu0 %v2424
      %v2643 = vpop.f32.mrf.mxu0
      %v2644 = vadd.f32 0.0, %v2643
      %v2645 = vpop.f32.mrf.mxu0
      %2646 = vmatprep.mubr.f32.mxu0 0.0
      %2647 = vmatmul.mubr.f32.gmra.mxu0 %v2427
      %v2648 = vpop.f32.mrf.mxu0
      %v2649 = vadd.f32 0.0, %v2648
      %v2650 = vpop.f32.mrf.mxu0
      %2651 = vmatprep.mubr.f32.mxu0 0.0
      %2652 = vmatmul.mubr.f32.gmra.mxu0 %v2430
      %v2653 = vpop.f32.mrf.mxu0
      %v2654 = vadd.f32 0.0, %v2653
      %v2655 = vpop.f32.mrf.mxu0
      %2656 = vdwg.mxu0
      %v2657 = vadd.f32 %v2270, %v2499
      %v2658 = vadd.f32 %v2271, %v2504
      %v2659 = vadd.f32 %v2272, %v2509
      %v2660 = vadd.f32 %v2273, %v2514
      %v2661 = vadd.f32 %v2274, %v2519
      %v2662 = vadd.f32 %v2275, %v2524
      %v2663 = vadd.f32 %v2276, %v2529
      %v2664 = vadd.f32 %v2277, %v2534
      %v2665 = vadd.f32 %v2278, %v2539
      %v2666 = vadd.f32 %v2279, %v2544
      %v2667 = vadd.f32 %v2280, %v2549
      %v2668 = vadd.f32 %v2281, %v2554
      %v2669 = vadd.f32 %v2282, %v2559
      %v2670 = vadd.f32 %v2283, %v2564
      %v2671 = vadd.f32 %v2284, %v2569
      %v2672 = vadd.f32 %v2285, %v2574
      %v2673 = vadd.f32 %v2286, %v2579
      %v2674 = vadd.f32 %v2287, %v2584
      %v2675 = vadd.f32 %v2288, %v2589
      %v2676 = vadd.f32 %v2289, %v2594
      %v2677 = vadd.f32 %v2290, %v2599
      %v2678 = vadd.f32 %v2291, %v2604
      %v2679 = vadd.f32 %v2292, %v2609
      %v2680 = vadd.f32 %v2293, %v2614
      %v2681 = vadd.f32 %v2294, %v2619
      %v2682 = vadd.f32 %v2295, %v2624
      %v2683 = vadd.f32 %v2296, %v2629
      %v2684 = vadd.f32 %v2297, %v2634
      %v2685 = vadd.f32 %v2298, %v2639
      %v2686 = vadd.f32 %v2299, %v2644
      %v2687 = vadd.f32 %v2300, %v2649
      %v2688 = vadd.f32 %v2301, %v2654
      %s2689 = scalar_lea.vmem [#allocation2], 48
      %v2690 = vld [vmem:[%s2689] sm:$0xff]
      %v2691 = vld [vmem:[%s2689 + $0x8] sm:$0xff]
      %v2692 = vld [vmem:[%s2689 + $0x18] sm:$0xff]
      %v2693 = vld [vmem:[%s2689 + $0x20] sm:$0xff]
      %v2694 = vld [vmem:[%s2689 + $0x30] sm:$0xff]
      %v2695 = vld [vmem:[%s2689 + $0x38] sm:$0xff]
      %v2696 = vld [vmem:[%s2689 + $0x48] sm:$0xff]
      %v2697 = vld [vmem:[%s2689 + $0x50] sm:$0xff]
      %v2698 = vld [vmem:[%s2689 + $0x60] sm:$0xff]
      %v2699 = vld [vmem:[%s2689 + $0x68] sm:$0xff]
      %v2700 = vld [vmem:[%s2689 + $0x78] sm:$0xff]
      %v2701 = vld [vmem:[%s2689 + $0x80] sm:$0xff]
      %v2702 = vld [vmem:[%s2689 + $0x90] sm:$0xff]
      %v2703 = vld [vmem:[%s2689 + $0x98] sm:$0xff]
      %v2704 = vld [vmem:[%s2689 + $0xa8] sm:$0xff]
      %v2705 = vld [vmem:[%s2689 + $0xb0] sm:$0xff]
      %v2706 = vld [vmem:[%s2689 + $0xc0] sm:$0xff]
      %v2707 = vld [vmem:[%s2689 + $0xc8] sm:$0xff]
      %v2708 = vld [vmem:[%s2689 + $0xd8] sm:$0xff]
      %v2709 = vld [vmem:[%s2689 + $0xe0] sm:$0xff]
      %v2710 = vld [vmem:[%s2689 + $0xf0] sm:$0xff]
      %v2711 = vld [vmem:[%s2689 + $0xf8] sm:$0xff]
      %v2712 = vld [vmem:[%s2689 + $0x108] sm:$0xff]
      %v2713 = vld [vmem:[%s2689 + $0x110] sm:$0xff]
      %v2714 = vld [vmem:[%s2689 + $0x120] sm:$0xff]
      %v2715 = vld [vmem:[%s2689 + $0x128] sm:$0xff]
      %v2716 = vld [vmem:[%s2689 + $0x138] sm:$0xff]
      %v2717 = vld [vmem:[%s2689 + $0x140] sm:$0xff]
      %v2718 = vld [vmem:[%s2689 + $0x150] sm:$0xff]
      %v2719 = vld [vmem:[%s2689 + $0x158] sm:$0xff]
      %v2720 = vld [vmem:[%s2689 + $0x168] sm:$0xff]
      %v2721 = vld [vmem:[%s2689 + $0x170] sm:$0xff]
      %s2722 = scalar_lea.vmem %s2, 48
      %v2723 = vld [vmem:[%s2722] sm:$0xff]
      %v2725 = vsel %vm368, %v2690, 0
      %v2728 = vsel %vm368, %v2691, 0
      %v2731 = vsel %vm368, %v2692, 0
      %v2734 = vsel %vm368, %v2693, 0
      %v2737 = vsel %vm368, %v2694, 0
      %v2740 = vsel %vm368, %v2695, 0
      %v2743 = vsel %vm368, %v2696, 0
      %v2746 = vsel %vm368, %v2697, 0
      %v2749 = vsel %vm368, %v2698, 0
      %v2752 = vsel %vm368, %v2699, 0
      %v2755 = vsel %vm368, %v2700, 0
      %v2758 = vsel %vm368, %v2701, 0
      %v2761 = vsel %vm368, %v2702, 0
      %v2764 = vsel %vm368, %v2703, 0
      %v2767 = vsel %vm368, %v2704, 0
      %v2770 = vsel %vm368, %v2705, 0
      %v2773 = vsel %vm368, %v2706, 0
      %v2776 = vsel %vm368, %v2707, 0
      %v2779 = vsel %vm368, %v2708, 0
      %v2782 = vsel %vm368, %v2709, 0
      %v2785 = vsel %vm368, %v2710, 0
      %v2788 = vsel %vm368, %v2711, 0
      %v2791 = vsel %vm368, %v2712, 0
      %v2794 = vsel %vm368, %v2713, 0
      %v2797 = vsel %vm368, %v2714, 0
      %v2800 = vsel %vm368, %v2715, 0
      %v2803 = vsel %vm368, %v2716, 0
      %v2806 = vsel %vm368, %v2717, 0
      %v2809 = vsel %vm368, %v2718, 0
      %v2812 = vsel %vm368, %v2719, 0
      %v2815 = vsel %vm368, %v2720, 0
      %v2818 = vsel %vm368, %v2721, 0
      %2820 = vmatprep.subr.mxu0 0.0
      %2821 = vmatpush1.msra.mxu0 0.0
      %2822 = vmatprep.subr.mxu0 0.0
      %2823 = vmatpush1.msra.mxu0 0.0
      %2824 = vmatprep.subr.mxu0 0.0
      %2825 = vmatpush1.msra.mxu0 0.0
      %2826 = vmatprep.subr.mxu0 0.0
      %2827 = vmatpush1.msra.mxu0 0.0
      %2828 = vmatprep.subr.mxu0 0.0
      %2829 = vmatpush1.msra.mxu0 0.0
      %2830 = vmatprep.subr.mxu0 0.0
      %2831 = vmatpush1.msra.mxu0 0.0
      %2832 = vmatprep.subr.mxu0 0.0
      %2833 = vmatpush1.msra.mxu0 0.0
      %2834 = vmatprep.subr.mxu0 0.0
      %2835 = vmatpush1.msra.mxu0 0.0
      %2836 = vmatprep.subr.mxu0 0.0
      %2837 = vmatpush1.msra.mxu0 0.0
      %2838 = vmatprep.subr.mxu0 0.0
      %2839 = vmatpush1.msra.mxu0 0.0
      %2840 = vmatprep.subr.mxu0 0.0
      %2841 = vmatpush1.msra.mxu0 0.0
      %2842 = vmatprep.subr.mxu0 0.0
      %2843 = vmatpush1.msra.mxu0 0.0
      %2844 = vmatprep.subr.mxu0 0.0
      %2845 = vmatpush1.msra.mxu0 0.0
      %2846 = vmatprep.subr.mxu0 0.0
      %2847 = vmatpush1.msra.mxu0 0.0
      %2848 = vmatprep.subr.mxu0 0.0
      %2849 = vmatpush1.msra.mxu0 0.0
      %2850 = vmatprep.subr.mxu0 0.0
      %2851 = vmatpush1.msra.mxu0 %v2723
      %2852 = vmatprep.subr.mxu0 0.0
      %2853 = vmatpush2.msra.mxu0 0.0
      %2854 = vmatprep.subr.mxu0 0.0
      %2855 = vmatpush2.msra.mxu0 0.0
      %2856 = vmatprep.subr.mxu0 0.0
      %2857 = vmatpush2.msra.mxu0 0.0
      %2858 = vmatprep.subr.mxu0 0.0
      %2859 = vmatpush2.msra.mxu0 0.0
      %2860 = vmatprep.subr.mxu0 0.0
      %2861 = vmatpush2.msra.mxu0 0.0
      %2862 = vmatprep.subr.mxu0 0.0
      %2863 = vmatpush2.msra.mxu0 0.0
      %2864 = vmatprep.subr.mxu0 0.0
      %2865 = vmatpush2.msra.mxu0 0.0
      %2866 = vmatprep.subr.mxu0 0.0
      %2867 = vmatpush2.msra.mxu0 0.0
      %2868 = vmatprep.subr.mxu0 0.0
      %2869 = vmatpush2.msra.mxu0 0.0
      %2870 = vmatprep.subr.mxu0 0.0
      %2871 = vmatpush2.msra.mxu0 0.0
      %2872 = vmatprep.subr.mxu0 0.0
      %2873 = vmatpush2.msra.mxu0 0.0
      %2874 = vmatprep.subr.mxu0 0.0
      %2875 = vmatpush2.msra.mxu0 0.0
      %2876 = vmatprep.subr.mxu0 0.0
      %2877 = vmatpush2.msra.mxu0 0.0
      %2878 = vmatprep.subr.mxu0 0.0
      %2879 = vmatpush2.msra.mxu0 0.0
      %2880 = vmatprep.subr.mxu0 0.0
      %2881 = vmatpush2.msra.mxu0 0.0
      %2882 = vmatprep.subr.mxu0 0.0
      %2883 = vmatpush2.msra.mxu0 0.0
      %2884 = vmatprep.mubr.f32.mxu0 0.0
      %2885 = vmatmul.mubr.f32.gmra.mxu0 %v2725
      %v2886 = vpop.f32.mrf.mxu0
      %v2887 = vadd.f32 0.0, %v2886
      %v2888 = vpop.f32.mrf.mxu0
      %2889 = vmatprep.mubr.f32.mxu0 0.0
      %2890 = vmatmul.mubr.f32.gmra.mxu0 %v2728
      %v2891 = vpop.f32.mrf.mxu0
      %v2892 = vadd.f32 0.0, %v2891
      %v2893 = vpop.f32.mrf.mxu0
      %2894 = vmatprep.mubr.f32.mxu0 0.0
      %2895 = vmatmul.mubr.f32.gmra.mxu0 %v2731
      %v2896 = vpop.f32.mrf.mxu0
      %v2897 = vadd.f32 0.0, %v2896
      %v2898 = vpop.f32.mrf.mxu0
      %2899 = vmatprep.mubr.f32.mxu0 0.0
      %2900 = vmatmul.mubr.f32.gmra.mxu0 %v2734
      %v2901 = vpop.f32.mrf.mxu0
      %v2902 = vadd.f32 0.0, %v2901
      %v2903 = vpop.f32.mrf.mxu0
      %2904 = vmatprep.mubr.f32.mxu0 0.0
      %2905 = vmatmul.mubr.f32.gmra.mxu0 %v2737
      %v2906 = vpop.f32.mrf.mxu0
      %v2907 = vadd.f32 0.0, %v2906
      %v2908 = vpop.f32.mrf.mxu0
      %2909 = vmatprep.mubr.f32.mxu0 0.0
      %2910 = vmatmul.mubr.f32.gmra.mxu0 %v2740
      %v2911 = vpop.f32.mrf.mxu0
      %v2912 = vadd.f32 0.0, %v2911
      %v2913 = vpop.f32.mrf.mxu0
      %2914 = vmatprep.mubr.f32.mxu0 0.0
      %2915 = vmatmul.mubr.f32.gmra.mxu0 %v2743
      %v2916 = vpop.f32.mrf.mxu0
      %v2917 = vadd.f32 0.0, %v2916
      %v2918 = vpop.f32.mrf.mxu0
      %2919 = vmatprep.mubr.f32.mxu0 0.0
      %2920 = vmatmul.mubr.f32.gmra.mxu0 %v2746
      %v2921 = vpop.f32.mrf.mxu0
      %v2922 = vadd.f32 0.0, %v2921
      %v2923 = vpop.f32.mrf.mxu0
      %2924 = vmatprep.mubr.f32.mxu0 0.0
      %2925 = vmatmul.mubr.f32.gmra.mxu0 %v2749
      %v2926 = vpop.f32.mrf.mxu0
      %v2927 = vadd.f32 0.0, %v2926
      %v2928 = vpop.f32.mrf.mxu0
      %2929 = vmatprep.mubr.f32.mxu0 0.0
      %2930 = vmatmul.mubr.f32.gmra.mxu0 %v2752
      %v2931 = vpop.f32.mrf.mxu0
      %v2932 = vadd.f32 0.0, %v2931
      %v2933 = vpop.f32.mrf.mxu0
      %2934 = vmatprep.mubr.f32.mxu0 0.0
      %2935 = vmatmul.mubr.f32.gmra.mxu0 %v2755
      %v2936 = vpop.f32.mrf.mxu0
      %v2937 = vadd.f32 0.0, %v2936
      %v2938 = vpop.f32.mrf.mxu0
      %2939 = vmatprep.mubr.f32.mxu0 0.0
      %2940 = vmatmul.mubr.f32.gmra.mxu0 %v2758
      %v2941 = vpop.f32.mrf.mxu0
      %v2942 = vadd.f32 0.0, %v2941
      %v2943 = vpop.f32.mrf.mxu0
      %2944 = vmatprep.mubr.f32.mxu0 0.0
      %2945 = vmatmul.mubr.f32.gmra.mxu0 %v2761
      %v2946 = vpop.f32.mrf.mxu0
      %v2947 = vadd.f32 0.0, %v2946
      %v2948 = vpop.f32.mrf.mxu0
      %2949 = vmatprep.mubr.f32.mxu0 0.0
      %2950 = vmatmul.mubr.f32.gmra.mxu0 %v2764
      %v2951 = vpop.f32.mrf.mxu0
      %v2952 = vadd.f32 0.0, %v2951
      %v2953 = vpop.f32.mrf.mxu0
      %2954 = vmatprep.mubr.f32.mxu0 0.0
      %2955 = vmatmul.mubr.f32.gmra.mxu0 %v2767
      %v2956 = vpop.f32.mrf.mxu0
      %v2957 = vadd.f32 0.0, %v2956
      %v2958 = vpop.f32.mrf.mxu0
      %2959 = vmatprep.mubr.f32.mxu0 0.0
      %2960 = vmatmul.mubr.f32.gmra.mxu0 %v2770
      %v2961 = vpop.f32.mrf.mxu0
      %v2962 = vadd.f32 0.0, %v2961
      %v2963 = vpop.f32.mrf.mxu0
      %2964 = vmatprep.mubr.f32.mxu0 0.0
      %2965 = vmatmul.mubr.f32.gmra.mxu0 %v2773
      %v2966 = vpop.f32.mrf.mxu0
      %v2967 = vadd.f32 0.0, %v2966
      %v2968 = vpop.f32.mrf.mxu0
      %2969 = vmatprep.mubr.f32.mxu0 0.0
      %2970 = vmatmul.mubr.f32.gmra.mxu0 %v2776
      %v2971 = vpop.f32.mrf.mxu0
      %v2972 = vadd.f32 0.0, %v2971
      %v2973 = vpop.f32.mrf.mxu0
      %2974 = vmatprep.mubr.f32.mxu0 0.0
      %2975 = vmatmul.mubr.f32.gmra.mxu0 %v2779
      %v2976 = vpop.f32.mrf.mxu0
      %v2977 = vadd.f32 0.0, %v2976
      %v2978 = vpop.f32.mrf.mxu0
      %2979 = vmatprep.mubr.f32.mxu0 0.0
      %2980 = vmatmul.mubr.f32.gmra.mxu0 %v2782
      %v2981 = vpop.f32.mrf.mxu0
      %v2982 = vadd.f32 0.0, %v2981
      %v2983 = vpop.f32.mrf.mxu0
      %2984 = vmatprep.mubr.f32.mxu0 0.0
      %2985 = vmatmul.mubr.f32.gmra.mxu0 %v2785
      %v2986 = vpop.f32.mrf.mxu0
      %v2987 = vadd.f32 0.0, %v2986
      %v2988 = vpop.f32.mrf.mxu0
      %2989 = vmatprep.mubr.f32.mxu0 0.0
      %2990 = vmatmul.mubr.f32.gmra.mxu0 %v2788
      %v2991 = vpop.f32.mrf.mxu0
      %v2992 = vadd.f32 0.0, %v2991
      %v2993 = vpop.f32.mrf.mxu0
      %2994 = vmatprep.mubr.f32.mxu0 0.0
      %2995 = vmatmul.mubr.f32.gmra.mxu0 %v2791
      %v2996 = vpop.f32.mrf.mxu0
      %v2997 = vadd.f32 0.0, %v2996
      %v2998 = vpop.f32.mrf.mxu0
      %2999 = vmatprep.mubr.f32.mxu0 0.0
      %3000 = vmatmul.mubr.f32.gmra.mxu0 %v2794
      %v3001 = vpop.f32.mrf.mxu0
      %v3002 = vadd.f32 0.0, %v3001
      %v3003 = vpop.f32.mrf.mxu0
      %3004 = vmatprep.mubr.f32.mxu0 0.0
      %3005 = vmatmul.mubr.f32.gmra.mxu0 %v2797
      %v3006 = vpop.f32.mrf.mxu0
      %v3007 = vadd.f32 0.0, %v3006
      %v3008 = vpop.f32.mrf.mxu0
      %3009 = vmatprep.mubr.f32.mxu0 0.0
      %3010 = vmatmul.mubr.f32.gmra.mxu0 %v2800
      %v3011 = vpop.f32.mrf.mxu0
      %v3012 = vadd.f32 0.0, %v3011
      %v3013 = vpop.f32.mrf.mxu0
      %3014 = vmatprep.mubr.f32.mxu0 0.0
      %3015 = vmatmul.mubr.f32.gmra.mxu0 %v2803
      %v3016 = vpop.f32.mrf.mxu0
      %v3017 = vadd.f32 0.0, %v3016
      %v3018 = vpop.f32.mrf.mxu0
      %3019 = vmatprep.mubr.f32.mxu0 0.0
      %3020 = vmatmul.mubr.f32.gmra.mxu0 %v2806
      %v3021 = vpop.f32.mrf.mxu0
      %v3022 = vadd.f32 0.0, %v3021
      %v3023 = vpop.f32.mrf.mxu0
      %3024 = vmatprep.mubr.f32.mxu0 0.0
      %3025 = vmatmul.mubr.f32.gmra.mxu0 %v2809
      %v3026 = vpop.f32.mrf.mxu0
      %v3027 = vadd.f32 0.0, %v3026
      %v3028 = vpop.f32.mrf.mxu0
      %3029 = vmatprep.mubr.f32.mxu0 0.0
      %3030 = vmatmul.mubr.f32.gmra.mxu0 %v2812
      %v3031 = vpop.f32.mrf.mxu0
      %v3032 = vadd.f32 0.0, %v3031
      %v3033 = vpop.f32.mrf.mxu0
      %3034 = vmatprep.mubr.f32.mxu0 0.0
      %3035 = vmatmul.mubr.f32.gmra.mxu0 %v2815
      %v3036 = vpop.f32.mrf.mxu0
      %v3037 = vadd.f32 0.0, %v3036
      %v3038 = vpop.f32.mrf.mxu0
      %3039 = vmatprep.mubr.f32.mxu0 0.0
      %3040 = vmatmul.mubr.f32.gmra.mxu0 %v2818
      %v3041 = vpop.f32.mrf.mxu0
      %v3042 = vadd.f32 0.0, %v3041
      %v3043 = vpop.f32.mrf.mxu0
      %3044 = vdwg.mxu0
      %v3045 = vadd.f32 %v2657, %v2887
      %v3046 = vadd.f32 %v2658, %v2892
      %v3047 = vadd.f32 %v2659, %v2897
      %v3048 = vadd.f32 %v2660, %v2902
      %v3049 = vadd.f32 %v2661, %v2907
      %v3050 = vadd.f32 %v2662, %v2912
      %v3051 = vadd.f32 %v2663, %v2917
      %v3052 = vadd.f32 %v2664, %v2922
      %v3053 = vadd.f32 %v2665, %v2927
      %v3054 = vadd.f32 %v2666, %v2932
      %v3055 = vadd.f32 %v2667, %v2937
      %v3056 = vadd.f32 %v2668, %v2942
      %v3057 = vadd.f32 %v2669, %v2947
      %v3058 = vadd.f32 %v2670, %v2952
      %v3059 = vadd.f32 %v2671, %v2957
      %v3060 = vadd.f32 %v2672, %v2962
      %v3061 = vadd.f32 %v2673, %v2967
      %v3062 = vadd.f32 %v2674, %v2972
      %v3063 = vadd.f32 %v2675, %v2977
      %v3064 = vadd.f32 %v2676, %v2982
      %v3065 = vadd.f32 %v2677, %v2987
      %v3066 = vadd.f32 %v2678, %v2992
      %v3067 = vadd.f32 %v2679, %v2997
      %v3068 = vadd.f32 %v2680, %v3002
      %v3069 = vadd.f32 %v2681, %v3007
      %v3070 = vadd.f32 %v2682, %v3012
      %v3071 = vadd.f32 %v2683, %v3017
      %v3072 = vadd.f32 %v2684, %v3022
      %v3073 = vadd.f32 %v2685, %v3027
      %v3074 = vadd.f32 %v2686, %v3032
      %v3075 = vadd.f32 %v2687, %v3037
      %v3076 = vadd.f32 %v2688, %v3042
      %v3077 = vld [vmem:[%s2689 + $0x1] sm:$0xff]
      %v3078 = vld [vmem:[%s2689 + $0x9] sm:$0xff]
      %v3079 = vld [vmem:[%s2689 + $0x19] sm:$0xff]
      %v3080 = vld [vmem:[%s2689 + $0x21] sm:$0xff]
      %v3081 = vld [vmem:[%s2689 + $0x31] sm:$0xff]
      %v3082 = vld [vmem:[%s2689 + $0x39] sm:$0xff]
      %v3083 = vld [vmem:[%s2689 + $0x49] sm:$0xff]
      %v3084 = vld [vmem:[%s2689 + $0x51] sm:$0xff]
      %v3085 = vld [vmem:[%s2689 + $0x61] sm:$0xff]
      %v3086 = vld [vmem:[%s2689 + $0x69] sm:$0xff]
      %v3087 = vld [vmem:[%s2689 + $0x79] sm:$0xff]
      %v3088 = vld [vmem:[%s2689 + $0x81] sm:$0xff]
      %v3089 = vld [vmem:[%s2689 + $0x91] sm:$0xff]
      %v3090 = vld [vmem:[%s2689 + $0x99] sm:$0xff]
      %v3091 = vld [vmem:[%s2689 + $0xa9] sm:$0xff]
      %v3092 = vld [vmem:[%s2689 + $0xb1] sm:$0xff]
      %v3093 = vld [vmem:[%s2689 + $0xc1] sm:$0xff]
      %v3094 = vld [vmem:[%s2689 + $0xc9] sm:$0xff]
      %v3095 = vld [vmem:[%s2689 + $0xd9] sm:$0xff]
      %v3096 = vld [vmem:[%s2689 + $0xe1] sm:$0xff]
      %v3097 = vld [vmem:[%s2689 + $0xf1] sm:$0xff]
      %v3098 = vld [vmem:[%s2689 + $0xf9] sm:$0xff]
      %v3099 = vld [vmem:[%s2689 + $0x109] sm:$0xff]
      %v3100 = vld [vmem:[%s2689 + $0x111] sm:$0xff]
      %v3101 = vld [vmem:[%s2689 + $0x121] sm:$0xff]
      %v3102 = vld [vmem:[%s2689 + $0x129] sm:$0xff]
      %v3103 = vld [vmem:[%s2689 + $0x139] sm:$0xff]
      %v3104 = vld [vmem:[%s2689 + $0x141] sm:$0xff]
      %v3105 = vld [vmem:[%s2689 + $0x151] sm:$0xff]
      %v3106 = vld [vmem:[%s2689 + $0x159] sm:$0xff]
      %v3107 = vld [vmem:[%s2689 + $0x169] sm:$0xff]
      %v3108 = vld [vmem:[%s2689 + $0x171] sm:$0xff]
      %s3109 = scalar_lea.vmem %s2, 56
      %v3110 = vld [vmem:[%s3109] sm:$0xff]
      %v3112 = vsel %vm368, %v3077, 0
      %v3115 = vsel %vm368, %v3078, 0
      %v3118 = vsel %vm368, %v3079, 0
      %v3121 = vsel %vm368, %v3080, 0
      %v3124 = vsel %vm368, %v3081, 0
      %v3127 = vsel %vm368, %v3082, 0
      %v3130 = vsel %vm368, %v3083, 0
      %v3133 = vsel %vm368, %v3084, 0
      %v3136 = vsel %vm368, %v3085, 0
      %v3139 = vsel %vm368, %v3086, 0
      %v3142 = vsel %vm368, %v3087, 0
      %v3145 = vsel %vm368, %v3088, 0
      %v3148 = vsel %vm368, %v3089, 0
      %v3151 = vsel %vm368, %v3090, 0
      %v3154 = vsel %vm368, %v3091, 0
      %v3157 = vsel %vm368, %v3092, 0
      %v3160 = vsel %vm368, %v3093, 0
      %v3163 = vsel %vm368, %v3094, 0
      %v3166 = vsel %vm368, %v3095, 0
      %v3169 = vsel %vm368, %v3096, 0
      %v3172 = vsel %vm368, %v3097, 0
      %v3175 = vsel %vm368, %v3098, 0
      %v3178 = vsel %vm368, %v3099, 0
      %v3181 = vsel %vm368, %v3100, 0
      %v3184 = vsel %vm368, %v3101, 0
      %v3187 = vsel %vm368, %v3102, 0
      %v3190 = vsel %vm368, %v3103, 0
      %v3193 = vsel %vm368, %v3104, 0
      %v3196 = vsel %vm368, %v3105, 0
      %v3199 = vsel %vm368, %v3106, 0
      %v3202 = vsel %vm368, %v3107, 0
      %v3205 = vsel %vm368, %v3108, 0
      %3207 = vmatprep.subr.mxu0 0.0
      %3208 = vmatpush1.msra.mxu0 0.0
      %3209 = vmatprep.subr.mxu0 0.0
      %3210 = vmatpush1.msra.mxu0 0.0
      %3211 = vmatprep.subr.mxu0 0.0
      %3212 = vmatpush1.msra.mxu0 0.0
      %3213 = vmatprep.subr.mxu0 0.0
      %3214 = vmatpush1.msra.mxu0 0.0
      %3215 = vmatprep.subr.mxu0 0.0
      %3216 = vmatpush1.msra.mxu0 0.0
      %3217 = vmatprep.subr.mxu0 0.0
      %3218 = vmatpush1.msra.mxu0 0.0
      %3219 = vmatprep.subr.mxu0 0.0
      %3220 = vmatpush1.msra.mxu0 0.0
      %3221 = vmatprep.subr.mxu0 0.0
      %3222 = vmatpush1.msra.mxu0 0.0
      %3223 = vmatprep.subr.mxu0 0.0
      %3224 = vmatpush1.msra.mxu0 0.0
      %3225 = vmatprep.subr.mxu0 0.0
      %3226 = vmatpush1.msra.mxu0 0.0
      %3227 = vmatprep.subr.mxu0 0.0
      %3228 = vmatpush1.msra.mxu0 0.0
      %3229 = vmatprep.subr.mxu0 0.0
      %3230 = vmatpush1.msra.mxu0 0.0
      %3231 = vmatprep.subr.mxu0 0.0
      %3232 = vmatpush1.msra.mxu0 0.0
      %3233 = vmatprep.subr.mxu0 0.0
      %3234 = vmatpush1.msra.mxu0 0.0
      %3235 = vmatprep.subr.mxu0 0.0
      %3236 = vmatpush1.msra.mxu0 0.0
      %3237 = vmatprep.subr.mxu0 0.0
      %3238 = vmatpush1.msra.mxu0 %v3110
      %3239 = vmatprep.subr.mxu0 0.0
      %3240 = vmatpush2.msra.mxu0 0.0
      %3241 = vmatprep.subr.mxu0 0.0
      %3242 = vmatpush2.msra.mxu0 0.0
      %3243 = vmatprep.subr.mxu0 0.0
      %3244 = vmatpush2.msra.mxu0 0.0
      %3245 = vmatprep.subr.mxu0 0.0
      %3246 = vmatpush2.msra.mxu0 0.0
      %3247 = vmatprep.subr.mxu0 0.0
      %3248 = vmatpush2.msra.mxu0 0.0
      %3249 = vmatprep.subr.mxu0 0.0
      %3250 = vmatpush2.msra.mxu0 0.0
      %3251 = vmatprep.subr.mxu0 0.0
      %3252 = vmatpush2.msra.mxu0 0.0
      %3253 = vmatprep.subr.mxu0 0.0
      %3254 = vmatpush2.msra.mxu0 0.0
      %3255 = vmatprep.subr.mxu0 0.0
      %3256 = vmatpush2.msra.mxu0 0.0
      %3257 = vmatprep.subr.mxu0 0.0
      %3258 = vmatpush2.msra.mxu0 0.0
      %3259 = vmatprep.subr.mxu0 0.0
      %3260 = vmatpush2.msra.mxu0 0.0
      %3261 = vmatprep.subr.mxu0 0.0
      %3262 = vmatpush2.msra.mxu0 0.0
      %3263 = vmatprep.subr.mxu0 0.0
      %3264 = vmatpush2.msra.mxu0 0.0
      %3265 = vmatprep.subr.mxu0 0.0
      %3266 = vmatpush2.msra.mxu0 0.0
      %3267 = vmatprep.subr.mxu0 0.0
      %3268 = vmatpush2.msra.mxu0 0.0
      %3269 = vmatprep.subr.mxu0 0.0
      %3270 = vmatpush2.msra.mxu0 0.0
      %3271 = vmatprep.mubr.f32.mxu0 0.0
      %3272 = vmatmul.mubr.f32.gmra.mxu0 %v3112
      %v3273 = vpop.f32.mrf.mxu0
      %v3274 = vadd.f32 0.0, %v3273
      %v3275 = vpop.f32.mrf.mxu0
      %3276 = vmatprep.mubr.f32.mxu0 0.0
      %3277 = vmatmul.mubr.f32.gmra.mxu0 %v3115
      %v3278 = vpop.f32.mrf.mxu0
      %v3279 = vadd.f32 0.0, %v3278
      %v3280 = vpop.f32.mrf.mxu0
      %3281 = vmatprep.mubr.f32.mxu0 0.0
      %3282 = vmatmul.mubr.f32.gmra.mxu0 %v3118
      %v3283 = vpop.f32.mrf.mxu0
      %v3284 = vadd.f32 0.0, %v3283
      %v3285 = vpop.f32.mrf.mxu0
      %3286 = vmatprep.mubr.f32.mxu0 0.0
      %3287 = vmatmul.mubr.f32.gmra.mxu0 %v3121
      %v3288 = vpop.f32.mrf.mxu0
      %v3289 = vadd.f32 0.0, %v3288
      %v3290 = vpop.f32.mrf.mxu0
      %3291 = vmatprep.mubr.f32.mxu0 0.0
      %3292 = vmatmul.mubr.f32.gmra.mxu0 %v3124
      %v3293 = vpop.f32.mrf.mxu0
      %v3294 = vadd.f32 0.0, %v3293
      %v3295 = vpop.f32.mrf.mxu0
      %3296 = vmatprep.mubr.f32.mxu0 0.0
      %3297 = vmatmul.mubr.f32.gmra.mxu0 %v3127
      %v3298 = vpop.f32.mrf.mxu0
      %v3299 = vadd.f32 0.0, %v3298
      %v3300 = vpop.f32.mrf.mxu0
      %3301 = vmatprep.mubr.f32.mxu0 0.0
      %3302 = vmatmul.mubr.f32.gmra.mxu0 %v3130
      %v3303 = vpop.f32.mrf.mxu0
      %v3304 = vadd.f32 0.0, %v3303
      %v3305 = vpop.f32.mrf.mxu0
      %3306 = vmatprep.mubr.f32.mxu0 0.0
      %3307 = vmatmul.mubr.f32.gmra.mxu0 %v3133
      %v3308 = vpop.f32.mrf.mxu0
      %v3309 = vadd.f32 0.0, %v3308
      %v3310 = vpop.f32.mrf.mxu0
      %3311 = vmatprep.mubr.f32.mxu0 0.0
      %3312 = vmatmul.mubr.f32.gmra.mxu0 %v3136
      %v3313 = vpop.f32.mrf.mxu0
      %v3314 = vadd.f32 0.0, %v3313
      %v3315 = vpop.f32.mrf.mxu0
      %3316 = vmatprep.mubr.f32.mxu0 0.0
      %3317 = vmatmul.mubr.f32.gmra.mxu0 %v3139
      %v3318 = vpop.f32.mrf.mxu0
      %v3319 = vadd.f32 0.0, %v3318
      %v3320 = vpop.f32.mrf.mxu0
      %3321 = vmatprep.mubr.f32.mxu0 0.0
      %3322 = vmatmul.mubr.f32.gmra.mxu0 %v3142
      %v3323 = vpop.f32.mrf.mxu0
      %v3324 = vadd.f32 0.0, %v3323
      %v3325 = vpop.f32.mrf.mxu0
      %3326 = vmatprep.mubr.f32.mxu0 0.0
      %3327 = vmatmul.mubr.f32.gmra.mxu0 %v3145
      %v3328 = vpop.f32.mrf.mxu0
      %v3329 = vadd.f32 0.0, %v3328
      %v3330 = vpop.f32.mrf.mxu0
      %3331 = vmatprep.mubr.f32.mxu0 0.0
      %3332 = vmatmul.mubr.f32.gmra.mxu0 %v3148
      %v3333 = vpop.f32.mrf.mxu0
      %v3334 = vadd.f32 0.0, %v3333
      %v3335 = vpop.f32.mrf.mxu0
      %3336 = vmatprep.mubr.f32.mxu0 0.0
      %3337 = vmatmul.mubr.f32.gmra.mxu0 %v3151
      %v3338 = vpop.f32.mrf.mxu0
      %v3339 = vadd.f32 0.0, %v3338
      %v3340 = vpop.f32.mrf.mxu0
      %3341 = vmatprep.mubr.f32.mxu0 0.0
      %3342 = vmatmul.mubr.f32.gmra.mxu0 %v3154
      %v3343 = vpop.f32.mrf.mxu0
      %v3344 = vadd.f32 0.0, %v3343
      %v3345 = vpop.f32.mrf.mxu0
      %3346 = vmatprep.mubr.f32.mxu0 0.0
      %3347 = vmatmul.mubr.f32.gmra.mxu0 %v3157
      %v3348 = vpop.f32.mrf.mxu0
      %v3349 = vadd.f32 0.0, %v3348
      %v3350 = vpop.f32.mrf.mxu0
      %3351 = vmatprep.mubr.f32.mxu0 0.0
      %3352 = vmatmul.mubr.f32.gmra.mxu0 %v3160
      %v3353 = vpop.f32.mrf.mxu0
      %v3354 = vadd.f32 0.0, %v3353
      %v3355 = vpop.f32.mrf.mxu0
      %3356 = vmatprep.mubr.f32.mxu0 0.0
      %3357 = vmatmul.mubr.f32.gmra.mxu0 %v3163
      %v3358 = vpop.f32.mrf.mxu0
      %v3359 = vadd.f32 0.0, %v3358
      %v3360 = vpop.f32.mrf.mxu0
      %3361 = vmatprep.mubr.f32.mxu0 0.0
      %3362 = vmatmul.mubr.f32.gmra.mxu0 %v3166
      %v3363 = vpop.f32.mrf.mxu0
      %v3364 = vadd.f32 0.0, %v3363
      %v3365 = vpop.f32.mrf.mxu0
      %3366 = vmatprep.mubr.f32.mxu0 0.0
      %3367 = vmatmul.mubr.f32.gmra.mxu0 %v3169
      %v3368 = vpop.f32.mrf.mxu0
      %v3369 = vadd.f32 0.0, %v3368
      %v3370 = vpop.f32.mrf.mxu0
      %3371 = vmatprep.mubr.f32.mxu0 0.0
      %3372 = vmatmul.mubr.f32.gmra.mxu0 %v3172
      %v3373 = vpop.f32.mrf.mxu0
      %v3374 = vadd.f32 0.0, %v3373
      %v3375 = vpop.f32.mrf.mxu0
      %3376 = vmatprep.mubr.f32.mxu0 0.0
      %3377 = vmatmul.mubr.f32.gmra.mxu0 %v3175
      %v3378 = vpop.f32.mrf.mxu0
      %v3379 = vadd.f32 0.0, %v3378
      %v3380 = vpop.f32.mrf.mxu0
      %3381 = vmatprep.mubr.f32.mxu0 0.0
      %3382 = vmatmul.mubr.f32.gmra.mxu0 %v3178
      %v3383 = vpop.f32.mrf.mxu0
      %v3384 = vadd.f32 0.0, %v3383
      %v3385 = vpop.f32.mrf.mxu0
      %3386 = vmatprep.mubr.f32.mxu0 0.0
      %3387 = vmatmul.mubr.f32.gmra.mxu0 %v3181
      %v3388 = vpop.f32.mrf.mxu0
      %v3389 = vadd.f32 0.0, %v3388
      %v3390 = vpop.f32.mrf.mxu0
      %3391 = vmatprep.mubr.f32.mxu0 0.0
      %3392 = vmatmul.mubr.f32.gmra.mxu0 %v3184
      %v3393 = vpop.f32.mrf.mxu0
      %v3394 = vadd.f32 0.0, %v3393
      %v3395 = vpop.f32.mrf.mxu0
      %3396 = vmatprep.mubr.f32.mxu0 0.0
      %3397 = vmatmul.mubr.f32.gmra.mxu0 %v3187
      %v3398 = vpop.f32.mrf.mxu0
      %v3399 = vadd.f32 0.0, %v3398
      %v3400 = vpop.f32.mrf.mxu0
      %3401 = vmatprep.mubr.f32.mxu0 0.0
      %3402 = vmatmul.mubr.f32.gmra.mxu0 %v3190
      %v3403 = vpop.f32.mrf.mxu0
      %v3404 = vadd.f32 0.0, %v3403
      %v3405 = vpop.f32.mrf.mxu0
      %3406 = vmatprep.mubr.f32.mxu0 0.0
      %3407 = vmatmul.mubr.f32.gmra.mxu0 %v3193
      %v3408 = vpop.f32.mrf.mxu0
      %v3409 = vadd.f32 0.0, %v3408
      %v3410 = vpop.f32.mrf.mxu0
      %3411 = vmatprep.mubr.f32.mxu0 0.0
      %3412 = vmatmul.mubr.f32.gmra.mxu0 %v3196
      %v3413 = vpop.f32.mrf.mxu0
      %v3414 = vadd.f32 0.0, %v3413
      %v3415 = vpop.f32.mrf.mxu0
      %3416 = vmatprep.mubr.f32.mxu0 0.0
      %3417 = vmatmul.mubr.f32.gmra.mxu0 %v3199
      %v3418 = vpop.f32.mrf.mxu0
      %v3419 = vadd.f32 0.0, %v3418
      %v3420 = vpop.f32.mrf.mxu0
      %3421 = vmatprep.mubr.f32.mxu0 0.0
      %3422 = vmatmul.mubr.f32.gmra.mxu0 %v3202
      %v3423 = vpop.f32.mrf.mxu0
      %v3424 = vadd.f32 0.0, %v3423
      %v3425 = vpop.f32.mrf.mxu0
      %3426 = vmatprep.mubr.f32.mxu0 0.0
      %3427 = vmatmul.mubr.f32.gmra.mxu0 %v3205
      %v3428 = vpop.f32.mrf.mxu0
      %v3429 = vadd.f32 0.0, %v3428
      %v3430 = vpop.f32.mrf.mxu0
      %3431 = vdwg.mxu0
      %v3432 = vadd.f32 %v3045, %v3274
      %v3433 = vadd.f32 %v3046, %v3279
      %v3434 = vadd.f32 %v3047, %v3284
      %v3435 = vadd.f32 %v3048, %v3289
      %v3436 = vadd.f32 %v3049, %v3294
      %v3437 = vadd.f32 %v3050, %v3299
      %v3438 = vadd.f32 %v3051, %v3304
      %v3439 = vadd.f32 %v3052, %v3309
      %v3440 = vadd.f32 %v3053, %v3314
      %v3441 = vadd.f32 %v3054, %v3319
      %v3442 = vadd.f32 %v3055, %v3324
      %v3443 = vadd.f32 %v3056, %v3329
      %v3444 = vadd.f32 %v3057, %v3334
      %v3445 = vadd.f32 %v3058, %v3339
      %v3446 = vadd.f32 %v3059, %v3344
      %v3447 = vadd.f32 %v3060, %v3349
      %v3448 = vadd.f32 %v3061, %v3354
      %v3449 = vadd.f32 %v3062, %v3359
      %v3450 = vadd.f32 %v3063, %v3364
      %v3451 = vadd.f32 %v3064, %v3369
      %v3452 = vadd.f32 %v3065, %v3374
      %v3453 = vadd.f32 %v3066, %v3379
      %v3454 = vadd.f32 %v3067, %v3384
      %v3455 = vadd.f32 %v3068, %v3389
      %v3456 = vadd.f32 %v3069, %v3394
      %v3457 = vadd.f32 %v3070, %v3399
      %v3458 = vadd.f32 %v3071, %v3404
      %v3459 = vadd.f32 %v3072, %v3409
      %v3460 = vadd.f32 %v3073, %v3414
      %v3461 = vadd.f32 %v3074, %v3419
      %v3462 = vadd.f32 %v3075, %v3424
      %v3463 = vadd.f32 %v3076, %v3429
      %v3464 = vld [vmem:[%s2689 + $0x2] sm:$0xff]
      %v3465 = vld [vmem:[%s2689 + $0xa] sm:$0xff]
      %v3466 = vld [vmem:[%s2689 + $0x1a] sm:$0xff]
      %v3467 = vld [vmem:[%s2689 + $0x22] sm:$0xff]
      %v3468 = vld [vmem:[%s2689 + $0x32] sm:$0xff]
      %v3469 = vld [vmem:[%s2689 + $0x3a] sm:$0xff]
      %v3470 = vld [vmem:[%s2689 + $0x4a] sm:$0xff]
      %v3471 = vld [vmem:[%s2689 + $0x52] sm:$0xff]
      %v3472 = vld [vmem:[%s2689 + $0x62] sm:$0xff]
      %v3473 = vld [vmem:[%s2689 + $0x6a] sm:$0xff]
      %v3474 = vld [vmem:[%s2689 + $0x7a] sm:$0xff]
      %v3475 = vld [vmem:[%s2689 + $0x82] sm:$0xff]
      %v3476 = vld [vmem:[%s2689 + $0x92] sm:$0xff]
      %v3477 = vld [vmem:[%s2689 + $0x9a] sm:$0xff]
      %v3478 = vld [vmem:[%s2689 + $0xaa] sm:$0xff]
      %v3479 = vld [vmem:[%s2689 + $0xb2] sm:$0xff]
      %v3480 = vld [vmem:[%s2689 + $0xc2] sm:$0xff]
      %v3481 = vld [vmem:[%s2689 + $0xca] sm:$0xff]
      %v3482 = vld [vmem:[%s2689 + $0xda] sm:$0xff]
      %v3483 = vld [vmem:[%s2689 + $0xe2] sm:$0xff]
      %v3484 = vld [vmem:[%s2689 + $0xf2] sm:$0xff]
      %v3485 = vld [vmem:[%s2689 + $0xfa] sm:$0xff]
      %v3486 = vld [vmem:[%s2689 + $0x10a] sm:$0xff]
      %v3487 = vld [vmem:[%s2689 + $0x112] sm:$0xff]
      %v3488 = vld [vmem:[%s2689 + $0x122] sm:$0xff]
      %v3489 = vld [vmem:[%s2689 + $0x12a] sm:$0xff]
      %v3490 = vld [vmem:[%s2689 + $0x13a] sm:$0xff]
      %v3491 = vld [vmem:[%s2689 + $0x142] sm:$0xff]
      %v3492 = vld [vmem:[%s2689 + $0x152] sm:$0xff]
      %v3493 = vld [vmem:[%s2689 + $0x15a] sm:$0xff]
      %v3494 = vld [vmem:[%s2689 + $0x16a] sm:$0xff]
      %v3495 = vld [vmem:[%s2689 + $0x172] sm:$0xff]
      %s3496 = scalar_lea.vmem %s2, 64
      %v3497 = vld [vmem:[%s3496] sm:$0xff]
      %v3499 = vsel %vm368, %v3464, 0
      %v3502 = vsel %vm368, %v3465, 0
      %v3505 = vsel %vm368, %v3466, 0
      %v3508 = vsel %vm368, %v3467, 0
      %v3511 = vsel %vm368, %v3468, 0
      %v3514 = vsel %vm368, %v3469, 0
      %v3517 = vsel %vm368, %v3470, 0
      %v3520 = vsel %vm368, %v3471, 0
      %v3523 = vsel %vm368, %v3472, 0
      %v3526 = vsel %vm368, %v3473, 0
      %v3529 = vsel %vm368, %v3474, 0
      %v3532 = vsel %vm368, %v3475, 0
      %v3535 = vsel %vm368, %v3476, 0
      %v3538 = vsel %vm368, %v3477, 0
      %v3541 = vsel %vm368, %v3478, 0
      %v3544 = vsel %vm368, %v3479, 0
      %v3547 = vsel %vm368, %v3480, 0
      %v3550 = vsel %vm368, %v3481, 0
      %v3553 = vsel %vm368, %v3482, 0
      %v3556 = vsel %vm368, %v3483, 0
      %v3559 = vsel %vm368, %v3484, 0
      %v3562 = vsel %vm368, %v3485, 0
      %v3565 = vsel %vm368, %v3486, 0
      %v3568 = vsel %vm368, %v3487, 0
      %v3571 = vsel %vm368, %v3488, 0
      %v3574 = vsel %vm368, %v3489, 0
      %v3577 = vsel %vm368, %v3490, 0
      %v3580 = vsel %vm368, %v3491, 0
      %v3583 = vsel %vm368, %v3492, 0
      %v3586 = vsel %vm368, %v3493, 0
      %v3589 = vsel %vm368, %v3494, 0
      %v3592 = vsel %vm368, %v3495, 0
      %3594 = vmatprep.subr.mxu0 0.0
      %3595 = vmatpush1.msra.mxu0 0.0
      %3596 = vmatprep.subr.mxu0 0.0
      %3597 = vmatpush1.msra.mxu0 0.0
      %3598 = vmatprep.subr.mxu0 0.0
      %3599 = vmatpush1.msra.mxu0 0.0
      %3600 = vmatprep.subr.mxu0 0.0
      %3601 = vmatpush1.msra.mxu0 0.0
      %3602 = vmatprep.subr.mxu0 0.0
      %3603 = vmatpush1.msra.mxu0 0.0
      %3604 = vmatprep.subr.mxu0 0.0
      %3605 = vmatpush1.msra.mxu0 0.0
      %3606 = vmatprep.subr.mxu0 0.0
      %3607 = vmatpush1.msra.mxu0 0.0
      %3608 = vmatprep.subr.mxu0 0.0
      %3609 = vmatpush1.msra.mxu0 0.0
      %3610 = vmatprep.subr.mxu0 0.0
      %3611 = vmatpush1.msra.mxu0 0.0
      %3612 = vmatprep.subr.mxu0 0.0
      %3613 = vmatpush1.msra.mxu0 0.0
      %3614 = vmatprep.subr.mxu0 0.0
      %3615 = vmatpush1.msra.mxu0 0.0
      %3616 = vmatprep.subr.mxu0 0.0
      %3617 = vmatpush1.msra.mxu0 0.0
      %3618 = vmatprep.subr.mxu0 0.0
      %3619 = vmatpush1.msra.mxu0 0.0
      %3620 = vmatprep.subr.mxu0 0.0
      %3621 = vmatpush1.msra.mxu0 0.0
      %3622 = vmatprep.subr.mxu0 0.0
      %3623 = vmatpush1.msra.mxu0 0.0
      %3624 = vmatprep.subr.mxu0 0.0
      %3625 = vmatpush1.msra.mxu0 %v3497
      %3626 = vmatprep.subr.mxu0 0.0
      %3627 = vmatpush2.msra.mxu0 0.0
      %3628 = vmatprep.subr.mxu0 0.0
      %3629 = vmatpush2.msra.mxu0 0.0
      %3630 = vmatprep.subr.mxu0 0.0
      %3631 = vmatpush2.msra.mxu0 0.0
      %3632 = vmatprep.subr.mxu0 0.0
      %3633 = vmatpush2.msra.mxu0 0.0
      %3634 = vmatprep.subr.mxu0 0.0
      %3635 = vmatpush2.msra.mxu0 0.0
      %3636 = vmatprep.subr.mxu0 0.0
      %3637 = vmatpush2.msra.mxu0 0.0
      %3638 = vmatprep.subr.mxu0 0.0
      %3639 = vmatpush2.msra.mxu0 0.0
      %3640 = vmatprep.subr.mxu0 0.0
      %3641 = vmatpush2.msra.mxu0 0.0
      %3642 = vmatprep.subr.mxu0 0.0
      %3643 = vmatpush2.msra.mxu0 0.0
      %3644 = vmatprep.subr.mxu0 0.0
      %3645 = vmatpush2.msra.mxu0 0.0
      %3646 = vmatprep.subr.mxu0 0.0
      %3647 = vmatpush2.msra.mxu0 0.0
      %3648 = vmatprep.subr.mxu0 0.0
      %3649 = vmatpush2.msra.mxu0 0.0
      %3650 = vmatprep.subr.mxu0 0.0
      %3651 = vmatpush2.msra.mxu0 0.0
      %3652 = vmatprep.subr.mxu0 0.0
      %3653 = vmatpush2.msra.mxu0 0.0
      %3654 = vmatprep.subr.mxu0 0.0
      %3655 = vmatpush2.msra.mxu0 0.0
      %3656 = vmatprep.subr.mxu0 0.0
      %3657 = vmatpush2.msra.mxu0 0.0
      %3658 = vmatprep.mubr.f32.mxu0 0.0
      %3659 = vmatmul.mubr.f32.gmra.mxu0 %v3499
      %v3660 = vpop.f32.mrf.mxu0
      %v3661 = vadd.f32 0.0, %v3660
      %v3662 = vpop.f32.mrf.mxu0
      %3663 = vmatprep.mubr.f32.mxu0 0.0
      %3664 = vmatmul.mubr.f32.gmra.mxu0 %v3502
      %v3665 = vpop.f32.mrf.mxu0
      %v3666 = vadd.f32 0.0, %v3665
      %v3667 = vpop.f32.mrf.mxu0
      %3668 = vmatprep.mubr.f32.mxu0 0.0
      %3669 = vmatmul.mubr.f32.gmra.mxu0 %v3505
      %v3670 = vpop.f32.mrf.mxu0
      %v3671 = vadd.f32 0.0, %v3670
      %v3672 = vpop.f32.mrf.mxu0
      %3673 = vmatprep.mubr.f32.mxu0 0.0
      %3674 = vmatmul.mubr.f32.gmra.mxu0 %v3508
      %v3675 = vpop.f32.mrf.mxu0
      %v3676 = vadd.f32 0.0, %v3675
      %v3677 = vpop.f32.mrf.mxu0
      %3678 = vmatprep.mubr.f32.mxu0 0.0
      %3679 = vmatmul.mubr.f32.gmra.mxu0 %v3511
      %v3680 = vpop.f32.mrf.mxu0
      %v3681 = vadd.f32 0.0, %v3680
      %v3682 = vpop.f32.mrf.mxu0
      %3683 = vmatprep.mubr.f32.mxu0 0.0
      %3684 = vmatmul.mubr.f32.gmra.mxu0 %v3514
      %v3685 = vpop.f32.mrf.mxu0
      %v3686 = vadd.f32 0.0, %v3685
      %v3687 = vpop.f32.mrf.mxu0
      %3688 = vmatprep.mubr.f32.mxu0 0.0
      %3689 = vmatmul.mubr.f32.gmra.mxu0 %v3517
      %v3690 = vpop.f32.mrf.mxu0
      %v3691 = vadd.f32 0.0, %v3690
      %v3692 = vpop.f32.mrf.mxu0
      %3693 = vmatprep.mubr.f32.mxu0 0.0
      %3694 = vmatmul.mubr.f32.gmra.mxu0 %v3520
      %v3695 = vpop.f32.mrf.mxu0
      %v3696 = vadd.f32 0.0, %v3695
      %v3697 = vpop.f32.mrf.mxu0
      %3698 = vmatprep.mubr.f32.mxu0 0.0
      %3699 = vmatmul.mubr.f32.gmra.mxu0 %v3523
      %v3700 = vpop.f32.mrf.mxu0
      %v3701 = vadd.f32 0.0, %v3700
      %v3702 = vpop.f32.mrf.mxu0
      %3703 = vmatprep.mubr.f32.mxu0 0.0
      %3704 = vmatmul.mubr.f32.gmra.mxu0 %v3526
      %v3705 = vpop.f32.mrf.mxu0
      %v3706 = vadd.f32 0.0, %v3705
      %v3707 = vpop.f32.mrf.mxu0
      %3708 = vmatprep.mubr.f32.mxu0 0.0
      %3709 = vmatmul.mubr.f32.gmra.mxu0 %v3529
      %v3710 = vpop.f32.mrf.mxu0
      %v3711 = vadd.f32 0.0, %v3710
      %v3712 = vpop.f32.mrf.mxu0
      %3713 = vmatprep.mubr.f32.mxu0 0.0
      %3714 = vmatmul.mubr.f32.gmra.mxu0 %v3532
      %v3715 = vpop.f32.mrf.mxu0
      %v3716 = vadd.f32 0.0, %v3715
      %v3717 = vpop.f32.mrf.mxu0
      %3718 = vmatprep.mubr.f32.mxu0 0.0
      %3719 = vmatmul.mubr.f32.gmra.mxu0 %v3535
      %v3720 = vpop.f32.mrf.mxu0
      %v3721 = vadd.f32 0.0, %v3720
      %v3722 = vpop.f32.mrf.mxu0
      %3723 = vmatprep.mubr.f32.mxu0 0.0
      %3724 = vmatmul.mubr.f32.gmra.mxu0 %v3538
      %v3725 = vpop.f32.mrf.mxu0
      %v3726 = vadd.f32 0.0, %v3725
      %v3727 = vpop.f32.mrf.mxu0
      %3728 = vmatprep.mubr.f32.mxu0 0.0
      %3729 = vmatmul.mubr.f32.gmra.mxu0 %v3541
      %v3730 = vpop.f32.mrf.mxu0
      %v3731 = vadd.f32 0.0, %v3730
      %v3732 = vpop.f32.mrf.mxu0
      %3733 = vmatprep.mubr.f32.mxu0 0.0
      %3734 = vmatmul.mubr.f32.gmra.mxu0 %v3544
      %v3735 = vpop.f32.mrf.mxu0
      %v3736 = vadd.f32 0.0, %v3735
      %v3737 = vpop.f32.mrf.mxu0
      %3738 = vmatprep.mubr.f32.mxu0 0.0
      %3739 = vmatmul.mubr.f32.gmra.mxu0 %v3547
      %v3740 = vpop.f32.mrf.mxu0
      %v3741 = vadd.f32 0.0, %v3740
      %v3742 = vpop.f32.mrf.mxu0
      %3743 = vmatprep.mubr.f32.mxu0 0.0
      %3744 = vmatmul.mubr.f32.gmra.mxu0 %v3550
      %v3745 = vpop.f32.mrf.mxu0
      %v3746 = vadd.f32 0.0, %v3745
      %v3747 = vpop.f32.mrf.mxu0
      %3748 = vmatprep.mubr.f32.mxu0 0.0
      %3749 = vmatmul.mubr.f32.gmra.mxu0 %v3553
      %v3750 = vpop.f32.mrf.mxu0
      %v3751 = vadd.f32 0.0, %v3750
      %v3752 = vpop.f32.mrf.mxu0
      %3753 = vmatprep.mubr.f32.mxu0 0.0
      %3754 = vmatmul.mubr.f32.gmra.mxu0 %v3556
      %v3755 = vpop.f32.mrf.mxu0
      %v3756 = vadd.f32 0.0, %v3755
      %v3757 = vpop.f32.mrf.mxu0
      %3758 = vmatprep.mubr.f32.mxu0 0.0
      %3759 = vmatmul.mubr.f32.gmra.mxu0 %v3559
      %v3760 = vpop.f32.mrf.mxu0
      %v3761 = vadd.f32 0.0, %v3760
      %v3762 = vpop.f32.mrf.mxu0
      %3763 = vmatprep.mubr.f32.mxu0 0.0
      %3764 = vmatmul.mubr.f32.gmra.mxu0 %v3562
      %v3765 = vpop.f32.mrf.mxu0
      %v3766 = vadd.f32 0.0, %v3765
      %v3767 = vpop.f32.mrf.mxu0
      %3768 = vmatprep.mubr.f32.mxu0 0.0
      %3769 = vmatmul.mubr.f32.gmra.mxu0 %v3565
      %v3770 = vpop.f32.mrf.mxu0
      %v3771 = vadd.f32 0.0, %v3770
      %v3772 = vpop.f32.mrf.mxu0
      %3773 = vmatprep.mubr.f32.mxu0 0.0
      %3774 = vmatmul.mubr.f32.gmra.mxu0 %v3568
      %v3775 = vpop.f32.mrf.mxu0
      %v3776 = vadd.f32 0.0, %v3775
      %v3777 = vpop.f32.mrf.mxu0
      %3778 = vmatprep.mubr.f32.mxu0 0.0
      %3779 = vmatmul.mubr.f32.gmra.mxu0 %v3571
      %v3780 = vpop.f32.mrf.mxu0
      %v3781 = vadd.f32 0.0, %v3780
      %v3782 = vpop.f32.mrf.mxu0
      %3783 = vmatprep.mubr.f32.mxu0 0.0
      %3784 = vmatmul.mubr.f32.gmra.mxu0 %v3574
      %v3785 = vpop.f32.mrf.mxu0
      %v3786 = vadd.f32 0.0, %v3785
      %v3787 = vpop.f32.mrf.mxu0
      %3788 = vmatprep.mubr.f32.mxu0 0.0
      %3789 = vmatmul.mubr.f32.gmra.mxu0 %v3577
      %v3790 = vpop.f32.mrf.mxu0
      %v3791 = vadd.f32 0.0, %v3790
      %v3792 = vpop.f32.mrf.mxu0
      %3793 = vmatprep.mubr.f32.mxu0 0.0
      %3794 = vmatmul.mubr.f32.gmra.mxu0 %v3580
      %v3795 = vpop.f32.mrf.mxu0
      %v3796 = vadd.f32 0.0, %v3795
      %v3797 = vpop.f32.mrf.mxu0
      %3798 = vmatprep.mubr.f32.mxu0 0.0
      %3799 = vmatmul.mubr.f32.gmra.mxu0 %v3583
      %v3800 = vpop.f32.mrf.mxu0
      %v3801 = vadd.f32 0.0, %v3800
      %v3802 = vpop.f32.mrf.mxu0
      %3803 = vmatprep.mubr.f32.mxu0 0.0
      %3804 = vmatmul.mubr.f32.gmra.mxu0 %v3586
      %v3805 = vpop.f32.mrf.mxu0
      %v3806 = vadd.f32 0.0, %v3805
      %v3807 = vpop.f32.mrf.mxu0
      %3808 = vmatprep.mubr.f32.mxu0 0.0
      %3809 = vmatmul.mubr.f32.gmra.mxu0 %v3589
      %v3810 = vpop.f32.mrf.mxu0
      %v3811 = vadd.f32 0.0, %v3810
      %v3812 = vpop.f32.mrf.mxu0
      %3813 = vmatprep.mubr.f32.mxu0 0.0
      %3814 = vmatmul.mubr.f32.gmra.mxu0 %v3592
      %v3815 = vpop.f32.mrf.mxu0
      %v3816 = vadd.f32 0.0, %v3815
      %v3817 = vpop.f32.mrf.mxu0
      %3818 = vdwg.mxu0
      %v3819 = vadd.f32 %v3432, %v3661
      %v3820 = vadd.f32 %v3433, %v3666
      %v3821 = vadd.f32 %v3434, %v3671
      %v3822 = vadd.f32 %v3435, %v3676
      %v3823 = vadd.f32 %v3436, %v3681
      %v3824 = vadd.f32 %v3437, %v3686
      %v3825 = vadd.f32 %v3438, %v3691
      %v3826 = vadd.f32 %v3439, %v3696
      %v3827 = vadd.f32 %v3440, %v3701
      %v3828 = vadd.f32 %v3441, %v3706
      %v3829 = vadd.f32 %v3442, %v3711
      %v3830 = vadd.f32 %v3443, %v3716
      %v3831 = vadd.f32 %v3444, %v3721
      %v3832 = vadd.f32 %v3445, %v3726
      %v3833 = vadd.f32 %v3446, %v3731
      %v3834 = vadd.f32 %v3447, %v3736
      %v3835 = vadd.f32 %v3448, %v3741
      %v3836 = vadd.f32 %v3449, %v3746
      %v3837 = vadd.f32 %v3450, %v3751
      %v3838 = vadd.f32 %v3451, %v3756
      %v3839 = vadd.f32 %v3452, %v3761
      %v3840 = vadd.f32 %v3453, %v3766
      %v3841 = vadd.f32 %v3454, %v3771
      %v3842 = vadd.f32 %v3455, %v3776
      %v3843 = vadd.f32 %v3456, %v3781
      %v3844 = vadd.f32 %v3457, %v3786
      %v3845 = vadd.f32 %v3458, %v3791
      %v3846 = vadd.f32 %v3459, %v3796
      %v3847 = vadd.f32 %v3460, %v3801
      %v3848 = vadd.f32 %v3461, %v3806
      %v3849 = vadd.f32 %v3462, %v3811
      %v3850 = vadd.f32 %v3463, %v3816
      %v3851 = vld [vmem:[%s3] sm:$0x1]
      %v3853 = vlaneseq
      %v3854 = vshrl.u32 %v3853, 7
      %v3855 = vsub.s32 0, %v3854
      %v3856 = vrot.slane %v3851, %v3855
      %v3858 = vadd.f32 %v3819, %v3856
      %v3859 = vadd.f32 %v3820, %v3856
      %v3860 = vadd.f32 %v3821, %v3856
      %v3861 = vadd.f32 %v3822, %v3856
      %v3862 = vadd.f32 %v3823, %v3856
      %v3863 = vadd.f32 %v3824, %v3856
      %v3864 = vadd.f32 %v3825, %v3856
      %v3865 = vadd.f32 %v3826, %v3856
      %v3866 = vadd.f32 %v3827, %v3856
      %v3867 = vadd.f32 %v3828, %v3856
      %v3868 = vadd.f32 %v3829, %v3856
      %v3869 = vadd.f32 %v3830, %v3856
      %v3870 = vadd.f32 %v3831, %v3856
      %v3871 = vadd.f32 %v3832, %v3856
      %v3872 = vadd.f32 %v3833, %v3856
      %v3873 = vadd.f32 %v3834, %v3856
      %v3874 = vadd.f32 %v3835, %v3856
      %v3875 = vadd.f32 %v3836, %v3856
      %v3876 = vadd.f32 %v3837, %v3856
      %v3877 = vadd.f32 %v3838, %v3856
      %v3878 = vadd.f32 %v3839, %v3856
      %v3879 = vadd.f32 %v3840, %v3856
      %v3880 = vadd.f32 %v3841, %v3856
      %v3881 = vadd.f32 %v3842, %v3856
      %v3882 = vadd.f32 %v3843, %v3856
      %v3883 = vadd.f32 %v3844, %v3856
      %v3884 = vadd.f32 %v3845, %v3856
      %v3885 = vadd.f32 %v3846, %v3856
      %v3886 = vadd.f32 %v3847, %v3856
      %v3887 = vadd.f32 %v3848, %v3856
      %v3888 = vadd.f32 %v3849, %v3856
      %v3889 = vadd.f32 %v3850, %v3856
      %vm3890 = vcmp.ge.f32.partialorder %v3858, 0.0
      %vm3891 = vcmp.ge.f32.partialorder %v3859, 0.0
      %vm3892 = vcmp.ge.f32.partialorder %v3860, 0.0
      %vm3893 = vcmp.ge.f32.partialorder %v3861, 0.0
      %vm3894 = vcmp.ge.f32.partialorder %v3862, 0.0
      %vm3895 = vcmp.ge.f32.partialorder %v3863, 0.0
      %vm3896 = vcmp.ge.f32.partialorder %v3864, 0.0
      %vm3897 = vcmp.ge.f32.partialorder %v3865, 0.0
      %vm3898 = vcmp.ge.f32.partialorder %v3866, 0.0
      %vm3899 = vcmp.ge.f32.partialorder %v3867, 0.0
      %vm3900 = vcmp.ge.f32.partialorder %v3868, 0.0
      %vm3901 = vcmp.ge.f32.partialorder %v3869, 0.0
      %vm3902 = vcmp.ge.f32.partialorder %v3870, 0.0
      %vm3903 = vcmp.ge.f32.partialorder %v3871, 0.0
      %vm3904 = vcmp.ge.f32.partialorder %v3872, 0.0
      %vm3905 = vcmp.ge.f32.partialorder %v3873, 0.0
      %vm3906 = vcmp.ge.f32.partialorder %v3874, 0.0
      %vm3907 = vcmp.ge.f32.partialorder %v3875, 0.0
      %vm3908 = vcmp.ge.f32.partialorder %v3876, 0.0
      %vm3909 = vcmp.ge.f32.partialorder %v3877, 0.0
      %vm3910 = vcmp.ge.f32.partialorder %v3878, 0.0
      %vm3911 = vcmp.ge.f32.partialorder %v3879, 0.0
      %vm3912 = vcmp.ge.f32.partialorder %v3880, 0.0
      %vm3913 = vcmp.ge.f32.partialorder %v3881, 0.0
      %vm3914 = vcmp.ge.f32.partialorder %v3882, 0.0
      %vm3915 = vcmp.ge.f32.partialorder %v3883, 0.0
      %vm3916 = vcmp.ge.f32.partialorder %v3884, 0.0
      %vm3917 = vcmp.ge.f32.partialorder %v3885, 0.0
      %vm3918 = vcmp.ge.f32.partialorder %v3886, 0.0
      %vm3919 = vcmp.ge.f32.partialorder %v3887, 0.0
      %vm3920 = vcmp.ge.f32.partialorder %v3888, 0.0
      %vm3921 = vcmp.ge.f32.partialorder %v3889, 0.0
      %v3922 = vmul.f32 %v3858, 0.01
      %v3923 = vmul.f32 %v3859, 0.01
      %v3924 = vmul.f32 %v3860, 0.01
      %v3925 = vmul.f32 %v3861, 0.01
      %v3926 = vmul.f32 %v3862, 0.01
      %v3927 = vmul.f32 %v3863, 0.01
      %v3928 = vmul.f32 %v3864, 0.01
      %v3929 = vmul.f32 %v3865, 0.01
      %v3930 = vmul.f32 %v3866, 0.01
      %v3931 = vmul.f32 %v3867, 0.01
      %v3932 = vmul.f32 %v3868, 0.01
      %v3933 = vmul.f32 %v3869, 0.01
      %v3934 = vmul.f32 %v3870, 0.01
      %v3935 = vmul.f32 %v3871, 0.01
      %v3936 = vmul.f32 %v3872, 0.01
      %v3937 = vmul.f32 %v3873, 0.01
      %v3938 = vmul.f32 %v3874, 0.01
      %v3939 = vmul.f32 %v3875, 0.01
      %v3940 = vmul.f32 %v3876, 0.01
      %v3941 = vmul.f32 %v3877, 0.01
      %v3942 = vmul.f32 %v3878, 0.01
      %v3943 = vmul.f32 %v3879, 0.01
      %v3944 = vmul.f32 %v3880, 0.01
      %v3945 = vmul.f32 %v3881, 0.01
      %v3946 = vmul.f32 %v3882, 0.01
      %v3947 = vmul.f32 %v3883, 0.01
      %v3948 = vmul.f32 %v3884, 0.01
      %v3949 = vmul.f32 %v3885, 0.01
      %v3950 = vmul.f32 %v3886, 0.01
      %v3951 = vmul.f32 %v3887, 0.01
      %v3952 = vmul.f32 %v3888, 0.01
      %v3953 = vmul.f32 %v3889, 0.01
      %v3954 = vsel %vm3890, %v3858, %v3922
      %v3955 = vsel %vm3891, %v3859, %v3923
      %v3956 = vsel %vm3892, %v3860, %v3924
      %v3957 = vsel %vm3893, %v3861, %v3925
      %v3958 = vsel %vm3894, %v3862, %v3926
      %v3959 = vsel %vm3895, %v3863, %v3927
      %v3960 = vsel %vm3896, %v3864, %v3928
      %v3961 = vsel %vm3897, %v3865, %v3929
      %v3962 = vsel %vm3898, %v3866, %v3930
      %v3963 = vsel %vm3899, %v3867, %v3931
      %v3964 = vsel %vm3900, %v3868, %v3932
      %v3965 = vsel %vm3901, %v3869, %v3933
      %v3966 = vsel %vm3902, %v3870, %v3934
      %v3967 = vsel %vm3903, %v3871, %v3935
      %v3968 = vsel %vm3904, %v3872, %v3936
      %v3969 = vsel %vm3905, %v3873, %v3937
      %v3970 = vsel %vm3906, %v3874, %v3938
      %v3971 = vsel %vm3907, %v3875, %v3939
      %v3972 = vsel %vm3908, %v3876, %v3940
      %v3973 = vsel %vm3909, %v3877, %v3941
      %v3974 = vsel %vm3910, %v3878, %v3942
      %v3975 = vsel %vm3911, %v3879, %v3943
      %v3976 = vsel %vm3912, %v3880, %v3944
      %v3977 = vsel %vm3913, %v3881, %v3945
      %v3978 = vsel %vm3914, %v3882, %v3946
      %v3979 = vsel %vm3915, %v3883, %v3947
      %v3980 = vsel %vm3916, %v3884, %v3948
      %v3981 = vsel %vm3917, %v3885, %v3949
      %v3982 = vsel %vm3918, %v3886, %v3950
      %v3983 = vsel %vm3919, %v3887, %v3951
      %v3984 = vsel %vm3920, %v3888, %v3952
      %v3985 = vsel %vm3921, %v3889, %v3953
      %3986 = vst [vmem:[%s318] sm:$0xff] %v3954
      %3987 = vst [vmem:[%s318 + $0x8] sm:$0xff] %v3955
      %3988 = vst [vmem:[%s318 + $0x10] sm:$0xff] %v3956
      %3989 = vst [vmem:[%s318 + $0x18] sm:$0xff] %v3957
      %3990 = vst [vmem:[%s318 + $0x20] sm:$0xff] %v3958
      %3991 = vst [vmem:[%s318 + $0x28] sm:$0xff] %v3959
      %3992 = vst [vmem:[%s318 + $0x30] sm:$0xff] %v3960
      %3993 = vst [vmem:[%s318 + $0x38] sm:$0xff] %v3961
      %3994 = vst [vmem:[%s318 + $0x40] sm:$0xff] %v3962
      %3995 = vst [vmem:[%s318 + $0x48] sm:$0xff] %v3963
      %3996 = vst [vmem:[%s318 + $0x50] sm:$0xff] %v3964
      %3997 = vst [vmem:[%s318 + $0x58] sm:$0xff] %v3965
      %3998 = vst [vmem:[%s318 + $0x60] sm:$0xff] %v3966
      %3999 = vst [vmem:[%s318 + $0x68] sm:$0xff] %v3967
      %4000 = vst [vmem:[%s318 + $0x70] sm:$0xff] %v3968
      %4001 = vst [vmem:[%s318 + $0x78] sm:$0xff] %v3969
      %4002 = vst [vmem:[%s318 + $0x80] sm:$0xff] %v3970
      %4003 = vst [vmem:[%s318 + $0x88] sm:$0xff] %v3971
      %4004 = vst [vmem:[%s318 + $0x90] sm:$0xff] %v3972
      %4005 = vst [vmem:[%s318 + $0x98] sm:$0xff] %v3973
      %4006 = vst [vmem:[%s318 + $0xa0] sm:$0xff] %v3974
      %4007 = vst [vmem:[%s318 + $0xa8] sm:$0xff] %v3975
      %4008 = vst [vmem:[%s318 + $0xb0] sm:$0xff] %v3976
      %4009 = vst [vmem:[%s318 + $0xb8] sm:$0xff] %v3977
      %4010 = vst [vmem:[%s318 + $0xc0] sm:$0xff] %v3978
      %4011 = vst [vmem:[%s318 + $0xc8] sm:$0xff] %v3979
      %4012 = vst [vmem:[%s318 + $0xd0] sm:$0xff] %v3980
      %4013 = vst [vmem:[%s318 + $0xd8] sm:$0xff] %v3981
      %4014 = vst [vmem:[%s318 + $0xe0] sm:$0xff] %v3982
      %4015 = vst [vmem:[%s318 + $0xe8] sm:$0xff] %v3983
      %4016 = vst [vmem:[%s318 + $0xf0] sm:$0xff] %v3984
      %4017 = vst [vmem:[%s318 + $0xf8] sm:$0xff] %v3985
      %s4018 = smul.u32 16, %s20
      %p4019 = scmp.lt.s32.totalorder %s19, 1
      %s4020 = scalar_select %p4019, %s19, 1
      %p4021 = scmp.lt.s32.totalorder %s4018, 15
      %s4022 = scalar_select %p4021, %s4018, 15
      %s4023 = smul.addr %s4022, 2
      %s4024 = smul.addr %s4020, 32
      %s4025 = sadd.s32 %s4023, %s4024
      %s4026 = smul.addr %s4025, 8
      %s4027 = scalar_lea.vmem %s4, %s4026
      // Predicated region
      $region37: #{conv_dropout_norm_nonlin.1} parent=35 // pred_check
        %p4028 = pneg %p149
      $region38: #{conv_dropout_norm_nonlin.1} parent=35 // pred_check_branch
        %4030 = sbr.rel (%p4028) target = $region40
      $region39: #{conv_dropout_norm_nonlin.1} parent=35 // pred_region
        %s4031 = smul.u32 16, %s20
      $region40: #{conv_dropout_norm_nonlin.1} parent=35 // pred_fallthru
        _
    $region36: #{conv_dropout_norm_nonlin.1} parent=5 // pred_fallthru
      _
    %p4032 = scmp.le.s32.totalorder 2, %s10
    // Predicated region
    $region41: #{conv_dropout_norm_nonlin.1} parent=5 // pred_check
      %p4033 = pneg %p4032
    $region42: #{conv_dropout_norm_nonlin.1} parent=5 // pred_check_branch
      %4035 = sbr.rel (%p4033) target = $region44
    $region43: #{conv_dropout_norm_nonlin.1} parent=5 // pred_region
      %s4036 = ssub.s32 %s10, 2
      // Predicated region
      $region45: #{conv_dropout_norm_nonlin.1} parent=43 // pred_check
        %p4037 = pneg %p155
      $region46: #{conv_dropout_norm_nonlin.1} parent=43 // pred_check_branch
        %4039 = sbr.rel (%p4037) target = $region48
      $region47: #{conv_dropout_norm_nonlin.1} parent=43 // pred_region
        %s4040 = smul.u32 16, %s22
        %p4041 = scmp.lt.s32.totalorder %s21, 1
        %s4042 = scalar_select %p4041, %s21, 1
        %p4043 = scmp.lt.s32.totalorder %s4040, 15
        %s4044 = scalar_select %p4043, %s4040, 15
        %s4045 = smul.addr %s4044, 2
        %s4046 = smul.addr %s4042, 32
        %s4047 = sadd.s32 %s4045, %s4046
        %s4048 = smul.addr %s4047, 8
        %s4049 = scalar_lea.vmem %s4, %s4048
      $region48: #{conv_dropout_norm_nonlin.1} parent=43 // pred_fallthru
        _
    $region44: #{conv_dropout_norm_nonlin.1} parent=5 // pred_fallthru
      _
  $region6: #{conv_dropout_norm_nonlin.1} parent=0 // loop_footer
    %s14 = sadd.s32 1, %s10
  $region7: #{conv_dropout_norm_nonlin.1} parent=0 // loop_footer_branch
    %9 = sbr.rel target = $region3
  $region8: #{conv_dropout_norm_nonlin.1} parent=0 // loop_exit
    _

</llo_original>
